<compile_context>
chip_gen: v5e
topology: v5e:2x2
jax: 0.10.0
libtpu: 0.0.40
codegen_flags: <defaults>
</compile_context>

<pallas_src>
import functools
import math

import numpy as np
import jax
import jax.numpy as jnp
from jax.experimental import pallas as pl
from jax.experimental.pallas import tpu as pltpu

EPS = 1e-5        # nn.GroupNorm default eps
LANE = 128
SUBLANE = 8


# ----------------------------- helpers (match the PyTorch code) -----------------------
def _num_groups(channels):
    groups = 32
    if channels <= 16:
        groups = 8
    elif channels <= 64:
        groups = 16
    while channels % groups != 0:
        groups = int(groups / 2)
    assert groups > 2
    return groups


def _round_up(x, m):
    return (x + m - 1) // m * m


# ------------------------------------- Pallas kernel -----------------------------------
def _resblock_kernel(x_ref, g1_ref, be1_ref, m1_ref, m1t_ref, w1_ref, cb1_ref,
                     g2_ref, be2_ref, m2_ref, m2t_ref, w2_ref, cb2_ref, o_ref,
                     *, Bt, L, LP, CP, CPO, count1, count2):
    f32 = jnp.float32
    bf16 = jnp.bfloat16
    BLP = Bt * LP

    # Row-validity mask (rows >= L inside each stacked batch slab). Built once and
    # only when padded rows exist; CP == CPO in the identity-skip config so one mask
    # serves both stages.
    if LP > L:
        mask = (jax.lax.broadcasted_iota(jnp.int32, (Bt, LP, CP), 1) < L
                ).astype(f32).reshape(BLP, CP)
    else:
        mask = None

    def apply_mask(h):
        return h if mask is None else h * mask

    def silu(t):
        return t * jax.nn.sigmoid(t)

    def group_norm(h2d, m_ref, mt_ref, gamma_ref, beta_ref, count):
        # h2d: (BLP, C) f32 with padded rows already zero (they contribute nothing
        # to the statistics). Per-batch sums over L (XLU), then ONE stacked
        # (2*Bt, C)@(C, G) matmul for the group aggregate and ONE stacked
        # (2*Bt, G)@(G, C) matmul for the broadcast-back.
        c = h2d.shape[1]
        h3 = h2d.reshape(Bt, LP, c)
        s = jnp.sum(h3, axis=1)                               # (Bt, C)
        ss = jnp.sum(h3 * h3, axis=1)                         # (Bt, C)
        gstats = jnp.dot(jnp.concatenate([s, ss], axis=0), m_ref[...],
                         preferred_element_type=f32)          # (2*Bt, G)
        inv = 1.0 / count
        mean_g = gstats[:Bt] * inv
        var_g = jnp.maximum(gstats[Bt:] * inv - mean_g * mean_g, 0.0)
        rstd_g = jax.lax.rsqrt(var_g + EPS)
        back = jnp.dot(jnp.concatenate([mean_g, rstd_g], axis=0), mt_ref[...],
                       preferred_element_type=f32)            # (2*Bt, C)
        mean_c = back[:Bt][:, None, :]                        # (Bt, 1, C)
        rstd_c = back[Bt:][:, None, :]
        hn = (h3 - mean_c) * (rstd_c * gamma_ref[...]) + beta_ref[...]
        return hn.reshape(BLP, c)

    def conv3(h2d, w_ref, b_ref):
        # k=3 / pad=1 conv as THREE accumulating MXU matmuls (no (L, 3C) lane-concat
        # is materialized). Padded rows of h2d are zero, so the one-row shifts across
        # stacked-batch boundaries only pull zeros into valid rows. Matmul operands
        # go to bf16; accumulation stays f32.
        c = h2d.shape[1]
        zero = jnp.zeros((1, c), f32)
        h_prev = jnp.concatenate([zero, h2d[:-1, :]], axis=0)     # h[l-1]
        h_next = jnp.concatenate([h2d[1:, :], zero], axis=0)      # h[l+1]
        acc = jnp.dot(h2d.astype(bf16), w_ref[1], preferred_element_type=f32)
        acc = acc + jnp.dot(h_prev.astype(bf16), w_ref[0], preferred_element_type=f32)
        acc = acc + jnp.dot(h_next.astype(bf16), w_ref[2], preferred_element_type=f32)
        return acc + b_ref[...]

    x2d = x_ref[...].reshape(BLP, CP)

    # in_layers: GroupNorm -> SiLU -> Conv1d(k=3, pad=1)
    h = apply_mask(silu(group_norm(x2d, m1_ref, m1t_ref, g1_ref, be1_ref, count1)))
    h = apply_mask(conv3(h, w1_ref, cb1_ref))                     # (BLP, CPO)

    # out_layers: GroupNorm -> SiLU -> Dropout (eval: identity) -> Conv1d(k=3, pad=1)
    h2 = apply_mask(silu(group_norm(h, m2_ref, m2t_ref, g2_ref, be2_ref, count2)))
    h2 = conv3(h2, w2_ref, cb2_ref)                               # (BLP, CPO)

    # skip_connection = Identity: re-read the resident input block (short live range)
    o_ref[...] = x_ref[...] + h2.reshape(Bt, LP, CPO)


# --------------------------------------- wrapper ---------------------------------------
def resblock_forward(x, params, *, block_batches=8):
    """x: (B, C, L) float32 -> (B, C, L) float32 (default ResBlock config)."""
    B, C, L = x.shape
    w1 = params["conv1_w"]
    Cout = w1.shape[0]
    assert Cout == C, "TODO(synk): out_channels != channels (conv skip) not implemented"

    G1 = _num_groups(C)
    G2 = _num_groups(Cout)

    f32 = jnp.float32
    CP = _round_up(C, LANE)
    CPO = _round_up(Cout, LANE)
    GP = LANE                       # group dim padded to one full lane tile

    # Stack several batches per grid step (keeps the MXU busy at small L/C and
    # amortizes per-step overhead); the batch axis is still "parallel" for megacore.
    Bt = min(B, block_batches)
    Bp = _round_up(B, Bt)
    # With stacked batches keep >= 1 zero row between slabs so the conv halo shifts
    # cannot leak across batch boundaries.
    LP = _round_up(L + 1, SUBLANE) if Bt > 1 else _round_up(L, SUBLANE)

    # activations: (B, C, L) -> (Bp, LP, CP) channels-last, zero padded.
    # TODO(synk): keep the surrounding model in channels-last layout so this transpose/
    #             pad (and the slice/transpose after the kernel) disappear entirely.
    xt = jnp.transpose(x, (0, 2, 1)).astype(f32)
    xt = jnp.pad(xt, ((0, Bp - B), (0, LP - L), (0, CP - C)))

    def pad_vec(v, n):
        v = jnp.asarray(v, f32)
        return jnp.pad(v, (0, n - v.shape[0])).reshape(1, n)

    def membership(c, cp, g):
        m = np.zeros((cp, GP), np.float32)
        cg = c // g
        for ch in range(c):
            m[ch, ch // cg] = 1.0
        return jnp.asarray(m), jnp.asarray(m.T)

    def pack_conv(w, b, cin, cinp, cout, coutp):
        w_np = np.asarray(w, np.float32)                 # (cout, cin, 3)
        wk = np.zeros((3, cinp, coutp), np.float32)      # per-tap matrices
        for k in range(3):
            wk[k, :cin, :cout] = w_np[:, :, k].T
        return jnp.asarray(wk, jnp.bfloat16), pad_vec(b, coutp)

    g1 = pad_vec(params["gn1_gamma"], CP)
    be1 = pad_vec(params["gn1_beta"], CP)
    m1, m1t = membership(C, CP, G1)
    w1p, cb1 = pack_conv(params["conv1_w"], params["conv1_b"], C, CP, Cout, CPO)

    g2 = pad_vec(params["gn2_gamma"], CPO)
    be2 = pad_vec(params["gn2_beta"], CPO)
    m2, m2t = membership(Cout, CPO, G2)
    w2p, cb2 = pack_conv(params["conv2_w"], params["conv2_b"], Cout, CPO, Cout, CPO)

    kernel = functools.partial(
        _resblock_kernel, Bt=Bt, L=L, LP=LP, CP=CP, CPO=CPO,
        count1=float((C // G1) * L), count2=float((Cout // G2) * L))

    flops = int(2 * Bp * LP * 3 * (CP * CPO + CPO * CPO) + 8 * Bp * LP * (CP + CPO))
    transcendentals = int(Bp * LP * (CP + CPO))
    bytes_accessed = int(4 * (xt.size + Bp * LP * CPO)
                         + 2 * (w1p.size + w2p.size)
                         + 4 * (2 * (CP + CPO) * GP + 3 * (CP + CPO)))

    def build_specs(use_buffered):
        def const_spec(shape):
            zeros = (0,) * len(shape)
            if use_buffered:
                # Constant operands never change block index -> single buffer (saves VMEM).
                return pl.BlockSpec(shape, lambda b: zeros, pipeline_mode=pl.Buffered(1))
            return pl.BlockSpec(shape, lambda b: zeros)
        return [
            pl.BlockSpec((Bt, LP, CP), lambda b: (b, 0, 0)),     # x tile (Bt batches)
            const_spec((1, CP)), const_spec((1, CP)),            # gamma1, beta1
            const_spec((CP, GP)), const_spec((GP, CP)),          # group membership / T
            const_spec((3, CP, CPO)), const_spec((1, CPO)),      # conv1 taps (bf16), bias
            const_spec((1, CPO)), const_spec((1, CPO)),          # gamma2, beta2
            const_spec((CPO, GP)), const_spec((GP, CPO)),        # group membership / T
            const_spec((3, CPO, CPO)), const_spec((1, CPO)),     # conv2 taps (bf16), bias
        ]

    def run(use_buffered):
        return pl.pallas_call(
            kernel,
            out_shape=jax.ShapeDtypeStruct((Bp, LP, CPO), f32),
            grid=(Bp // Bt,),
            in_specs=build_specs(use_buffered),
            out_specs=pl.BlockSpec((Bt, LP, CPO), lambda b: (b, 0, 0)),
            compiler_params=pltpu.CompilerParams(
                dimension_semantics=("parallel",),
                # Safe under the v7x 64 MiB/TC ceiling; v5e/v6e (128 MiB) may raise it.
                vmem_limit_bytes=48 << 20),
            cost_estimate=pl.CostEstimate(
                flops=flops, transcendentals=transcendentals,
                bytes_accessed=bytes_accessed),
        )(xt, g1, be1, m1, m1t, w1p, cb1, g2, be2, m2, m2t, w2p, cb2)

    try:
        out = run(use_buffered=hasattr(pl, "Buffered"))
    except Exception:
        # Fallback for jax versions where BlockSpec.pipeline_mode / Buffered(1) is not
        # supported; genuine kernel errors will simply re-raise from this second call.
        out = run(use_buffered=False)

    out = out[:B, :L, :Cout]
    return jnp.transpose(out, (0, 2, 1))


# ----------------------------- pure-JAX reference (for checking) -----------------------
def resblock_reference(x, params):
    def gn(h, g, gamma, beta):
        B, C, L = h.shape
        hg = h.reshape(B, g, (C // g) * L)
        mean = jnp.mean(hg, axis=-1, keepdims=True)
        var = jnp.mean((hg - mean) ** 2, axis=-1, keepdims=True)
        hn = ((hg - mean) * jax.lax.rsqrt(var + EPS)).reshape(B, C, L)
        return hn * gamma[None, :, None] + beta[None, :, None]

    def conv3(h, w, b):
        y = jax.lax.conv_general_dilated(
            h, w, window_strides=(1,), padding=((1, 1),),
            dimension_numbers=("NCH", "OIH", "NCH"),
            precision=jax.lax.Precision.HIGHEST)
        return y + b[None, :, None]

    def silu(t):
        return t * jax.nn.sigmoid(t)

    C = x.shape[1]
    Cout = params["conv1_w"].shape[0]
    h = conv3(silu(gn(x, _num_groups(C), params["gn1_gamma"], params["gn1_beta"])),
              params["conv1_w"], params["conv1_b"])
    h = conv3(silu(gn(h, _num_groups(Cout), params["gn2_gamma"], params["gn2_beta"])),
              params["conv2_w"], params["conv2_b"])
    return x + h


if __name__ == "__main__":
    key = jax.random.PRNGKey(0)
    B, C, L = 2, 32, 64
    ks = jax.random.split(key, 9)
    x = jax.random.normal(ks[0], (B, C, L), dtype=jnp.float32)
    scale = 1.0 / math.sqrt(3 * C)
    params = {
        "gn1_gamma": 1.0 + 0.5 * jax.random.normal(ks[1], (C,), jnp.float32),
        "gn1_beta": 0.1 * jax.random.normal(ks[2], (C,), jnp.float32),
        "conv1_w": scale * jax.random.normal(ks[3], (C, C, 3), jnp.float32),
        "conv1_b": 0.1 * jax.random.normal(ks[4], (C,), jnp.float32),
        "gn2_gamma": 1.0 + 0.5 * jax.random.normal(ks[5], (C,), jnp.float32),
        "gn2_beta": 0.1 * jax.random.normal(ks[6], (C,), jnp.float32),
        # NOTE: the PyTorch module zero-initializes this conv (zero_module); random
        # weights are used here so the full compute path is actually exercised.
        "conv2_w": scale * jax.random.normal(ks[7], (C, C, 3), jnp.float32),
        "conv2_b": 0.1 * jax.random.normal(ks[8], (C,), jnp.float32),
    }

    out = jax.block_until_ready(resblock_forward(x, params))
    ref = jax.block_until_ready(resblock_reference(x, params))

    assert out.shape == (B, C, L), out.shape
    assert out.dtype == jnp.float32
    # bf16 MXU operands on the two convs slightly loosen parity vs the f32 reference.
    err = float(jnp.max(jnp.abs(out - ref)))
    assert err < 5e-2, f"max abs err vs reference: {err}"
    print("KERNEL_OK")
</pallas_src>

<mosaic_0001>
module attributes {stable_mosaic.version = 11 : i64} {
  func.func @_resblock_kernel(%arg0: i32, %arg1: memref<2x72x128xf32, #tpu.memory_space<vmem>>, %arg2: memref<1x128xf32, #tpu.memory_space<vmem>>, %arg3: memref<1x128xf32, #tpu.memory_space<vmem>>, %arg4: memref<128x128xf32, #tpu.memory_space<vmem>>, %arg5: memref<128x128xf32, #tpu.memory_space<vmem>>, %arg6: memref<3x128x128xbf16, #tpu.memory_space<vmem>>, %arg7: memref<1x128xf32, #tpu.memory_space<vmem>>, %arg8: memref<1x128xf32, #tpu.memory_space<vmem>>, %arg9: memref<1x128xf32, #tpu.memory_space<vmem>>, %arg10: memref<128x128xf32, #tpu.memory_space<vmem>>, %arg11: memref<128x128xf32, #tpu.memory_space<vmem>>, %arg12: memref<3x128x128xbf16, #tpu.memory_space<vmem>>, %arg13: memref<1x128xf32, #tpu.memory_space<vmem>>, %arg14: memref<2x72x128xf32, #tpu.memory_space<vmem>>) attributes {dimension_semantics = [#tpu.dimension_semantics<parallel>], iteration_bounds = array<i64: 1>, scalar_prefetch = 0 : i64, scratch_operands = 0 : i64, tpu.core_type = #tpu.core_type<tc>, window_params = [{transform_indices = @transform_0, window_bounds = array<i64: 2, 72, 128>}, {pipeline_mode = #tpu.pipeline_mode<synchronous>, transform_indices = @transform_1, window_bounds = array<i64: 1, 128>}, {pipeline_mode = #tpu.pipeline_mode<synchronous>, transform_indices = @transform_2, window_bounds = array<i64: 1, 128>}, {pipeline_mode = #tpu.pipeline_mode<synchronous>, transform_indices = @transform_3, window_bounds = array<i64: 128, 128>}, {pipeline_mode = #tpu.pipeline_mode<synchronous>, transform_indices = @transform_4, window_bounds = array<i64: 128, 128>}, {pipeline_mode = #tpu.pipeline_mode<synchronous>, transform_indices = @transform_5, window_bounds = array<i64: 3, 128, 128>}, {pipeline_mode = #tpu.pipeline_mode<synchronous>, transform_indices = @transform_6, window_bounds = array<i64: 1, 128>}, {pipeline_mode = #tpu.pipeline_mode<synchronous>, transform_indices = @transform_7, window_bounds = array<i64: 1, 128>}, {pipeline_mode = #tpu.pipeline_mode<synchronous>, transform_indices = @transform_8, window_bounds = array<i64: 1, 128>}, {pipeline_mode = #tpu.pipeline_mode<synchronous>, transform_indices = @transform_9, window_bounds = array<i64: 128, 128>}, {pipeline_mode = #tpu.pipeline_mode<synchronous>, transform_indices = @transform_10, window_bounds = array<i64: 128, 128>}, {pipeline_mode = #tpu.pipeline_mode<synchronous>, transform_indices = @transform_11, window_bounds = array<i64: 3, 128, 128>}, {pipeline_mode = #tpu.pipeline_mode<synchronous>, transform_indices = @transform_12, window_bounds = array<i64: 1, 128>}, {transform_indices = @transform_13, window_bounds = array<i64: 2, 72, 128>}]} {
    %0 = tpu.iota {dimensions = array<i32: 1>} : vector<2x72x128xi32>
    %c64_i32 = arith.constant 64 : i32
    %1 = vector.broadcast %c64_i32 : i32 to vector<2x72x128xi32>
    %2 = arith.cmpi slt, %0, %1 : vector<2x72x128xi32>
    %3 = arith.extui %2 : vector<2x72x128xi1> to vector<2x72x128xi32>
    %4 = arith.sitofp %3 : vector<2x72x128xi32> to vector<2x72x128xf32>
    %5 = vector.shape_cast %4 : vector<2x72x128xf32> to vector<144x128xf32>
    %c0 = arith.constant 0 : index
    %c0_0 = arith.constant 0 : index
    %c0_1 = arith.constant 0 : index
    %6 = vector.load %arg1[%c0, %c0_0, %c0_1] : memref<2x72x128xf32, #tpu.memory_space<vmem>>, vector<2x72x128xf32>
    %7 = vector.shape_cast %6 : vector<2x72x128xf32> to vector<144x128xf32>
    %8 = vector.shape_cast %7 : vector<144x128xf32> to vector<2x72x128xf32>
    %cst = arith.constant dense<0.000000e+00> : vector<2x128xf32>
    %9 = vector.multi_reduction <add>, %8, %cst [1] : vector<2x72x128xf32> to vector<2x128xf32>
    %10 = arith.mulf %8, %8 : vector<2x72x128xf32>
    %cst_2 = arith.constant dense<0.000000e+00> : vector<2x128xf32>
    %11 = vector.multi_reduction <add>, %10, %cst_2 [1] : vector<2x72x128xf32> to vector<2x128xf32>
    %12 = tpu.concatenate %9, %11 in 0 : vector<2x128xf32>, vector<2x128xf32> -> vector<4x128xf32>
    %c0_3 = arith.constant 0 : index
    %c0_4 = arith.constant 0 : index
    %13 = vector.load %arg4[%c0_3, %c0_4] : memref<128x128xf32, #tpu.memory_space<vmem>>, vector<128x128xf32>
    %cst_5 = arith.constant dense<0.000000e+00> : vector<4x128xf32>
    %14 = tpu.matmul %12, %13, %cst_5 {dimension_numbers = #tpu.dot_dimension_numbers<[1], [0], [0], [1], [0, 0, 1, 1], [], []>} : vector<4x128xf32>, vector<128x128xf32>, vector<4x128xf32> -> vector<4x128xf32>
    %15 = vector.extract_strided_slice %14 {offsets = [0, 0], sizes = [2, 128], strides = [1, 1]} : vector<4x128xf32> to vector<2x128xf32>
    %cst_6 = arith.constant 7.812500e-03 : f32
    %16 = vector.broadcast %cst_6 : f32 to vector<2x128xf32>
    %17 = arith.mulf %15, %16 : vector<2x128xf32>
    %18 = vector.extract_strided_slice %14 {offsets = [2, 0], sizes = [2, 128], strides = [1, 1]} : vector<4x128xf32> to vector<2x128xf32>
    %cst_7 = arith.constant 7.812500e-03 : f32
    %19 = vector.broadcast %cst_7 : f32 to vector<2x128xf32>
    %20 = arith.mulf %18, %19 : vector<2x128xf32>
    %21 = arith.mulf %17, %17 : vector<2x128xf32>
    %22 = arith.subf %20, %21 : vector<2x128xf32>
    %cst_8 = arith.constant 0.000000e+00 : f32
    %23 = vector.broadcast %cst_8 : f32 to vector<2x128xf32>
    %24 = arith.maximumf %22, %23 : vector<2x128xf32>
    %cst_9 = arith.constant 9.99999974E-6 : f32
    %25 = vector.broadcast %cst_9 : f32 to vector<2x128xf32>
    %26 = arith.addf %24, %25 : vector<2x128xf32>
    %27 = math.rsqrt %26 : vector<2x128xf32>
    %28 = tpu.concatenate %17, %27 in 0 : vector<2x128xf32>, vector<2x128xf32> -> vector<4x128xf32>
    %c0_10 = arith.constant 0 : index
    %c0_11 = arith.constant 0 : index
    %29 = vector.load %arg5[%c0_10, %c0_11] : memref<128x128xf32, #tpu.memory_space<vmem>>, vector<128x128xf32>
    %cst_12 = arith.constant dense<0.000000e+00> : vector<4x128xf32>
    %30 = tpu.matmul %28, %29, %cst_12 {dimension_numbers = #tpu.dot_dimension_numbers<[1], [0], [0], [1], [0, 0, 1, 1], [], []>} : vector<4x128xf32>, vector<128x128xf32>, vector<4x128xf32> -> vector<4x128xf32>
    %31 = vector.extract_strided_slice %30 {offsets = [0, 0], sizes = [2, 128], strides = [1, 1]} : vector<4x128xf32> to vector<2x128xf32>
    %32 = vector.shape_cast %31 : vector<2x128xf32> to vector<2x1x128xf32>
    %33 = vector.extract_strided_slice %30 {offsets = [2, 0], sizes = [2, 128], strides = [1, 1]} : vector<4x128xf32> to vector<2x128xf32>
    %34 = vector.shape_cast %33 : vector<2x128xf32> to vector<2x1x128xf32>
    %35 = vector.broadcast %32 : vector<2x1x128xf32> to vector<2x72x128xf32>
    %36 = arith.subf %8, %35 : vector<2x72x128xf32>
    %c0_13 = arith.constant 0 : index
    %c0_14 = arith.constant 0 : index
    %37 = vector.load %arg2[%c0_13, %c0_14] : memref<1x128xf32, #tpu.memory_space<vmem>>, vector<1x128xf32>
    %38 = vector.shape_cast %37 : vector<1x128xf32> to vector<1x1x128xf32>
    %39 = vector.broadcast %38 : vector<1x1x128xf32> to vector<2x1x128xf32>
    %40 = arith.mulf %34, %39 : vector<2x1x128xf32>
    %41 = vector.broadcast %40 : vector<2x1x128xf32> to vector<2x72x128xf32>
    %42 = arith.mulf %36, %41 : vector<2x72x128xf32>
    %c0_15 = arith.constant 0 : index
    %c0_16 = arith.constant 0 : index
    %43 = vector.load %arg3[%c0_15, %c0_16] : memref<1x128xf32, #tpu.memory_space<vmem>>, vector<1x128xf32>
    %44 = vector.shape_cast %43 : vector<1x128xf32> to vector<1x1x128xf32>
    %45 = vector.broadcast %44 : vector<1x1x128xf32> to vector<2x72x128xf32>
    %46 = arith.addf %42, %45 : vector<2x72x128xf32>
    %47 = vector.shape_cast %46 : vector<2x72x128xf32> to vector<144x128xf32>
    %48 = arith.negf %47 : vector<144x128xf32>
    %49 = math.exp %48 : vector<144x128xf32>
    %cst_17 = arith.constant 1.000000e+00 : f32
    %50 = vector.broadcast %cst_17 : f32 to vector<144x128xf32>
    %51 = arith.addf %50, %49 : vector<144x128xf32>
    %52 = arith.divf %50, %51 : vector<144x128xf32>
    %53 = arith.mulf %47, %52 : vector<144x128xf32>
    %54 = arith.mulf %53, %5 : vector<144x128xf32>
    %cst_18 = arith.constant 0.000000e+00 : f32
    %55 = vector.broadcast %cst_18 : f32 to vector<1x128xf32>
    %56 = vector.extract_strided_slice %54 {offsets = [0, 0], sizes = [143, 128], strides = [1, 1]} : vector<144x128xf32> to vector<143x128xf32>
    %57 = tpu.concatenate %55, %56 in 0 : vector<1x128xf32>, vector<143x128xf32> -> vector<144x128xf32>
    %58 = vector.extract_strided_slice %54 {offsets = [1, 0], sizes = [143, 128], strides = [1, 1]} : vector<144x128xf32> to vector<143x128xf32>
    %59 = tpu.concatenate %58, %55 in 0 : vector<143x128xf32>, vector<1x128xf32> -> vector<144x128xf32>
    %60 = arith.truncf %54 : vector<144x128xf32> to vector<144x128xbf16>
    %c1 = arith.constant 1 : index
    %c0_19 = arith.constant 0 : index
    %c0_20 = arith.constant 0 : index
    %61 = vector.load %arg6[%c1, %c0_19, %c0_20] : memref<3x128x128xbf16, #tpu.memory_space<vmem>>, vector<1x128x128xbf16>
    %62 = vector.shape_cast %61 : vector<1x128x128xbf16> to vector<128x128xbf16>
    %cst_21 = arith.constant dense<0.000000e+00> : vector<144x128xf32>
    %63 = tpu.matmul %60, %62, %cst_21 {dimension_numbers = #tpu.dot_dimension_numbers<[1], [0], [0], [1], [0, 0, 1, 1], [], []>} : vector<144x128xbf16>, vector<128x128xbf16>, vector<144x128xf32> -> vector<144x128xf32>
    %64 = arith.truncf %57 : vector<144x128xf32> to vector<144x128xbf16>
    %c0_22 = arith.constant 0 : index
    %c0_23 = arith.constant 0 : index
    %c0_24 = arith.constant 0 : index
    %65 = vector.load %arg6[%c0_22, %c0_23, %c0_24] : memref<3x128x128xbf16, #tpu.memory_space<vmem>>, vector<1x128x128xbf16>
    %66 = vector.shape_cast %65 : vector<1x128x128xbf16> to vector<128x128xbf16>
    %cst_25 = arith.constant dense<0.000000e+00> : vector<144x128xf32>
    %67 = tpu.matmul %64, %66, %cst_25 {dimension_numbers = #tpu.dot_dimension_numbers<[1], [0], [0], [1], [0, 0, 1, 1], [], []>} : vector<144x128xbf16>, vector<128x128xbf16>, vector<144x128xf32> -> vector<144x128xf32>
    %68 = arith.addf %63, %67 : vector<144x128xf32>
    %69 = arith.truncf %59 : vector<144x128xf32> to vector<144x128xbf16>
    %c2 = arith.constant 2 : index
    %c0_26 = arith.constant 0 : index
    %c0_27 = arith.constant 0 : index
    %70 = vector.load %arg6[%c2, %c0_26, %c0_27] : memref<3x128x128xbf16, #tpu.memory_space<vmem>>, vector<1x128x128xbf16>
    %71 = vector.shape_cast %70 : vector<1x128x128xbf16> to vector<128x128xbf16>
    %cst_28 = arith.constant dense<0.000000e+00> : vector<144x128xf32>
    %72 = tpu.matmul %69, %71, %cst_28 {dimension_numbers = #tpu.dot_dimension_numbers<[1], [0], [0], [1], [0, 0, 1, 1], [], []>} : vector<144x128xbf16>, vector<128x128xbf16>, vector<144x128xf32> -> vector<144x128xf32>
    %73 = arith.addf %68, %72 : vector<144x128xf32>
    %c0_29 = arith.constant 0 : index
    %c0_30 = arith.constant 0 : index
    %74 = vector.load %arg7[%c0_29, %c0_30] : memref<1x128xf32, #tpu.memory_space<vmem>>, vector<1x128xf32>
    %75 = vector.broadcast %74 : vector<1x128xf32> to vector<144x128xf32>
    %76 = arith.addf %73, %75 : vector<144x128xf32>
    %77 = arith.mulf %76, %5 : vector<144x128xf32>
    %78 = vector.shape_cast %77 : vector<144x128xf32> to vector<2x72x128xf32>
    %cst_31 = arith.constant dense<0.000000e+00> : vector<2x128xf32>
    %79 = vector.multi_reduction <add>, %78, %cst_31 [1] : vector<2x72x128xf32> to vector<2x128xf32>
    %80 = arith.mulf %78, %78 : vector<2x72x128xf32>
    %cst_32 = arith.constant dense<0.000000e+00> : vector<2x128xf32>
    %81 = vector.multi_reduction <add>, %80, %cst_32 [1] : vector<2x72x128xf32> to vector<2x128xf32>
    %82 = tpu.concatenate %79, %81 in 0 : vector<2x128xf32>, vector<2x128xf32> -> vector<4x128xf32>
    %c0_33 = arith.constant 0 : index
    %c0_34 = arith.constant 0 : index
    %83 = vector.load %arg10[%c0_33, %c0_34] : memref<128x128xf32, #tpu.memory_space<vmem>>, vector<128x128xf32>
    %cst_35 = arith.constant dense<0.000000e+00> : vector<4x128xf32>
    %84 = tpu.matmul %82, %83, %cst_35 {dimension_numbers = #tpu.dot_dimension_numbers<[1], [0], [0], [1], [0, 0, 1, 1], [], []>} : vector<4x128xf32>, vector<128x128xf32>, vector<4x128xf32> -> vector<4x128xf32>
    %85 = vector.extract_strided_slice %84 {offsets = [0, 0], sizes = [2, 128], strides = [1, 1]} : vector<4x128xf32> to vector<2x128xf32>
    %cst_36 = arith.constant 7.812500e-03 : f32
    %86 = vector.broadcast %cst_36 : f32 to vector<2x128xf32>
    %87 = arith.mulf %85, %86 : vector<2x128xf32>
    %88 = vector.extract_strided_slice %84 {offsets = [2, 0], sizes = [2, 128], strides = [1, 1]} : vector<4x128xf32> to vector<2x128xf32>
    %cst_37 = arith.constant 7.812500e-03 : f32
    %89 = vector.broadcast %cst_37 : f32 to vector<2x128xf32>
    %90 = arith.mulf %88, %89 : vector<2x128xf32>
    %91 = arith.mulf %87, %87 : vector<2x128xf32>
    %92 = arith.subf %90, %91 : vector<2x128xf32>
    %cst_38 = arith.constant 0.000000e+00 : f32
    %93 = vector.broadcast %cst_38 : f32 to vector<2x128xf32>
    %94 = arith.maximumf %92, %93 : vector<2x128xf32>
    %cst_39 = arith.constant 9.99999974E-6 : f32
    %95 = vector.broadcast %cst_39 : f32 to vector<2x128xf32>
    %96 = arith.addf %94, %95 : vector<2x128xf32>
    %97 = math.rsqrt %96 : vector<2x128xf32>
    %98 = tpu.concatenate %87, %97 in 0 : vector<2x128xf32>, vector<2x128xf32> -> vector<4x128xf32>
    %c0_40 = arith.constant 0 : index
    %c0_41 = arith.constant 0 : index
    %99 = vector.load %arg11[%c0_40, %c0_41] : memref<128x128xf32, #tpu.memory_space<vmem>>, vector<128x128xf32>
    %cst_42 = arith.constant dense<0.000000e+00> : vector<4x128xf32>
    %100 = tpu.matmul %98, %99, %cst_42 {dimension_numbers = #tpu.dot_dimension_numbers<[1], [0], [0], [1], [0, 0, 1, 1], [], []>} : vector<4x128xf32>, vector<128x128xf32>, vector<4x128xf32> -> vector<4x128xf32>
    %101 = vector.extract_strided_slice %100 {offsets = [0, 0], sizes = [2, 128], strides = [1, 1]} : vector<4x128xf32> to vector<2x128xf32>
    %102 = vector.shape_cast %101 : vector<2x128xf32> to vector<2x1x128xf32>
    %103 = vector.extract_strided_slice %100 {offsets = [2, 0], sizes = [2, 128], strides = [1, 1]} : vector<4x128xf32> to vector<2x128xf32>
    %104 = vector.shape_cast %103 : vector<2x128xf32> to vector<2x1x128xf32>
    %105 = vector.broadcast %102 : vector<2x1x128xf32> to vector<2x72x128xf32>
    %106 = arith.subf %78, %105 : vector<2x72x128xf32>
    %c0_43 = arith.constant 0 : index
    %c0_44 = arith.constant 0 : index
    %107 = vector.load %arg8[%c0_43, %c0_44] : memref<1x128xf32, #tpu.memory_space<vmem>>, vector<1x128xf32>
    %108 = vector.shape_cast %107 : vector<1x128xf32> to vector<1x1x128xf32>
    %109 = vector.broadcast %108 : vector<1x1x128xf32> to vector<2x1x128xf32>
    %110 = arith.mulf %104, %109 : vector<2x1x128xf32>
    %111 = vector.broadcast %110 : vector<2x1x128xf32> to vector<2x72x128xf32>
    %112 = arith.mulf %106, %111 : vector<2x72x128xf32>
    %c0_45 = arith.constant 0 : index
    %c0_46 = arith.constant 0 : index
    %113 = vector.load %arg9[%c0_45, %c0_46] : memref<1x128xf32, #tpu.memory_space<vmem>>, vector<1x128xf32>
    %114 = vector.shape_cast %113 : vector<1x128xf32> to vector<1x1x128xf32>
    %115 = vector.broadcast %114 : vector<1x1x128xf32> to vector<2x72x128xf32>
    %116 = arith.addf %112, %115 : vector<2x72x128xf32>
    %117 = vector.shape_cast %116 : vector<2x72x128xf32> to vector<144x128xf32>
    %118 = arith.negf %117 : vector<144x128xf32>
    %119 = math.exp %118 : vector<144x128xf32>
    %cst_47 = arith.constant 1.000000e+00 : f32
    %120 = vector.broadcast %cst_47 : f32 to vector<144x128xf32>
    %121 = arith.addf %120, %119 : vector<144x128xf32>
    %122 = arith.divf %120, %121 : vector<144x128xf32>
    %123 = arith.mulf %117, %122 : vector<144x128xf32>
    %124 = arith.mulf %123, %5 : vector<144x128xf32>
    %cst_48 = arith.constant 0.000000e+00 : f32
    %125 = vector.broadcast %cst_48 : f32 to vector<1x128xf32>
    %126 = vector.extract_strided_slice %124 {offsets = [0, 0], sizes = [143, 128], strides = [1, 1]} : vector<144x128xf32> to vector<143x128xf32>
    %127 = tpu.concatenate %125, %126 in 0 : vector<1x128xf32>, vector<143x128xf32> -> vector<144x128xf32>
    %128 = vector.extract_strided_slice %124 {offsets = [1, 0], sizes = [143, 128], strides = [1, 1]} : vector<144x128xf32> to vector<143x128xf32>
    %129 = tpu.concatenate %128, %125 in 0 : vector<143x128xf32>, vector<1x128xf32> -> vector<144x128xf32>
    %130 = arith.truncf %124 : vector<144x128xf32> to vector<144x128xbf16>
    %c1_49 = arith.constant 1 : index
    %c0_50 = arith.constant 0 : index
    %c0_51 = arith.constant 0 : index
    %131 = vector.load %arg12[%c1_49, %c0_50, %c0_51] : memref<3x128x128xbf16, #tpu.memory_space<vmem>>, vector<1x128x128xbf16>
    %132 = vector.shape_cast %131 : vector<1x128x128xbf16> to vector<128x128xbf16>
    %cst_52 = arith.constant dense<0.000000e+00> : vector<144x128xf32>
    %133 = tpu.matmul %130, %132, %cst_52 {dimension_numbers = #tpu.dot_dimension_numbers<[1], [0], [0], [1], [0, 0, 1, 1], [], []>} : vector<144x128xbf16>, vector<128x128xbf16>, vector<144x128xf32> -> vector<144x128xf32>
    %134 = arith.truncf %127 : vector<144x128xf32> to vector<144x128xbf16>
    %c0_53 = arith.constant 0 : index
    %c0_54 = arith.constant 0 : index
    %c0_55 = arith.constant 0 : index
    %135 = vector.load %arg12[%c0_53, %c0_54, %c0_55] : memref<3x128x128xbf16, #tpu.memory_space<vmem>>, vector<1x128x128xbf16>
    %136 = vector.shape_cast %135 : vector<1x128x128xbf16> to vector<128x128xbf16>
    %cst_56 = arith.constant dense<0.000000e+00> : vector<144x128xf32>
    %137 = tpu.matmul %134, %136, %cst_56 {dimension_numbers = #tpu.dot_dimension_numbers<[1], [0], [0], [1], [0, 0, 1, 1], [], []>} : vector<144x128xbf16>, vector<128x128xbf16>, vector<144x128xf32> -> vector<144x128xf32>
    %138 = arith.addf %133, %137 : vector<144x128xf32>
    %139 = arith.truncf %129 : vector<144x128xf32> to vector<144x128xbf16>
    %c2_57 = arith.constant 2 : index
    %c0_58 = arith.constant 0 : index
    %c0_59 = arith.constant 0 : index
    %140 = vector.load %arg12[%c2_57, %c0_58, %c0_59] : memref<3x128x128xbf16, #tpu.memory_space<vmem>>, vector<1x128x128xbf16>
    %141 = vector.shape_cast %140 : vector<1x128x128xbf16> to vector<128x128xbf16>
    %cst_60 = arith.constant dense<0.000000e+00> : vector<144x128xf32>
    %142 = tpu.matmul %139, %141, %cst_60 {dimension_numbers = #tpu.dot_dimension_numbers<[1], [0], [0], [1], [0, 0, 1, 1], [], []>} : vector<144x128xbf16>, vector<128x128xbf16>, vector<144x128xf32> -> vector<144x128xf32>
    %143 = arith.addf %138, %142 : vector<144x128xf32>
    %c0_61 = arith.constant 0 : index
    %c0_62 = arith.constant 0 : index
    %144 = vector.load %arg13[%c0_61, %c0_62] : memref<1x128xf32, #tpu.memory_space<vmem>>, vector<1x128xf32>
    %145 = vector.broadcast %144 : vector<1x128xf32> to vector<144x128xf32>
    %146 = arith.addf %143, %145 : vector<144x128xf32>
    %c0_63 = arith.constant 0 : index
    %c0_64 = arith.constant 0 : index
    %c0_65 = arith.constant 0 : index
    %147 = vector.load %arg1[%c0_63, %c0_64, %c0_65] : memref<2x72x128xf32, #tpu.memory_space<vmem>>, vector<2x72x128xf32>
    %148 = vector.shape_cast %146 : vector<144x128xf32> to vector<2x72x128xf32>
    %149 = arith.addf %147, %148 : vector<2x72x128xf32>
    %c0_66 = arith.constant 0 : index
    %c0_67 = arith.constant 0 : index
    %c0_68 = arith.constant 0 : index
    %150 = vector.load %arg14[%c0_66, %c0_67, %c0_68] : memref<2x72x128xf32, #tpu.memory_space<vmem>>, vector<2x72x128xf32>
    tpu.vector_store %arg14[%c0_66, %c0_67, %c0_68], %149 {strides = array<i32>} : memref<2x72x128xf32, #tpu.memory_space<vmem>>, vector<2x72x128xf32>,
    return
  }
  func.func @transform_0(%arg0: i32) -> (i32, i32, i32) {
    %c0_i32 = arith.constant 0 : i32
    %c0_i32_0 = arith.constant 0 : i32
    %c0_i32_1 = arith.constant 0 : i32
    return %arg0, %c0_i32, %c0_i32_0 : i32, i32, i32
  }
  func.func @transform_1(%arg0: i32) -> (i32, i32) {
    %c0_i32 = arith.constant 0 : i32
    %c0_i32_0 = arith.constant 0 : i32
    %c0_i32_1 = arith.constant 0 : i32
    return %c0_i32, %c0_i32_0 : i32, i32
  }
  func.func @transform_2(%arg0: i32) -> (i32, i32) {
    %c0_i32 = arith.constant 0 : i32
    %c0_i32_0 = arith.constant 0 : i32
    %c0_i32_1 = arith.constant 0 : i32
    return %c0_i32, %c0_i32_0 : i32, i32
  }
  func.func @transform_3(%arg0: i32) -> (i32, i32) {
    %c0_i32 = arith.constant 0 : i32
    %c0_i32_0 = arith.constant 0 : i32
    %c0_i32_1 = arith.constant 0 : i32
    return %c0_i32, %c0_i32_0 : i32, i32
  }
  func.func @transform_4(%arg0: i32) -> (i32, i32) {
    %c0_i32 = arith.constant 0 : i32
    %c0_i32_0 = arith.constant 0 : i32
    %c0_i32_1 = arith.constant 0 : i32
    return %c0_i32, %c0_i32_0 : i32, i32
  }
  func.func @transform_5(%arg0: i32) -> (i32, i32, i32) {
    %c0_i32 = arith.constant 0 : i32
    %c0_i32_0 = arith.constant 0 : i32
    %c0_i32_1 = arith.constant 0 : i32
    %c0_i32_2 = arith.constant 0 : i32
    return %c0_i32, %c0_i32_0, %c0_i32_1 : i32, i32, i32
  }
  func.func @transform_6(%arg0: i32) -> (i32, i32) {
    %c0_i32 = arith.constant 0 : i32
    %c0_i32_0 = arith.constant 0 : i32
    %c0_i32_1 = arith.constant 0 : i32
    return %c0_i32, %c0_i32_0 : i32, i32
  }
  func.func @transform_7(%arg0: i32) -> (i32, i32) {
    %c0_i32 = arith.constant 0 : i32
    %c0_i32_0 = arith.constant 0 : i32
    %c0_i32_1 = arith.constant 0 : i32
    return %c0_i32, %c0_i32_0 : i32, i32
  }
  func.func @transform_8(%arg0: i32) -> (i32, i32) {
    %c0_i32 = arith.constant 0 : i32
    %c0_i32_0 = arith.constant 0 : i32
    %c0_i32_1 = arith.constant 0 : i32
    return %c0_i32, %c0_i32_0 : i32, i32
  }
  func.func @transform_9(%arg0: i32) -> (i32, i32) {
    %c0_i32 = arith.constant 0 : i32
    %c0_i32_0 = arith.constant 0 : i32
    %c0_i32_1 = arith.constant 0 : i32
    return %c0_i32, %c0_i32_0 : i32, i32
  }
  func.func @transform_10(%arg0: i32) -> (i32, i32) {
    %c0_i32 = arith.constant 0 : i32
    %c0_i32_0 = arith.constant 0 : i32
    %c0_i32_1 = arith.constant 0 : i32
    return %c0_i32, %c0_i32_0 : i32, i32
  }
  func.func @transform_11(%arg0: i32) -> (i32, i32, i32) {
    %c0_i32 = arith.constant 0 : i32
    %c0_i32_0 = arith.constant 0 : i32
    %c0_i32_1 = arith.constant 0 : i32
    %c0_i32_2 = arith.constant 0 : i32
    return %c0_i32, %c0_i32_0, %c0_i32_1 : i32, i32, i32
  }
  func.func @transform_12(%arg0: i32) -> (i32, i32) {
    %c0_i32 = arith.constant 0 : i32
    %c0_i32_0 = arith.constant 0 : i32
    %c0_i32_1 = arith.constant 0 : i32
    return %c0_i32, %c0_i32_0 : i32, i32
  }
  func.func @transform_13(%arg0: i32) -> (i32, i32, i32) {
    %c0_i32 = arith.constant 0 : i32
    %c0_i32_0 = arith.constant 0 : i32
    %c0_i32_1 = arith.constant 0 : i32
    return %arg0, %c0_i32, %c0_i32_0 : i32, i32, i32
  }
}

module attributes {stable_mosaic.version = 11 : i64} {
  func.func @_resblock_kernel(%arg0: i32, %arg1: memref<2x72x128xf32, #tpu.memory_space<vmem>>, %arg2: memref<1x128xf32, #tpu.memory_space<vmem>>, %arg3: memref<1x128xf32, #tpu.memory_space<vmem>>, %arg4: memref<128x128xf32, #tpu.memory_space<vmem>>, %arg5: memref<128x128xf32, #tpu.memory_space<vmem>>, %arg6: memref<3x128x128xbf16, #tpu.memory_space<vmem>>, %arg7: memref<1x128xf32, #tpu.memory_space<vmem>>, %arg8: memref<1x128xf32, #tpu.memory_space<vmem>>, %arg9: memref<1x128xf32, #tpu.memory_space<vmem>>, %arg10: memref<128x128xf32, #tpu.memory_space<vmem>>, %arg11: memref<128x128xf32, #tpu.memory_space<vmem>>, %arg12: memref<3x128x128xbf16, #tpu.memory_space<vmem>>, %arg13: memref<1x128xf32, #tpu.memory_space<vmem>>, %arg14: memref<2x72x128xf32, #tpu.memory_space<vmem>>) attributes {dimension_semantics = [#tpu.dimension_semantics<parallel>], iteration_bounds = array<i64: 1>, scalar_prefetch = 0 : i64, scratch_operands = 0 : i64, tpu.core_type = #tpu.core_type<tc>, window_params = [{transform_indices = @transform_0, window_bounds = array<i64: 2, 72, 128>}, {pipeline_mode = #tpu.pipeline_mode<synchronous>, transform_indices = @transform_1, window_bounds = array<i64: 1, 128>}, {pipeline_mode = #tpu.pipeline_mode<synchronous>, transform_indices = @transform_2, window_bounds = array<i64: 1, 128>}, {pipeline_mode = #tpu.pipeline_mode<synchronous>, transform_indices = @transform_3, window_bounds = array<i64: 128, 128>}, {pipeline_mode = #tpu.pipeline_mode<synchronous>, transform_indices = @transform_4, window_bounds = array<i64: 128, 128>}, {pipeline_mode = #tpu.pipeline_mode<synchronous>, transform_indices = @transform_5, window_bounds = array<i64: 3, 128, 128>}, {pipeline_mode = #tpu.pipeline_mode<synchronous>, transform_indices = @transform_6, window_bounds = array<i64: 1, 128>}, {pipeline_mode = #tpu.pipeline_mode<synchronous>, transform_indices = @transform_7, window_bounds = array<i64: 1, 128>}, {pipeline_mode = #tpu.pipeline_mode<synchronous>, transform_indices = @transform_8, window_bounds = array<i64: 1, 128>}, {pipeline_mode = #tpu.pipeline_mode<synchronous>, transform_indices = @transform_9, window_bounds = array<i64: 128, 128>}, {pipeline_mode = #tpu.pipeline_mode<synchronous>, transform_indices = @transform_10, window_bounds = array<i64: 128, 128>}, {pipeline_mode = #tpu.pipeline_mode<synchronous>, transform_indices = @transform_11, window_bounds = array<i64: 3, 128, 128>}, {pipeline_mode = #tpu.pipeline_mode<synchronous>, transform_indices = @transform_12, window_bounds = array<i64: 1, 128>}, {transform_indices = @transform_13, window_bounds = array<i64: 2, 72, 128>}]} {
    %0 = tpu.iota {dimensions = array<i32: 1>} : vector<2x72x128xi32>
    %c64_i32 = arith.constant 64 : i32
    %1 = vector.broadcast %c64_i32 : i32 to vector<2x72x128xi32>
    %2 = arith.cmpi slt, %0, %1 : vector<2x72x128xi32>
    %3 = arith.extui %2 : vector<2x72x128xi1> to vector<2x72x128xi32>
    %4 = arith.sitofp %3 : vector<2x72x128xi32> to vector<2x72x128xf32>
    %5 = vector.shape_cast %4 : vector<2x72x128xf32> to vector<144x128xf32>
    %c0 = arith.constant 0 : index
    %c0_0 = arith.constant 0 : index
    %c0_1 = arith.constant 0 : index
    %6 = vector.load %arg1[%c0, %c0_0, %c0_1] : memref<2x72x128xf32, #tpu.memory_space<vmem>>, vector<2x72x128xf32>
    %7 = vector.shape_cast %6 : vector<2x72x128xf32> to vector<144x128xf32>
    %8 = vector.shape_cast %7 : vector<144x128xf32> to vector<2x72x128xf32>
    %cst = arith.constant dense<0.000000e+00> : vector<2x128xf32>
    %9 = vector.multi_reduction <add>, %8, %cst [1] : vector<2x72x128xf32> to vector<2x128xf32>
    %10 = arith.mulf %8, %8 : vector<2x72x128xf32>
    %cst_2 = arith.constant dense<0.000000e+00> : vector<2x128xf32>
    %11 = vector.multi_reduction <add>, %10, %cst_2 [1] : vector<2x72x128xf32> to vector<2x128xf32>
    %12 = tpu.concatenate %9, %11 in 0 : vector<2x128xf32>, vector<2x128xf32> -> vector<4x128xf32>
    %c0_3 = arith.constant 0 : index
    %c0_4 = arith.constant 0 : index
    %13 = vector.load %arg4[%c0_3, %c0_4] : memref<128x128xf32, #tpu.memory_space<vmem>>, vector<128x128xf32>
    %cst_5 = arith.constant dense<0.000000e+00> : vector<4x128xf32>
    %14 = tpu.matmul %12, %13, %cst_5 {dimension_numbers = #tpu.dot_dimension_numbers<[1], [0], [0], [1], [0, 0, 1, 1], [], []>} : vector<4x128xf32>, vector<128x128xf32>, vector<4x128xf32> -> vector<4x128xf32>
    %15 = vector.extract_strided_slice %14 {offsets = [0, 0], sizes = [2, 128], strides = [1, 1]} : vector<4x128xf32> to vector<2x128xf32>
    %cst_6 = arith.constant 7.812500e-03 : f32
    %16 = vector.broadcast %cst_6 : f32 to vector<2x128xf32>
    %17 = arith.mulf %15, %16 : vector<2x128xf32>
    %18 = vector.extract_strided_slice %14 {offsets = [2, 0], sizes = [2, 128], strides = [1, 1]} : vector<4x128xf32> to vector<2x128xf32>
    %cst_7 = arith.constant 7.812500e-03 : f32
    %19 = vector.broadcast %cst_7 : f32 to vector<2x128xf32>
    %20 = arith.mulf %18, %19 : vector<2x128xf32>
    %21 = arith.mulf %17, %17 : vector<2x128xf32>
    %22 = arith.subf %20, %21 : vector<2x128xf32>
    %cst_8 = arith.constant 0.000000e+00 : f32
    %23 = vector.broadcast %cst_8 : f32 to vector<2x128xf32>
    %24 = arith.maximumf %22, %23 : vector<2x128xf32>
    %cst_9 = arith.constant 9.99999974E-6 : f32
    %25 = vector.broadcast %cst_9 : f32 to vector<2x128xf32>
    %26 = arith.addf %24, %25 : vector<2x128xf32>
    %27 = math.rsqrt %26 : vector<2x128xf32>
    %28 = tpu.concatenate %17, %27 in 0 : vector<2x128xf32>, vector<2x128xf32> -> vector<4x128xf32>
    %c0_10 = arith.constant 0 : index
    %c0_11 = arith.constant 0 : index
    %29 = vector.load %arg5[%c0_10, %c0_11] : memref<128x128xf32, #tpu.memory_space<vmem>>, vector<128x128xf32>
    %cst_12 = arith.constant dense<0.000000e+00> : vector<4x128xf32>
    %30 = tpu.matmul %28, %29, %cst_12 {dimension_numbers = #tpu.dot_dimension_numbers<[1], [0], [0], [1], [0, 0, 1, 1], [], []>} : vector<4x128xf32>, vector<128x128xf32>, vector<4x128xf32> -> vector<4x128xf32>
    %31 = vector.extract_strided_slice %30 {offsets = [0, 0], sizes = [2, 128], strides = [1, 1]} : vector<4x128xf32> to vector<2x128xf32>
    %32 = vector.shape_cast %31 : vector<2x128xf32> to vector<2x1x128xf32>
    %33 = vector.extract_strided_slice %30 {offsets = [2, 0], sizes = [2, 128], strides = [1, 1]} : vector<4x128xf32> to vector<2x128xf32>
    %34 = vector.shape_cast %33 : vector<2x128xf32> to vector<2x1x128xf32>
    %35 = vector.broadcast %32 : vector<2x1x128xf32> to vector<2x72x128xf32>
    %36 = arith.subf %8, %35 : vector<2x72x128xf32>
    %c0_13 = arith.constant 0 : index
    %c0_14 = arith.constant 0 : index
    %37 = vector.load %arg2[%c0_13, %c0_14] : memref<1x128xf32, #tpu.memory_space<vmem>>, vector<1x128xf32>
    %38 = vector.shape_cast %37 : vector<1x128xf32> to vector<1x1x128xf32>
    %39 = vector.broadcast %38 : vector<1x1x128xf32> to vector<2x1x128xf32>
    %40 = arith.mulf %34, %39 : vector<2x1x128xf32>
    %41 = vector.broadcast %40 : vector<2x1x128xf32> to vector<2x72x128xf32>
    %42 = arith.mulf %36, %41 : vector<2x72x128xf32>
    %c0_15 = arith.constant 0 : index
    %c0_16 = arith.constant 0 : index
    %43 = vector.load %arg3[%c0_15, %c0_16] : memref<1x128xf32, #tpu.memory_space<vmem>>, vector<1x128xf32>
    %44 = vector.shape_cast %43 : vector<1x128xf32> to vector<1x1x128xf32>
    %45 = vector.broadcast %44 : vector<1x1x128xf32> to vector<2x72x128xf32>
    %46 = arith.addf %42, %45 : vector<2x72x128xf32>
    %47 = vector.shape_cast %46 : vector<2x72x128xf32> to vector<144x128xf32>
    %48 = arith.negf %47 : vector<144x128xf32>
    %49 = math.exp %48 : vector<144x128xf32>
    %cst_17 = arith.constant 1.000000e+00 : f32
    %50 = vector.broadcast %cst_17 : f32 to vector<144x128xf32>
    %51 = arith.addf %50, %49 : vector<144x128xf32>
    %52 = arith.divf %50, %51 : vector<144x128xf32>
    %53 = arith.mulf %47, %52 : vector<144x128xf32>
    %54 = arith.mulf %53, %5 : vector<144x128xf32>
    %cst_18 = arith.constant 0.000000e+00 : f32
    %55 = vector.broadcast %cst_18 : f32 to vector<1x128xf32>
    %56 = vector.extract_strided_slice %54 {offsets = [0, 0], sizes = [143, 128], strides = [1, 1]} : vector<144x128xf32> to vector<143x128xf32>
    %57 = tpu.concatenate %55, %56 in 0 : vector<1x128xf32>, vector<143x128xf32> -> vector<144x128xf32>
    %58 = vector.extract_strided_slice %54 {offsets = [1, 0], sizes = [143, 128], strides = [1, 1]} : vector<144x128xf32> to vector<143x128xf32>
    %59 = tpu.concatenate %58, %55 in 0 : vector<143x128xf32>, vector<1x128xf32> -> vector<144x128xf32>
    %60 = arith.truncf %54 : vector<144x128xf32> to vector<144x128xbf16>
    %c1 = arith.constant 1 : index
    %c0_19 = arith.constant 0 : index
    %c0_20 = arith.constant 0 : index
    %61 = vector.load %arg6[%c1, %c0_19, %c0_20] : memref<3x128x128xbf16, #tpu.memory_space<vmem>>, vector<1x128x128xbf16>
    %62 = vector.shape_cast %61 : vector<1x128x128xbf16> to vector<128x128xbf16>
    %cst_21 = arith.constant dense<0.000000e+00> : vector<144x128xf32>
    %63 = tpu.matmul %60, %62, %cst_21 {dimension_numbers = #tpu.dot_dimension_numbers<[1], [0], [0], [1], [0, 0, 1, 1], [], []>} : vector<144x128xbf16>, vector<128x128xbf16>, vector<144x128xf32> -> vector<144x128xf32>
    %64 = arith.truncf %57 : vector<144x128xf32> to vector<144x128xbf16>
    %c0_22 = arith.constant 0 : index
    %c0_23 = arith.constant 0 : index
    %c0_24 = arith.constant 0 : index
    %65 = vector.load %arg6[%c0_22, %c0_23, %c0_24] : memref<3x128x128xbf16, #tpu.memory_space<vmem>>, vector<1x128x128xbf16>
    %66 = vector.shape_cast %65 : vector<1x128x128xbf16> to vector<128x128xbf16>
    %cst_25 = arith.constant dense<0.000000e+00> : vector<144x128xf32>
    %67 = tpu.matmul %64, %66, %cst_25 {dimension_numbers = #tpu.dot_dimension_numbers<[1], [0], [0], [1], [0, 0, 1, 1], [], []>} : vector<144x128xbf16>, vector<128x128xbf16>, vector<144x128xf32> -> vector<144x128xf32>
    %68 = arith.addf %63, %67 : vector<144x128xf32>
    %69 = arith.truncf %59 : vector<144x128xf32> to vector<144x128xbf16>
    %c2 = arith.constant 2 : index
    %c0_26 = arith.constant 0 : index
    %c0_27 = arith.constant 0 : index
    %70 = vector.load %arg6[%c2, %c0_26, %c0_27] : memref<3x128x128xbf16, #tpu.memory_space<vmem>>, vector<1x128x128xbf16>
    %71 = vector.shape_cast %70 : vector<1x128x128xbf16> to vector<128x128xbf16>
    %cst_28 = arith.constant dense<0.000000e+00> : vector<144x128xf32>
    %72 = tpu.matmul %69, %71, %cst_28 {dimension_numbers = #tpu.dot_dimension_numbers<[1], [0], [0], [1], [0, 0, 1, 1], [], []>} : vector<144x128xbf16>, vector<128x128xbf16>, vector<144x128xf32> -> vector<144x128xf32>
    %73 = arith.addf %68, %72 : vector<144x128xf32>
    %c0_29 = arith.constant 0 : index
    %c0_30 = arith.constant 0 : index
    %74 = vector.load %arg7[%c0_29, %c0_30] : memref<1x128xf32, #tpu.memory_space<vmem>>, vector<1x128xf32>
    %75 = vector.broadcast %74 : vector<1x128xf32> to vector<144x128xf32>
    %76 = arith.addf %73, %75 : vector<144x128xf32>
    %77 = arith.mulf %76, %5 : vector<144x128xf32>
    %78 = vector.shape_cast %77 : vector<144x128xf32> to vector<2x72x128xf32>
    %cst_31 = arith.constant dense<0.000000e+00> : vector<2x128xf32>
    %79 = vector.multi_reduction <add>, %78, %cst_31 [1] : vector<2x72x128xf32> to vector<2x128xf32>
    %80 = arith.mulf %78, %78 : vector<2x72x128xf32>
    %cst_32 = arith.constant dense<0.000000e+00> : vector<2x128xf32>
    %81 = vector.multi_reduction <add>, %80, %cst_32 [1] : vector<2x72x128xf32> to vector<2x128xf32>
    %82 = tpu.concatenate %79, %81 in 0 : vector<2x128xf32>, vector<2x128xf32> -> vector<4x128xf32>
    %c0_33 = arith.constant 0 : index
    %c0_34 = arith.constant 0 : index
    %83 = vector.load %arg10[%c0_33, %c0_34] : memref<128x128xf32, #tpu.memory_space<vmem>>, vector<128x128xf32>
    %cst_35 = arith.constant dense<0.000000e+00> : vector<4x128xf32>
    %84 = tpu.matmul %82, %83, %cst_35 {dimension_numbers = #tpu.dot_dimension_numbers<[1], [0], [0], [1], [0, 0, 1, 1], [], []>} : vector<4x128xf32>, vector<128x128xf32>, vector<4x128xf32> -> vector<4x128xf32>
    %85 = vector.extract_strided_slice %84 {offsets = [0, 0], sizes = [2, 128], strides = [1, 1]} : vector<4x128xf32> to vector<2x128xf32>
    %cst_36 = arith.constant 7.812500e-03 : f32
    %86 = vector.broadcast %cst_36 : f32 to vector<2x128xf32>
    %87 = arith.mulf %85, %86 : vector<2x128xf32>
    %88 = vector.extract_strided_slice %84 {offsets = [2, 0], sizes = [2, 128], strides = [1, 1]} : vector<4x128xf32> to vector<2x128xf32>
    %cst_37 = arith.constant 7.812500e-03 : f32
    %89 = vector.broadcast %cst_37 : f32 to vector<2x128xf32>
    %90 = arith.mulf %88, %89 : vector<2x128xf32>
    %91 = arith.mulf %87, %87 : vector<2x128xf32>
    %92 = arith.subf %90, %91 : vector<2x128xf32>
    %cst_38 = arith.constant 0.000000e+00 : f32
    %93 = vector.broadcast %cst_38 : f32 to vector<2x128xf32>
    %94 = arith.maximumf %92, %93 : vector<2x128xf32>
    %cst_39 = arith.constant 9.99999974E-6 : f32
    %95 = vector.broadcast %cst_39 : f32 to vector<2x128xf32>
    %96 = arith.addf %94, %95 : vector<2x128xf32>
    %97 = math.rsqrt %96 : vector<2x128xf32>
    %98 = tpu.concatenate %87, %97 in 0 : vector<2x128xf32>, vector<2x128xf32> -> vector<4x128xf32>
    %c0_40 = arith.constant 0 : index
    %c0_41 = arith.constant 0 : index
    %99 = vector.load %arg11[%c0_40, %c0_41] : memref<128x128xf32, #tpu.memory_space<vmem>>, vector<128x128xf32>
    %cst_42 = arith.constant dense<0.000000e+00> : vector<4x128xf32>
    %100 = tpu.matmul %98, %99, %cst_42 {dimension_numbers = #tpu.dot_dimension_numbers<[1], [0], [0], [1], [0, 0, 1, 1], [], []>} : vector<4x128xf32>, vector<128x128xf32>, vector<4x128xf32> -> vector<4x128xf32>
    %101 = vector.extract_strided_slice %100 {offsets = [0, 0], sizes = [2, 128], strides = [1, 1]} : vector<4x128xf32> to vector<2x128xf32>
    %102 = vector.shape_cast %101 : vector<2x128xf32> to vector<2x1x128xf32>
    %103 = vector.extract_strided_slice %100 {offsets = [2, 0], sizes = [2, 128], strides = [1, 1]} : vector<4x128xf32> to vector<2x128xf32>
    %104 = vector.shape_cast %103 : vector<2x128xf32> to vector<2x1x128xf32>
    %105 = vector.broadcast %102 : vector<2x1x128xf32> to vector<2x72x128xf32>
    %106 = arith.subf %78, %105 : vector<2x72x128xf32>
    %c0_43 = arith.constant 0 : index
    %c0_44 = arith.constant 0 : index
    %107 = vector.load %arg8[%c0_43, %c0_44] : memref<1x128xf32, #tpu.memory_space<vmem>>, vector<1x128xf32>
    %108 = vector.shape_cast %107 : vector<1x128xf32> to vector<1x1x128xf32>
    %109 = vector.broadcast %108 : vector<1x1x128xf32> to vector<2x1x128xf32>
    %110 = arith.mulf %104, %109 : vector<2x1x128xf32>
    %111 = vector.broadcast %110 : vector<2x1x128xf32> to vector<2x72x128xf32>
    %112 = arith.mulf %106, %111 : vector<2x72x128xf32>
    %c0_45 = arith.constant 0 : index
    %c0_46 = arith.constant 0 : index
    %113 = vector.load %arg9[%c0_45, %c0_46] : memref<1x128xf32, #tpu.memory_space<vmem>>, vector<1x128xf32>
    %114 = vector.shape_cast %113 : vector<1x128xf32> to vector<1x1x128xf32>
    %115 = vector.broadcast %114 : vector<1x1x128xf32> to vector<2x72x128xf32>
    %116 = arith.addf %112, %115 : vector<2x72x128xf32>
    %117 = vector.shape_cast %116 : vector<2x72x128xf32> to vector<144x128xf32>
    %118 = arith.negf %117 : vector<144x128xf32>
    %119 = math.exp %118 : vector<144x128xf32>
    %cst_47 = arith.constant 1.000000e+00 : f32
    %120 = vector.broadcast %cst_47 : f32 to vector<144x128xf32>
    %121 = arith.addf %120, %119 : vector<144x128xf32>
    %122 = arith.divf %120, %121 : vector<144x128xf32>
    %123 = arith.mulf %117, %122 : vector<144x128xf32>
    %124 = arith.mulf %123, %5 : vector<144x128xf32>
    %cst_48 = arith.constant 0.000000e+00 : f32
    %125 = vector.broadcast %cst_48 : f32 to vector<1x128xf32>
    %126 = vector.extract_strided_slice %124 {offsets = [0, 0], sizes = [143, 128], strides = [1, 1]} : vector<144x128xf32> to vector<143x128xf32>
    %127 = tpu.concatenate %125, %126 in 0 : vector<1x128xf32>, vector<143x128xf32> -> vector<144x128xf32>
    %128 = vector.extract_strided_slice %124 {offsets = [1, 0], sizes = [143, 128], strides = [1, 1]} : vector<144x128xf32> to vector<143x128xf32>
    %129 = tpu.concatenate %128, %125 in 0 : vector<143x128xf32>, vector<1x128xf32> -> vector<144x128xf32>
    %130 = arith.truncf %124 : vector<144x128xf32> to vector<144x128xbf16>
    %c1_49 = arith.constant 1 : index
    %c0_50 = arith.constant 0 : index
    %c0_51 = arith.constant 0 : index
    %131 = vector.load %arg12[%c1_49, %c0_50, %c0_51] : memref<3x128x128xbf16, #tpu.memory_space<vmem>>, vector<1x128x128xbf16>
    %132 = vector.shape_cast %131 : vector<1x128x128xbf16> to vector<128x128xbf16>
    %cst_52 = arith.constant dense<0.000000e+00> : vector<144x128xf32>
    %133 = tpu.matmul %130, %132, %cst_52 {dimension_numbers = #tpu.dot_dimension_numbers<[1], [0], [0], [1], [0, 0, 1, 1], [], []>} : vector<144x128xbf16>, vector<128x128xbf16>, vector<144x128xf32> -> vector<144x128xf32>
    %134 = arith.truncf %127 : vector<144x128xf32> to vector<144x128xbf16>
    %c0_53 = arith.constant 0 : index
    %c0_54 = arith.constant 0 : index
    %c0_55 = arith.constant 0 : index
    %135 = vector.load %arg12[%c0_53, %c0_54, %c0_55] : memref<3x128x128xbf16, #tpu.memory_space<vmem>>, vector<1x128x128xbf16>
    %136 = vector.shape_cast %135 : vector<1x128x128xbf16> to vector<128x128xbf16>
    %cst_56 = arith.constant dense<0.000000e+00> : vector<144x128xf32>
    %137 = tpu.matmul %134, %136, %cst_56 {dimension_numbers = #tpu.dot_dimension_numbers<[1], [0], [0], [1], [0, 0, 1, 1], [], []>} : vector<144x128xbf16>, vector<128x128xbf16>, vector<144x128xf32> -> vector<144x128xf32>
    %138 = arith.addf %133, %137 : vector<144x128xf32>
    %139 = arith.truncf %129 : vector<144x128xf32> to vector<144x128xbf16>
    %c2_57 = arith.constant 2 : index
    %c0_58 = arith.constant 0 : index
    %c0_59 = arith.constant 0 : index
    %140 = vector.load %arg12[%c2_57, %c0_58, %c0_59] : memref<3x128x128xbf16, #tpu.memory_space<vmem>>, vector<1x128x128xbf16>
    %141 = vector.shape_cast %140 : vector<1x128x128xbf16> to vector<128x128xbf16>
    %cst_60 = arith.constant dense<0.000000e+00> : vector<144x128xf32>
    %142 = tpu.matmul %139, %141, %cst_60 {dimension_numbers = #tpu.dot_dimension_numbers<[1], [0], [0], [1], [0, 0, 1, 1], [], []>} : vector<144x128xbf16>, vector<128x128xbf16>, vector<144x128xf32> -> vector<144x128xf32>
    %143 = arith.addf %138, %142 : vector<144x128xf32>
    %c0_61 = arith.constant 0 : index
    %c0_62 = arith.constant 0 : index
    %144 = vector.load %arg13[%c0_61, %c0_62] : memref<1x128xf32, #tpu.memory_space<vmem>>, vector<1x128xf32>
    %145 = vector.broadcast %144 : vector<1x128xf32> to vector<144x128xf32>
    %146 = arith.addf %143, %145 : vector<144x128xf32>
    %c0_63 = arith.constant 0 : index
    %c0_64 = arith.constant 0 : index
    %c0_65 = arith.constant 0 : index
    %147 = vector.load %arg1[%c0_63, %c0_64, %c0_65] : memref<2x72x128xf32, #tpu.memory_space<vmem>>, vector<2x72x128xf32>
    %148 = vector.shape_cast %146 : vector<144x128xf32> to vector<2x72x128xf32>
    %149 = arith.addf %147, %148 : vector<2x72x128xf32>
    %c0_66 = arith.constant 0 : index
    %c0_67 = arith.constant 0 : index
    %c0_68 = arith.constant 0 : index
    %150 = vector.load %arg14[%c0_66, %c0_67, %c0_68] : memref<2x72x128xf32, #tpu.memory_space<vmem>>, vector<2x72x128xf32>
    tpu.vector_store %arg14[%c0_66, %c0_67, %c0_68], %149 {strides = array<i32>} : memref<2x72x128xf32, #tpu.memory_space<vmem>>, vector<2x72x128xf32>,
    return
  }
  func.func @transform_0(%arg0: i32) -> (i32, i32, i32) {
    %c0_i32 = arith.constant 0 : i32
    %c0_i32_0 = arith.constant 0 : i32
    %c0_i32_1 = arith.constant 0 : i32
    return %arg0, %c0_i32, %c0_i32_0 : i32, i32, i32
  }
  func.func @transform_1(%arg0: i32) -> (i32, i32) {
    %c0_i32 = arith.constant 0 : i32
    %c0_i32_0 = arith.constant 0 : i32
    %c0_i32_1 = arith.constant 0 : i32
    return %c0_i32, %c0_i32_0 : i32, i32
  }
  func.func @transform_2(%arg0: i32) -> (i32, i32) {
    %c0_i32 = arith.constant 0 : i32
    %c0_i32_0 = arith.constant 0 : i32
    %c0_i32_1 = arith.constant 0 : i32
    return %c0_i32, %c0_i32_0 : i32, i32
  }
  func.func @transform_3(%arg0: i32) -> (i32, i32) {
    %c0_i32 = arith.constant 0 : i32
    %c0_i32_0 = arith.constant 0 : i32
    %c0_i32_1 = arith.constant 0 : i32
    return %c0_i32, %c0_i32_0 : i32, i32
  }
  func.func @transform_4(%arg0: i32) -> (i32, i32) {
    %c0_i32 = arith.constant 0 : i32
    %c0_i32_0 = arith.constant 0 : i32
    %c0_i32_1 = arith.constant 0 : i32
    return %c0_i32, %c0_i32_0 : i32, i32
  }
  func.func @transform_5(%arg0: i32) -> (i32, i32, i32) {
    %c0_i32 = arith.constant 0 : i32
    %c0_i32_0 = arith.constant 0 : i32
    %c0_i32_1 = arith.constant 0 : i32
    %c0_i32_2 = arith.constant 0 : i32
    return %c0_i32, %c0_i32_0, %c0_i32_1 : i32, i32, i32
  }
  func.func @transform_6(%arg0: i32) -> (i32, i32) {
    %c0_i32 = arith.constant 0 : i32
    %c0_i32_0 = arith.constant 0 : i32
    %c0_i32_1 = arith.constant 0 : i32
    return %c0_i32, %c0_i32_0 : i32, i32
  }
  func.func @transform_7(%arg0: i32) -> (i32, i32) {
    %c0_i32 = arith.constant 0 : i32
    %c0_i32_0 = arith.constant 0 : i32
    %c0_i32_1 = arith.constant 0 : i32
    return %c0_i32, %c0_i32_0 : i32, i32
  }
  func.func @transform_8(%arg0: i32) -> (i32, i32) {
    %c0_i32 = arith.constant 0 : i32
    %c0_i32_0 = arith.constant 0 : i32
    %c0_i32_1 = arith.constant 0 : i32
    return %c0_i32, %c0_i32_0 : i32, i32
  }
  func.func @transform_9(%arg0: i32) -> (i32, i32) {
    %c0_i32 = arith.constant 0 : i32
    %c0_i32_0 = arith.constant 0 : i32
    %c0_i32_1 = arith.constant 0 : i32
    return %c0_i32, %c0_i32_0 : i32, i32
  }
  func.func @transform_10(%arg0: i32) -> (i32, i32) {
    %c0_i32 = arith.constant 0 : i32
    %c0_i32_0 = arith.constant 0 : i32
    %c0_i32_1 = arith.constant 0 : i32
    return %c0_i32, %c0_i32_0 : i32, i32
  }
  func.func @transform_11(%arg0: i32) -> (i32, i32, i32) {
    %c0_i32 = arith.constant 0 : i32
    %c0_i32_0 = arith.constant 0 : i32
    %c0_i32_1 = arith.constant 0 : i32
    %c0_i32_2 = arith.constant 0 : i32
    return %c0_i32, %c0_i32_0, %c0_i32_1 : i32, i32, i32
  }
  func.func @transform_12(%arg0: i32) -> (i32, i32) {
    %c0_i32 = arith.constant 0 : i32
    %c0_i32_0 = arith.constant 0 : i32
    %c0_i32_1 = arith.constant 0 : i32
    return %c0_i32, %c0_i32_0 : i32, i32
  }
  func.func @transform_13(%arg0: i32) -> (i32, i32, i32) {
    %c0_i32 = arith.constant 0 : i32
    %c0_i32_0 = arith.constant 0 : i32
    %c0_i32_1 = arith.constant 0 : i32
    return %arg0, %c0_i32, %c0_i32_0 : i32, i32, i32
  }
}

</mosaic_0001>

<llo_original>
// kernel: tpu_custom_call.1
$region0: #{tpu_custom_call.1}
  #allocation0 [shape = 'u32[]', space=smem, size = 0x4, offset = 0x4, fixed_abs, tag = 'smem constant byte address 0x4 - core index']
  #allocation1 [shape = 'u32[72,128]{1,0:T(1,128)}', space=vmem, size = 0x9000, scoped, tag = 'internal scratch']
  %s0 = inlined_call_operand.hbm [shape: f32[2,72,128], index: 0, kind: input, shape index: {}]
  %s1 = inlined_call_operand.hbm [shape: f32[1,128], index: 1, kind: input, shape index: {}]
  %s2 = inlined_call_operand.vmem [shape: f32[1,128], index: 2, kind: input, shape index: {}]
  %s3 = inlined_call_operand.hbm [shape: f32[128,128], index: 3, kind: input, shape index: {}]
  %s4 = inlined_call_operand.hbm [shape: f32[128,128], index: 4, kind: input, shape index: {}]
  %s5 = inlined_call_operand.hbm [shape: bf16[3,128,128], index: 5, kind: input, shape index: {}]
  %s6 = inlined_call_operand.vmem [shape: f32[1,128], index: 6, kind: input, shape index: {}]
  %s7 = inlined_call_operand.vmem [shape: f32[1,128], index: 7, kind: input, shape index: {}]
  %s8 = inlined_call_operand.vmem [shape: f32[1,128], index: 8, kind: input, shape index: {}]
  %s9 = inlined_call_operand.hbm [shape: f32[128,128], index: 9, kind: input, shape index: {}]
  %s10 = inlined_call_operand.hbm [shape: f32[128,128], index: 10, kind: input, shape index: {}]
  %s11 = inlined_call_operand.hbm [shape: bf16[3,128,128], index: 11, kind: input, shape index: {}]
  %s12 = inlined_call_operand.vmem [shape: f32[1,128], index: 12, kind: input, shape index: {}]
  %s13 = inlined_call_operand.hbm [shape: f32[2,72,128], index: 13, kind: output, shape index: {}]
  %s14 = sld [smem:[#allocation0]]
  $region94: #{tpu_custom_call.1} parent=0
    _
  %s16 = ssub.s32 1, %s14
  %s17 = scalar_select 0, %s16, %s14
  $region1: #{tpu_custom_call.1} parent=0
    #allocation2 [shape = 'u8[73728]{0}', space=vmem, size = 0x12000, scoped, tag = 'input window, operand 0, single buffered']
    #allocation3 [shape = 's32[1]{0}', space=sflag, size = 0x4, scoped, tag = 'scoped memory for tpu_custom_call.1']
    #allocation4 [shape = 's32[1]{0}', space=sflag, size = 0x4, scoped, tag = 'scoped memory for tpu_custom_call.1']
    #allocation5 [shape = 'u8[512]{0}', space=vmem, size = 0x400, scoped, tag = 'input window, operand 1, single buffered']
    #allocation6 [shape = 's32[1]{0}', space=sflag, size = 0x4, scoped, tag = 'scoped memory for tpu_custom_call.1']
    #allocation7 [shape = 'u8[65536]{0}', space=vmem, size = 0x10000, scoped, tag = 'input window, operand 3, single buffered']
    #allocation8 [shape = 'u8[65536]{0}', space=vmem, size = 0x10000, scoped, tag = 'input window, operand 4, single buffered']
    #allocation9 [shape = 's32[1]{0}', space=sflag, size = 0x4, scoped, tag = 'scoped memory for tpu_custom_call.1']
    #allocation10 [shape = 'u8[98304]{0}', space=vmem, size = 0x18000, scoped, tag = 'input window, operand 5, single buffered']
    #allocation11 [shape = 'u8[65536]{0}', space=vmem, size = 0x10000, scoped, tag = 'input window, operand 9, single buffered']
    #allocation12 [shape = 's32[1]{0}', space=sflag, size = 0x4, scoped, tag = 'scoped memory for tpu_custom_call.1']
    #allocation13 [shape = 'u8[65536]{0}', space=vmem, size = 0x10000, scoped, tag = 'input window, operand 10, single buffered']
    #allocation14 [shape = 'u8[98304]{0}', space=vmem, size = 0x18000, scoped, tag = 'input window, operand 11, single buffered']
    #allocation15 [shape = 's32[1]{0}', space=sflag, size = 0x4, scoped, tag = 'scoped memory for tpu_custom_call.1']
    #allocation16 [shape = 'u8[73728]{0}', space=vmem, size = 0x12000, scoped, tag = 'output window, operand 0, single buffered']
    %18 = vsyncpa [#allocation3], 0
    %19 = vsyncpa [#allocation6], 0
    %20 = vsyncpa [#allocation9], 0
    %21 = vsyncpa [#allocation12], 0
    %22 = vsyncpa [#allocation15], 0
    %23 = vsyncpa [#allocation4], 0
    // Predicated region
    $region2: #{tpu_custom_call.1} parent=1 // pred_check
      _
    $region3: #{tpu_custom_call.1} parent=1 // pred_check_branch
      %25 = sbr.rel (0) target = $region5
    $region4: #{tpu_custom_call.1} parent=1 // pred_region
      %27 = vsyncadd [#allocation3], 0
      %s28 = sshll.u32 %s0, 4
      %s29 = int_to_ptr.hbm [resolvable:$true] %s28
      %s30 = sshll.u32 [#allocation2], 4
      %s31 = int_to_ptr.vmem [resolvable:$true] %s30
      %36 = dma.hbm_to_vmem [thread:$0]  %s29, 2304, %s31, [#allocation3], 128, 128, 8
    $region5: #{tpu_custom_call.1} parent=1 // pred_fallthru
      _
    // Predicated region
    $region6: #{tpu_custom_call.1} parent=1 // pred_check
      _
    $region7: #{tpu_custom_call.1} parent=1 // pred_check_branch
      %38 = sbr.rel (0) target = $region9
    $region8: #{tpu_custom_call.1} parent=1 // pred_region
      %40 = vsyncadd [#allocation6], 0
      %s42 = sshll.u32 %s1, 4
      %s43 = int_to_ptr.hbm [resolvable:$true] %s42
      %s44 = sshll.u32 [#allocation5], 4
      %s45 = int_to_ptr.vmem [resolvable:$true] %s44
      %47 = dma.hbm_to_vmem [thread:$0]  %s43, 16, %s45, [#allocation6]
    $region9: #{tpu_custom_call.1} parent=1 // pred_fallthru
      _
    // Predicated region
    $region10: #{tpu_custom_call.1} parent=1 // pred_check
      _
    $region11: #{tpu_custom_call.1} parent=1 // pred_check_branch
      %49 = sbr.rel (0) target = $region13
    $region12: #{tpu_custom_call.1} parent=1 // pred_region
      _
    $region13: #{tpu_custom_call.1} parent=1 // pred_fallthru
      _
    // Predicated region
    $region14: #{tpu_custom_call.1} parent=1 // pred_check
      _
    $region15: #{tpu_custom_call.1} parent=1 // pred_check_branch
      %51 = sbr.rel (0) target = $region17
    $region16: #{tpu_custom_call.1} parent=1 // pred_region
      %53 = vsyncadd [#allocation6], 0
      %s54 = sshll.u32 %s3, 4
      %s55 = int_to_ptr.hbm [resolvable:$true] %s54
      %s56 = sshll.u32 [#allocation7], 4
      %s57 = int_to_ptr.vmem [resolvable:$true] %s56
      %62 = dma.hbm_to_vmem [thread:$0]  %s55, 2048, %s57, [#allocation6], 128, 128, 8
    $region17: #{tpu_custom_call.1} parent=1 // pred_fallthru
      _
    // Predicated region
    $region18: #{tpu_custom_call.1} parent=1 // pred_check
      _
    $region19: #{tpu_custom_call.1} parent=1 // pred_check_branch
      %64 = sbr.rel (0) target = $region21
    $region20: #{tpu_custom_call.1} parent=1 // pred_region
      %66 = vsyncadd [#allocation9], 0
      %s67 = sshll.u32 %s4, 4
      %s68 = int_to_ptr.hbm [resolvable:$true] %s67
      %s69 = sshll.u32 [#allocation8], 4
      %s70 = int_to_ptr.vmem [resolvable:$true] %s69
      %75 = dma.hbm_to_vmem [thread:$0]  %s68, 2048, %s70, [#allocation9], 128, 128, 8
    $region21: #{tpu_custom_call.1} parent=1 // pred_fallthru
      _
    // Predicated region
    $region22: #{tpu_custom_call.1} parent=1 // pred_check
      _
    $region23: #{tpu_custom_call.1} parent=1 // pred_check_branch
      %77 = sbr.rel (0) target = $region25
    $region24: #{tpu_custom_call.1} parent=1 // pred_region
      %79 = vsyncadd [#allocation9], 0
      %s80 = sshll.u32 %s5, 4
      %s81 = int_to_ptr.hbm [resolvable:$true] %s80
      %s82 = sshll.u32 [#allocation10], 4
      %s83 = int_to_ptr.vmem [resolvable:$true] %s82
      %88 = dma.hbm_to_vmem [thread:$0]  %s81, 3072, %s83, [#allocation9], 64, 64, 4
    $region25: #{tpu_custom_call.1} parent=1 // pred_fallthru
      _
    // Predicated region
    $region26: #{tpu_custom_call.1} parent=1 // pred_check
      _
    $region27: #{tpu_custom_call.1} parent=1 // pred_check_branch
      %90 = sbr.rel (0) target = $region29
    $region28: #{tpu_custom_call.1} parent=1 // pred_region
      _
    $region29: #{tpu_custom_call.1} parent=1 // pred_fallthru
      _
    // Predicated region
    $region30: #{tpu_custom_call.1} parent=1 // pred_check
      _
    $region31: #{tpu_custom_call.1} parent=1 // pred_check_branch
      %92 = sbr.rel (0) target = $region33
    $region32: #{tpu_custom_call.1} parent=1 // pred_region
      _
    $region33: #{tpu_custom_call.1} parent=1 // pred_fallthru
      _
    // Predicated region
    $region34: #{tpu_custom_call.1} parent=1 // pred_check
      _
    $region35: #{tpu_custom_call.1} parent=1 // pred_check_branch
      %94 = sbr.rel (0) target = $region37
    $region36: #{tpu_custom_call.1} parent=1 // pred_region
      _
    $region37: #{tpu_custom_call.1} parent=1 // pred_fallthru
      _
    // Predicated region
    $region38: #{tpu_custom_call.1} parent=1 // pred_check
      _
    $region39: #{tpu_custom_call.1} parent=1 // pred_check_branch
      %96 = sbr.rel (0) target = $region41
    $region40: #{tpu_custom_call.1} parent=1 // pred_region
      %98 = vsyncadd [#allocation12], 0
      %s99 = sshll.u32 %s9, 4
      %s100 = int_to_ptr.hbm [resolvable:$true] %s99
      %s101 = sshll.u32 [#allocation11], 4
      %s102 = int_to_ptr.vmem [resolvable:$true] %s101
      %107 = dma.hbm_to_vmem [thread:$0]  %s100, 2048, %s102, [#allocation12], 128, 128, 8
    $region41: #{tpu_custom_call.1} parent=1 // pred_fallthru
      _
    // Predicated region
    $region42: #{tpu_custom_call.1} parent=1 // pred_check
      _
    $region43: #{tpu_custom_call.1} parent=1 // pred_check_branch
      %109 = sbr.rel (0) target = $region45
    $region44: #{tpu_custom_call.1} parent=1 // pred_region
      %111 = vsyncadd [#allocation12], 0
      %s112 = sshll.u32 %s10, 4
      %s113 = int_to_ptr.hbm [resolvable:$true] %s112
      %s114 = sshll.u32 [#allocation13], 4
      %s115 = int_to_ptr.vmem [resolvable:$true] %s114
      %120 = dma.hbm_to_vmem [thread:$0]  %s113, 2048, %s115, [#allocation12], 128, 128, 8
    $region45: #{tpu_custom_call.1} parent=1 // pred_fallthru
      _
    // Predicated region
    $region46: #{tpu_custom_call.1} parent=1 // pred_check
      _
    $region47: #{tpu_custom_call.1} parent=1 // pred_check_branch
      %122 = sbr.rel (0) target = $region49
    $region48: #{tpu_custom_call.1} parent=1 // pred_region
      %124 = vsyncadd [#allocation15], 0
      %s125 = sshll.u32 %s11, 4
      %s126 = int_to_ptr.hbm [resolvable:$true] %s125
      %s127 = sshll.u32 [#allocation14], 4
      %s128 = int_to_ptr.vmem [resolvable:$true] %s127
      %133 = dma.hbm_to_vmem [thread:$0]  %s126, 3072, %s128, [#allocation15], 64, 64, 4
    $region49: #{tpu_custom_call.1} parent=1 // pred_fallthru
      _
    // Predicated region
    $region50: #{tpu_custom_call.1} parent=1 // pred_check
      _
    $region51: #{tpu_custom_call.1} parent=1 // pred_check_branch
      %135 = sbr.rel (0) target = $region53
    $region52: #{tpu_custom_call.1} parent=1 // pred_region
      _
    $region53: #{tpu_custom_call.1} parent=1 // pred_fallthru
      _
    // Predicated region
    $region54: #{tpu_custom_call.1} parent=1 // pred_check
      _
    $region55: #{tpu_custom_call.1} parent=1 // pred_check_branch
      %137 = sbr.rel (0) target = $region57
    $region56: #{tpu_custom_call.1} parent=1 // pred_region
      %139 = dma.done [#allocation3], 2304
    $region57: #{tpu_custom_call.1} parent=1 // pred_fallthru
      _
    // Predicated region
    $region58: #{tpu_custom_call.1} parent=1 // pred_check
      _
    $region59: #{tpu_custom_call.1} parent=1 // pred_check_branch
      %141 = sbr.rel (0) target = $region61
    $region60: #{tpu_custom_call.1} parent=1 // pred_region
      %143 = dma.done [#allocation6], 16
    $region61: #{tpu_custom_call.1} parent=1 // pred_fallthru
      _
    // Predicated region
    $region62: #{tpu_custom_call.1} parent=1 // pred_check
      _
    $region63: #{tpu_custom_call.1} parent=1 // pred_check_branch
      %145 = sbr.rel (0) target = $region65
    $region64: #{tpu_custom_call.1} parent=1 // pred_region
      %147 = dma.done [#allocation6], 2048
    $region65: #{tpu_custom_call.1} parent=1 // pred_fallthru
      _
    // Predicated region
    $region66: #{tpu_custom_call.1} parent=1 // pred_check
      _
    $region67: #{tpu_custom_call.1} parent=1 // pred_check_branch
      %149 = sbr.rel (0) target = $region69
    $region68: #{tpu_custom_call.1} parent=1 // pred_region
      %151 = dma.done [#allocation9], 2048
    $region69: #{tpu_custom_call.1} parent=1 // pred_fallthru
      _
    // Predicated region
    $region70: #{tpu_custom_call.1} parent=1 // pred_check
      _
    $region71: #{tpu_custom_call.1} parent=1 // pred_check_branch
      %153 = sbr.rel (0) target = $region73
    $region72: #{tpu_custom_call.1} parent=1 // pred_region
      %155 = dma.done [#allocation9], 3072
    $region73: #{tpu_custom_call.1} parent=1 // pred_fallthru
      _
    // Predicated region
    $region74: #{tpu_custom_call.1} parent=1 // pred_check
      _
    $region75: #{tpu_custom_call.1} parent=1 // pred_check_branch
      %157 = sbr.rel (0) target = $region77
    $region76: #{tpu_custom_call.1} parent=1 // pred_region
      %159 = dma.done [#allocation12], 2048
    $region77: #{tpu_custom_call.1} parent=1 // pred_fallthru
      _
    // Predicated region
    $region78: #{tpu_custom_call.1} parent=1 // pred_check
      _
    $region79: #{tpu_custom_call.1} parent=1 // pred_check_branch
      %161 = sbr.rel (0) target = $region81
    $region80: #{tpu_custom_call.1} parent=1 // pred_region
      %163 = dma.done [#allocation12], 2048
    $region81: #{tpu_custom_call.1} parent=1 // pred_fallthru
      _
    // Predicated region
    $region82: #{tpu_custom_call.1} parent=1 // pred_check
      _
    $region83: #{tpu_custom_call.1} parent=1 // pred_check_branch
      %165 = sbr.rel (0) target = $region85
    $region84: #{tpu_custom_call.1} parent=1 // pred_region
      %167 = dma.done [#allocation15], 3072
    $region85: #{tpu_custom_call.1} parent=1 // pred_fallthru
      _
    %v168 = vlaneseq
    %v169 = vshrl.u32 %v168, 7
    %v170 = vadd.s32 %v169, 8
    %v171 = vadd.s32 %v169, 16
    %v172 = vadd.s32 %v169, 24
    %v173 = vadd.s32 %v169, 32
    %v174 = vadd.s32 %v169, 40
    %v175 = vadd.s32 %v169, 48
    %v176 = vadd.s32 %v169, 56
    %v177 = vadd.s32 %v169, 64
    %vm178 = vcmp.lt.s32.totalorder %v169, 64
    %vm179 = vcmp.lt.s32.totalorder %v170, 64
    %vm180 = vcmp.lt.s32.totalorder %v171, 64
    %vm181 = vcmp.lt.s32.totalorder %v172, 64
    %vm182 = vcmp.lt.s32.totalorder %v173, 64
    %vm183 = vcmp.lt.s32.totalorder %v174, 64
    %vm184 = vcmp.lt.s32.totalorder %v175, 64
    %vm185 = vcmp.lt.s32.totalorder %v176, 64
    %vm186 = vcmp.lt.s32.totalorder %v177, 64
    %v187 = vsel %vm178, 1, 0
    %v188 = vsel %vm179, 1, 0
    %v189 = vsel %vm180, 1, 0
    %v190 = vsel %vm181, 1, 0
    %v191 = vsel %vm182, 1, 0
    %v192 = vsel %vm183, 1, 0
    %v193 = vsel %vm184, 1, 0
    %v194 = vsel %vm185, 1, 0
    %v195 = vsel %vm186, 1, 0
    %v196 = vcvt.s32.f32 %v187
    %v197 = vcvt.s32.f32 %v188
    %v198 = vcvt.s32.f32 %v189
    %v199 = vcvt.s32.f32 %v190
    %v200 = vcvt.s32.f32 %v191
    %v201 = vcvt.s32.f32 %v192
    %v202 = vcvt.s32.f32 %v193
    %v203 = vcvt.s32.f32 %v194
    %v204 = vcvt.s32.f32 %v195
    %v205 = vld [vmem:[#allocation2] sm:$0xff]
    %v206 = vld [vmem:[#allocation2 + $0x8] sm:$0xff]
    %v207 = vld [vmem:[#allocation2 + $0x10] sm:$0xff]
    %v208 = vld [vmem:[#allocation2 + $0x18] sm:$0xff]
    %v209 = vld [vmem:[#allocation2 + $0x20] sm:$0xff]
    %v210 = vld [vmem:[#allocation2 + $0x28] sm:$0xff]
    %v211 = vld [vmem:[#allocation2 + $0x30] sm:$0xff]
    %v212 = vld [vmem:[#allocation2 + $0x38] sm:$0xff]
    %v213 = vld [vmem:[#allocation2 + $0x40] sm:$0xff]
    %v214 = vld [vmem:[#allocation2 + $0x48] sm:$0xff]
    %v215 = vld [vmem:[#allocation2 + $0x50] sm:$0xff]
    %v216 = vld [vmem:[#allocation2 + $0x58] sm:$0xff]
    %v217 = vld [vmem:[#allocation2 + $0x60] sm:$0xff]
    %v218 = vld [vmem:[#allocation2 + $0x68] sm:$0xff]
    %v219 = vld [vmem:[#allocation2 + $0x70] sm:$0xff]
    %v220 = vld [vmem:[#allocation2 + $0x78] sm:$0xff]
    %v221 = vld [vmem:[#allocation2 + $0x80] sm:$0xff]
    %v222 = vld [vmem:[#allocation2 + $0x88] sm:$0xff]
    %v223 = vadd.f32 %v205, %v206
    %v224 = vadd.f32 %v223, %v207
    %v225 = vadd.f32 %v224, %v208
    %v226 = vadd.f32 %v225, %v209
    %v227 = vadd.f32 %v226, %v210
    %v228 = vadd.f32 %v227, %v211
    %v229 = vadd.f32 %v228, %v212
    %v230 = vadd.f32 %v229, %v213
    %v231 = vrot.slane %v230, 4
    %v232 = vadd.f32 %v230, %v231
    %v233 = vrot.slane %v232, 2
    %v234 = vadd.f32 %v232, %v233
    %v235 = vrot.slane %v234, 1
    %v236 = vadd.f32 %v234, %v235
    %v237 = vadd.f32 %v214, %v215
    %v238 = vadd.f32 %v237, %v216
    %v239 = vadd.f32 %v238, %v217
    %v240 = vadd.f32 %v239, %v218
    %v241 = vadd.f32 %v240, %v219
    %v242 = vadd.f32 %v241, %v220
    %v243 = vadd.f32 %v242, %v221
    %v244 = vadd.f32 %v243, %v222
    %v245 = vrot.slane %v244, 4
    %v246 = vadd.f32 %v244, %v245
    %v247 = vrot.slane %v246, 2
    %v248 = vadd.f32 %v246, %v247
    %v249 = vrot.slane %v248, 1
    %v250 = vadd.f32 %v248, %v249
    %v251 = vmul.f32 %v205, %v205
    %v252 = vmul.f32 %v206, %v206
    %v253 = vmul.f32 %v207, %v207
    %v254 = vmul.f32 %v208, %v208
    %v255 = vmul.f32 %v209, %v209
    %v256 = vmul.f32 %v210, %v210
    %v257 = vmul.f32 %v211, %v211
    %v258 = vmul.f32 %v212, %v212
    %v259 = vmul.f32 %v213, %v213
    %v260 = vmul.f32 %v214, %v214
    %v261 = vmul.f32 %v215, %v215
    %v262 = vmul.f32 %v216, %v216
    %v263 = vmul.f32 %v217, %v217
    %v264 = vmul.f32 %v218, %v218
    %v265 = vmul.f32 %v219, %v219
    %v266 = vmul.f32 %v220, %v220
    %v267 = vmul.f32 %v221, %v221
    %v268 = vmul.f32 %v222, %v222
    %v269 = vadd.f32 %v251, %v252
    %v270 = vadd.f32 %v269, %v253
    %v271 = vadd.f32 %v270, %v254
    %v272 = vadd.f32 %v271, %v255
    %v273 = vadd.f32 %v272, %v256
    %v274 = vadd.f32 %v273, %v257
    %v275 = vadd.f32 %v274, %v258
    %v276 = vadd.f32 %v275, %v259
    %v277 = vrot.slane %v276, 4
    %v278 = vadd.f32 %v276, %v277
    %v279 = vrot.slane %v278, 2
    %v280 = vadd.f32 %v278, %v279
    %v281 = vrot.slane %v280, 1
    %v282 = vadd.f32 %v280, %v281
    %v283 = vadd.f32 %v260, %v261
    %v284 = vadd.f32 %v283, %v262
    %v285 = vadd.f32 %v284, %v263
    %v286 = vadd.f32 %v285, %v264
    %v287 = vadd.f32 %v286, %v265
    %v288 = vadd.f32 %v287, %v266
    %v289 = vadd.f32 %v288, %v267
    %v290 = vadd.f32 %v289, %v268
    %v291 = vrot.slane %v290, 4
    %v292 = vadd.f32 %v290, %v291
    %v293 = vrot.slane %v292, 2
    %v294 = vadd.f32 %v292, %v293
    %v295 = vrot.slane %v294, 1
    %v296 = vadd.f32 %v294, %v295
    %vm299 = vcmask 1041409
    %v300 = vsel %vm299, %v250, %v236
    %vm304 = vcmask 1043459
    %v305 = vsel %vm304, %v296, %v282
    %vm307 = vcmask 1041408
    %v308 = vsel %vm307, %v300, %v305
    %v309 = vld [vmem:[#allocation7] sm:$0xff]
    %v310 = vld [vmem:[#allocation7 + $0x8] sm:$0xff]
    %v311 = vld [vmem:[#allocation7 + $0x10] sm:$0xff]
    %v312 = vld [vmem:[#allocation7 + $0x18] sm:$0xff]
    %v313 = vld [vmem:[#allocation7 + $0x20] sm:$0xff]
    %v314 = vld [vmem:[#allocation7 + $0x28] sm:$0xff]
    %v315 = vld [vmem:[#allocation7 + $0x30] sm:$0xff]
    %v316 = vld [vmem:[#allocation7 + $0x38] sm:$0xff]
    %v317 = vld [vmem:[#allocation7 + $0x40] sm:$0xff]
    %v318 = vld [vmem:[#allocation7 + $0x48] sm:$0xff]
    %v319 = vld [vmem:[#allocation7 + $0x50] sm:$0xff]
    %v320 = vld [vmem:[#allocation7 + $0x58] sm:$0xff]
    %v321 = vld [vmem:[#allocation7 + $0x60] sm:$0xff]
    %v322 = vld [vmem:[#allocation7 + $0x68] sm:$0xff]
    %v323 = vld [vmem:[#allocation7 + $0x70] sm:$0xff]
    %v324 = vld [vmem:[#allocation7 + $0x78] sm:$0xff]
    %325 = vmatpush.msra.mxu0 %v324
    %326 = vmatpush.msra.mxu0 %v323
    %327 = vmatpush.msra.mxu0 %v322
    %328 = vmatpush.msra.mxu0 %v321
    %329 = vmatpush.msra.mxu0 %v320
    %330 = vmatpush.msra.mxu0 %v319
    %331 = vmatpush.msra.mxu0 %v318
    %332 = vmatpush.msra.mxu0 %v317
    %333 = vmatpush.msra.mxu0 %v316
    %334 = vmatpush.msra.mxu0 %v315
    %335 = vmatpush.msra.mxu0 %v314
    %336 = vmatpush.msra.mxu0 %v313
    %337 = vmatpush.msra.mxu0 %v312
    %338 = vmatpush.msra.mxu0 %v311
    %339 = vmatpush.msra.mxu0 %v310
    %340 = vmatpush.msra.mxu0 %v309
    %341 = vmatmul.f32.gmra.mxu0 %v308
    %v342 = vpop.f32.mrf.mxu0
    %v343 = vadd.f32 0.0, %v342
    %344 = vdwg.mxu0
    %v345 = vmul.f32 %v343, 0.0078125
    %v346 = vmul.f32 %v345, %v345
    %v348 = vrot.slane %v346, 6
    %v350 = vsub.f32 %v345, %v348
    %v351 = vmax.f32 %v350, 0.0
    %v352 = vadd.f32 %v351, 1e-05
    %v353 = vrsqrt.pop %v352
    %v354 = vmul.f32 %v353, %v352
    %v355 = vmul.f32 %v354, %v353
    %v356 = vmul.f32 0.5, %v355
    %v357 = vsub.f32 1.5, %v356
    %v358 = vmul.f32 %v353, %v357
    %vm359 = vweird.f32 %v352
    %vm360 = vweird.f32 %v353
    %vm361 = vmor %vm359, %vm360
    %v362 = vsel %vm361, %v353, %v358
    %v363 = vsel %vm307, %v345, %v362
    %v364 = vld [vmem:[#allocation8] sm:$0xff]
    %v365 = vld [vmem:[#allocation8 + $0x8] sm:$0xff]
    %v366 = vld [vmem:[#allocation8 + $0x10] sm:$0xff]
    %v367 = vld [vmem:[#allocation8 + $0x18] sm:$0xff]
    %v368 = vld [vmem:[#allocation8 + $0x20] sm:$0xff]
    %v369 = vld [vmem:[#allocation8 + $0x28] sm:$0xff]
    %v370 = vld [vmem:[#allocation8 + $0x30] sm:$0xff]
    %v371 = vld [vmem:[#allocation8 + $0x38] sm:$0xff]
    %v372 = vld [vmem:[#allocation8 + $0x40] sm:$0xff]
    %v373 = vld [vmem:[#allocation8 + $0x48] sm:$0xff]
    %v374 = vld [vmem:[#allocation8 + $0x50] sm:$0xff]
    %v375 = vld [vmem:[#allocation8 + $0x58] sm:$0xff]
    %v376 = vld [vmem:[#allocation8 + $0x60] sm:$0xff]
    %v377 = vld [vmem:[#allocation8 + $0x68] sm:$0xff]
    %v378 = vld [vmem:[#allocation8 + $0x70] sm:$0xff]
    %v379 = vld [vmem:[#allocation8 + $0x78] sm:$0xff]
    %380 = vmatpush.msra.mxu0 %v379
    %381 = vmatpush.msra.mxu0 %v378
    %382 = vmatpush.msra.mxu0 %v377
    %383 = vmatpush.msra.mxu0 %v376
    %384 = vmatpush.msra.mxu0 %v375
    %385 = vmatpush.msra.mxu0 %v374
    %386 = vmatpush.msra.mxu0 %v373
    %387 = vmatpush.msra.mxu0 %v372
    %388 = vmatpush.msra.mxu0 %v371
    %389 = vmatpush.msra.mxu0 %v370
    %390 = vmatpush.msra.mxu0 %v369
    %391 = vmatpush.msra.mxu0 %v368
    %392 = vmatpush.msra.mxu0 %v367
    %393 = vmatpush.msra.mxu0 %v366
    %394 = vmatpush.msra.mxu0 %v365
    %395 = vmatpush.msra.mxu0 %v364
    %396 = vmatmul.f32.gmra.mxu0 %v363
    %v397 = vpop.f32.mrf.mxu0
    %v398 = vadd.f32 0.0, %v397
    %399 = vdwg.mxu0
    %v401 = vrot.slane %v398, 1
    %402 = vst [vmem:[#allocation1] sm:$0xff] %v398
    %s403 = scalar_lea.vmem [#allocation1], 2
    %v404 = vld [vmem:[%s403] ss:$9 sm:$0xff]
    %s405 = scalar_lea.vmem [#allocation1], 3
    %v406 = vld [vmem:[%s405] ss:$9 sm:$0xff]
    %v409 = vperm.slane %v398, 0
    %v410 = vperm.slane %v401, 0
    %v413 = vsub.f32 %v205, %v409
    %v414 = vsub.f32 %v206, %v409
    %v415 = vsub.f32 %v207, %v409
    %v416 = vsub.f32 %v208, %v409
    %v417 = vsub.f32 %v209, %v409
    %v418 = vsub.f32 %v210, %v409
    %v419 = vsub.f32 %v211, %v409
    %v420 = vsub.f32 %v212, %v409
    %v421 = vsub.f32 %v213, %v409
    %v422 = vsub.f32 %v214, %v410
    %v423 = vsub.f32 %v215, %v410
    %v424 = vsub.f32 %v216, %v410
    %v425 = vsub.f32 %v217, %v410
    %v426 = vsub.f32 %v218, %v410
    %v427 = vsub.f32 %v219, %v410
    %v428 = vsub.f32 %v220, %v410
    %v429 = vsub.f32 %v221, %v410
    %v430 = vsub.f32 %v222, %v410
    %v431 = vld [vmem:[#allocation5] sm:$0x1]
    %v432 = vmul.f32 %v404, %v431
    %v433 = vmul.f32 %v406, %v431
    %v436 = vperm.slane %v432, 0
    %v437 = vperm.slane %v433, 0
    %v440 = vmul.f32 %v413, %v436
    %v441 = vmul.f32 %v414, %v436
    %v442 = vmul.f32 %v415, %v436
    %v443 = vmul.f32 %v416, %v436
    %v444 = vmul.f32 %v417, %v436
    %v445 = vmul.f32 %v418, %v436
    %v446 = vmul.f32 %v419, %v436
    %v447 = vmul.f32 %v420, %v436
    %v448 = vmul.f32 %v421, %v436
    %v449 = vmul.f32 %v422, %v437
    %v450 = vmul.f32 %v423, %v437
    %v451 = vmul.f32 %v424, %v437
    %v452 = vmul.f32 %v425, %v437
    %v453 = vmul.f32 %v426, %v437
    %v454 = vmul.f32 %v427, %v437
    %v455 = vmul.f32 %v428, %v437
    %v456 = vmul.f32 %v429, %v437
    %v457 = vmul.f32 %v430, %v437
    %v458 = vld [vmem:[%s2] sm:$0x1]
    %v460 = vperm.slane %v458, 0
    %v462 = vadd.f32 %v440, %v460
    %v463 = vadd.f32 %v441, %v460
    %v464 = vadd.f32 %v442, %v460
    %v465 = vadd.f32 %v443, %v460
    %v466 = vadd.f32 %v444, %v460
    %v467 = vadd.f32 %v445, %v460
    %v468 = vadd.f32 %v446, %v460
    %v469 = vadd.f32 %v447, %v460
    %v470 = vadd.f32 %v448, %v460
    %v471 = vadd.f32 %v449, %v460
    %v472 = vadd.f32 %v450, %v460
    %v473 = vadd.f32 %v451, %v460
    %v474 = vadd.f32 %v452, %v460
    %v475 = vadd.f32 %v453, %v460
    %v476 = vadd.f32 %v454, %v460
    %v477 = vadd.f32 %v455, %v460
    %v478 = vadd.f32 %v456, %v460
    %v479 = vadd.f32 %v457, %v460
    %v480 = vxor.u32 %v462, 2147483648
    %v481 = vxor.u32 %v463, 2147483648
    %v482 = vxor.u32 %v464, 2147483648
    %v483 = vxor.u32 %v465, 2147483648
    %v484 = vxor.u32 %v466, 2147483648
    %v485 = vxor.u32 %v467, 2147483648
    %v486 = vxor.u32 %v468, 2147483648
    %v487 = vxor.u32 %v469, 2147483648
    %v488 = vxor.u32 %v470, 2147483648
    %v489 = vxor.u32 %v471, 2147483648
    %v490 = vxor.u32 %v472, 2147483648
    %v491 = vxor.u32 %v473, 2147483648
    %v492 = vxor.u32 %v474, 2147483648
    %v493 = vxor.u32 %v475, 2147483648
    %v494 = vxor.u32 %v476, 2147483648
    %v495 = vxor.u32 %v477, 2147483648
    %v496 = vxor.u32 %v478, 2147483648
    %v497 = vxor.u32 %v479, 2147483648
    %v498 = vmul.f32 %v480, 1.442695
    %v499 = vpow.pop %v498
    %v500 = vmul.f32 %v481, 1.442695
    %v501 = vpow.pop %v500
    %v502 = vmul.f32 %v482, 1.442695
    %v503 = vpow.pop %v502
    %v504 = vmul.f32 %v483, 1.442695
    %v505 = vpow.pop %v504
    %v506 = vmul.f32 %v484, 1.442695
    %v507 = vpow.pop %v506
    %v508 = vmul.f32 %v485, 1.442695
    %v509 = vpow.pop %v508
    %v510 = vmul.f32 %v486, 1.442695
    %v511 = vpow.pop %v510
    %v512 = vmul.f32 %v487, 1.442695
    %v513 = vpow.pop %v512
    %v514 = vmul.f32 %v488, 1.442695
    %v515 = vpow.pop %v514
    %v516 = vmul.f32 %v489, 1.442695
    %v517 = vpow.pop %v516
    %v518 = vmul.f32 %v490, 1.442695
    %v519 = vpow.pop %v518
    %v520 = vmul.f32 %v491, 1.442695
    %v521 = vpow.pop %v520
    %v522 = vmul.f32 %v492, 1.442695
    %v523 = vpow.pop %v522
    %v524 = vmul.f32 %v493, 1.442695
    %v525 = vpow.pop %v524
    %v526 = vmul.f32 %v494, 1.442695
    %v527 = vpow.pop %v526
    %v528 = vmul.f32 %v495, 1.442695
    %v529 = vpow.pop %v528
    %v530 = vmul.f32 %v496, 1.442695
    %v531 = vpow.pop %v530
    %v532 = vmul.f32 %v497, 1.442695
    %v533 = vpow.pop %v532
    %v534 = vadd.f32 %v499, 1.0
    %v535 = vadd.f32 %v501, 1.0
    %v536 = vadd.f32 %v503, 1.0
    %v537 = vadd.f32 %v505, 1.0
    %v538 = vadd.f32 %v507, 1.0
    %v539 = vadd.f32 %v509, 1.0
    %v540 = vadd.f32 %v511, 1.0
    %v541 = vadd.f32 %v513, 1.0
    %v542 = vadd.f32 %v515, 1.0
    %v543 = vadd.f32 %v517, 1.0
    %v544 = vadd.f32 %v519, 1.0
    %v545 = vadd.f32 %v521, 1.0
    %v546 = vadd.f32 %v523, 1.0
    %v547 = vadd.f32 %v525, 1.0
    %v548 = vadd.f32 %v527, 1.0
    %v549 = vadd.f32 %v529, 1.0
    %v550 = vadd.f32 %v531, 1.0
    %v551 = vadd.f32 %v533, 1.0
    %v552 = vrcp.pop %v534
    %v553 = vmul.f32 %v534, %v552
    %v554 = vsub.f32 1.0, %v553
    %v555 = vmul.f32 %v552, %v554
    %v556 = vadd.f32 %v552, %v555
    %vm557 = vweird.f32 %v534
    %vm558 = vweird.f32 %v552
    %vm559 = vmor %vm557, %vm558
    %v560 = vsel %vm559, %v552, %v556
    %v561 = vand.u32 2147483647, %v534
    %vm562 = vcmp.eq.f32.partialorder %v561, 8.507059e+37
    %v563 = vand.u32 %v534, 2147483648
    %v564 = vor.u32 1.1754944e-38, %v563
    %v565 = vsel %vm562, %v564, %v560
    %v566 = vmul.f32 1.0, %v565
    %v567 = vrcp.pop %v535
    %v568 = vmul.f32 %v535, %v567
    %v569 = vsub.f32 1.0, %v568
    %v570 = vmul.f32 %v567, %v569
    %v571 = vadd.f32 %v567, %v570
    %vm572 = vweird.f32 %v535
    %vm573 = vweird.f32 %v567
    %vm574 = vmor %vm572, %vm573
    %v575 = vsel %vm574, %v567, %v571
    %v576 = vand.u32 2147483647, %v535
    %vm577 = vcmp.eq.f32.partialorder %v576, 8.507059e+37
    %v578 = vand.u32 %v535, 2147483648
    %v579 = vor.u32 1.1754944e-38, %v578
    %v580 = vsel %vm577, %v579, %v575
    %v581 = vmul.f32 1.0, %v580
    %v582 = vrcp.pop %v536
    %v583 = vmul.f32 %v536, %v582
    %v584 = vsub.f32 1.0, %v583
    %v585 = vmul.f32 %v582, %v584
    %v586 = vadd.f32 %v582, %v585
    %vm587 = vweird.f32 %v536
    %vm588 = vweird.f32 %v582
    %vm589 = vmor %vm587, %vm588
    %v590 = vsel %vm589, %v582, %v586
    %v591 = vand.u32 2147483647, %v536
    %vm592 = vcmp.eq.f32.partialorder %v591, 8.507059e+37
    %v593 = vand.u32 %v536, 2147483648
    %v594 = vor.u32 1.1754944e-38, %v593
    %v595 = vsel %vm592, %v594, %v590
    %v596 = vmul.f32 1.0, %v595
    %v597 = vrcp.pop %v537
    %v598 = vmul.f32 %v537, %v597
    %v599 = vsub.f32 1.0, %v598
    %v600 = vmul.f32 %v597, %v599
    %v601 = vadd.f32 %v597, %v600
    %vm602 = vweird.f32 %v537
    %vm603 = vweird.f32 %v597
    %vm604 = vmor %vm602, %vm603
    %v605 = vsel %vm604, %v597, %v601
    %v606 = vand.u32 2147483647, %v537
    %vm607 = vcmp.eq.f32.partialorder %v606, 8.507059e+37
    %v608 = vand.u32 %v537, 2147483648
    %v609 = vor.u32 1.1754944e-38, %v608
    %v610 = vsel %vm607, %v609, %v605
    %v611 = vmul.f32 1.0, %v610
    %v612 = vrcp.pop %v538
    %v613 = vmul.f32 %v538, %v612
    %v614 = vsub.f32 1.0, %v613
    %v615 = vmul.f32 %v612, %v614
    %v616 = vadd.f32 %v612, %v615
    %vm617 = vweird.f32 %v538
    %vm618 = vweird.f32 %v612
    %vm619 = vmor %vm617, %vm618
    %v620 = vsel %vm619, %v612, %v616
    %v621 = vand.u32 2147483647, %v538
    %vm622 = vcmp.eq.f32.partialorder %v621, 8.507059e+37
    %v623 = vand.u32 %v538, 2147483648
    %v624 = vor.u32 1.1754944e-38, %v623
    %v625 = vsel %vm622, %v624, %v620
    %v626 = vmul.f32 1.0, %v625
    %v627 = vrcp.pop %v539
    %v628 = vmul.f32 %v539, %v627
    %v629 = vsub.f32 1.0, %v628
    %v630 = vmul.f32 %v627, %v629
    %v631 = vadd.f32 %v627, %v630
    %vm632 = vweird.f32 %v539
    %vm633 = vweird.f32 %v627
    %vm634 = vmor %vm632, %vm633
    %v635 = vsel %vm634, %v627, %v631
    %v636 = vand.u32 2147483647, %v539
    %vm637 = vcmp.eq.f32.partialorder %v636, 8.507059e+37
    %v638 = vand.u32 %v539, 2147483648
    %v639 = vor.u32 1.1754944e-38, %v638
    %v640 = vsel %vm637, %v639, %v635
    %v641 = vmul.f32 1.0, %v640
    %v642 = vrcp.pop %v540
    %v643 = vmul.f32 %v540, %v642
    %v644 = vsub.f32 1.0, %v643
    %v645 = vmul.f32 %v642, %v644
    %v646 = vadd.f32 %v642, %v645
    %vm647 = vweird.f32 %v540
    %vm648 = vweird.f32 %v642
    %vm649 = vmor %vm647, %vm648
    %v650 = vsel %vm649, %v642, %v646
    %v651 = vand.u32 2147483647, %v540
    %vm652 = vcmp.eq.f32.partialorder %v651, 8.507059e+37
    %v653 = vand.u32 %v540, 2147483648
    %v654 = vor.u32 1.1754944e-38, %v653
    %v655 = vsel %vm652, %v654, %v650
    %v656 = vmul.f32 1.0, %v655
    %v657 = vrcp.pop %v541
    %v658 = vmul.f32 %v541, %v657
    %v659 = vsub.f32 1.0, %v658
    %v660 = vmul.f32 %v657, %v659
    %v661 = vadd.f32 %v657, %v660
    %vm662 = vweird.f32 %v541
    %vm663 = vweird.f32 %v657
    %vm664 = vmor %vm662, %vm663
    %v665 = vsel %vm664, %v657, %v661
    %v666 = vand.u32 2147483647, %v541
    %vm667 = vcmp.eq.f32.partialorder %v666, 8.507059e+37
    %v668 = vand.u32 %v541, 2147483648
    %v669 = vor.u32 1.1754944e-38, %v668
    %v670 = vsel %vm667, %v669, %v665
    %v671 = vmul.f32 1.0, %v670
    %v672 = vrcp.pop %v542
    %v673 = vmul.f32 %v542, %v672
    %v674 = vsub.f32 1.0, %v673
    %v675 = vmul.f32 %v672, %v674
    %v676 = vadd.f32 %v672, %v675
    %vm677 = vweird.f32 %v542
    %vm678 = vweird.f32 %v672
    %vm679 = vmor %vm677, %vm678
    %v680 = vsel %vm679, %v672, %v676
    %v681 = vand.u32 2147483647, %v542
    %vm682 = vcmp.eq.f32.partialorder %v681, 8.507059e+37
    %v683 = vand.u32 %v542, 2147483648
    %v684 = vor.u32 1.1754944e-38, %v683
    %v685 = vsel %vm682, %v684, %v680
    %v686 = vmul.f32 1.0, %v685
    %v687 = vrcp.pop %v543
    %v688 = vmul.f32 %v543, %v687
    %v689 = vsub.f32 1.0, %v688
    %v690 = vmul.f32 %v687, %v689
    %v691 = vadd.f32 %v687, %v690
    %vm692 = vweird.f32 %v543
    %vm693 = vweird.f32 %v687
    %vm694 = vmor %vm692, %vm693
    %v695 = vsel %vm694, %v687, %v691
    %v696 = vand.u32 2147483647, %v543
    %vm697 = vcmp.eq.f32.partialorder %v696, 8.507059e+37
    %v698 = vand.u32 %v543, 2147483648
    %v699 = vor.u32 1.1754944e-38, %v698
    %v700 = vsel %vm697, %v699, %v695
    %v701 = vmul.f32 1.0, %v700
    %v702 = vrcp.pop %v544
    %v703 = vmul.f32 %v544, %v702
    %v704 = vsub.f32 1.0, %v703
    %v705 = vmul.f32 %v702, %v704
    %v706 = vadd.f32 %v702, %v705
    %vm707 = vweird.f32 %v544
    %vm708 = vweird.f32 %v702
    %vm709 = vmor %vm707, %vm708
    %v710 = vsel %vm709, %v702, %v706
    %v711 = vand.u32 2147483647, %v544
    %vm712 = vcmp.eq.f32.partialorder %v711, 8.507059e+37
    %v713 = vand.u32 %v544, 2147483648
    %v714 = vor.u32 1.1754944e-38, %v713
    %v715 = vsel %vm712, %v714, %v710
    %v716 = vmul.f32 1.0, %v715
    %v717 = vrcp.pop %v545
    %v718 = vmul.f32 %v545, %v717
    %v719 = vsub.f32 1.0, %v718
    %v720 = vmul.f32 %v717, %v719
    %v721 = vadd.f32 %v717, %v720
    %vm722 = vweird.f32 %v545
    %vm723 = vweird.f32 %v717
    %vm724 = vmor %vm722, %vm723
    %v725 = vsel %vm724, %v717, %v721
    %v726 = vand.u32 2147483647, %v545
    %vm727 = vcmp.eq.f32.partialorder %v726, 8.507059e+37
    %v728 = vand.u32 %v545, 2147483648
    %v729 = vor.u32 1.1754944e-38, %v728
    %v730 = vsel %vm727, %v729, %v725
    %v731 = vmul.f32 1.0, %v730
    %v732 = vrcp.pop %v546
    %v733 = vmul.f32 %v546, %v732
    %v734 = vsub.f32 1.0, %v733
    %v735 = vmul.f32 %v732, %v734
    %v736 = vadd.f32 %v732, %v735
    %vm737 = vweird.f32 %v546
    %vm738 = vweird.f32 %v732
    %vm739 = vmor %vm737, %vm738
    %v740 = vsel %vm739, %v732, %v736
    %v741 = vand.u32 2147483647, %v546
    %vm742 = vcmp.eq.f32.partialorder %v741, 8.507059e+37
    %v743 = vand.u32 %v546, 2147483648
    %v744 = vor.u32 1.1754944e-38, %v743
    %v745 = vsel %vm742, %v744, %v740
    %v746 = vmul.f32 1.0, %v745
    %v747 = vrcp.pop %v547
    %v748 = vmul.f32 %v547, %v747
    %v749 = vsub.f32 1.0, %v748
    %v750 = vmul.f32 %v747, %v749
    %v751 = vadd.f32 %v747, %v750
    %vm752 = vweird.f32 %v547
    %vm753 = vweird.f32 %v747
    %vm754 = vmor %vm752, %vm753
    %v755 = vsel %vm754, %v747, %v751
    %v756 = vand.u32 2147483647, %v547
    %vm757 = vcmp.eq.f32.partialorder %v756, 8.507059e+37
    %v758 = vand.u32 %v547, 2147483648
    %v759 = vor.u32 1.1754944e-38, %v758
    %v760 = vsel %vm757, %v759, %v755
    %v761 = vmul.f32 1.0, %v760
    %v762 = vrcp.pop %v548
    %v763 = vmul.f32 %v548, %v762
    %v764 = vsub.f32 1.0, %v763
    %v765 = vmul.f32 %v762, %v764
    %v766 = vadd.f32 %v762, %v765
    %vm767 = vweird.f32 %v548
    %vm768 = vweird.f32 %v762
    %vm769 = vmor %vm767, %vm768
    %v770 = vsel %vm769, %v762, %v766
    %v771 = vand.u32 2147483647, %v548
    %vm772 = vcmp.eq.f32.partialorder %v771, 8.507059e+37
    %v773 = vand.u32 %v548, 2147483648
    %v774 = vor.u32 1.1754944e-38, %v773
    %v775 = vsel %vm772, %v774, %v770
    %v776 = vmul.f32 1.0, %v775
    %v777 = vrcp.pop %v549
    %v778 = vmul.f32 %v549, %v777
    %v779 = vsub.f32 1.0, %v778
    %v780 = vmul.f32 %v777, %v779
    %v781 = vadd.f32 %v777, %v780
    %vm782 = vweird.f32 %v549
    %vm783 = vweird.f32 %v777
    %vm784 = vmor %vm782, %vm783
    %v785 = vsel %vm784, %v777, %v781
    %v786 = vand.u32 2147483647, %v549
    %vm787 = vcmp.eq.f32.partialorder %v786, 8.507059e+37
    %v788 = vand.u32 %v549, 2147483648
    %v789 = vor.u32 1.1754944e-38, %v788
    %v790 = vsel %vm787, %v789, %v785
    %v791 = vmul.f32 1.0, %v790
    %v792 = vrcp.pop %v550
    %v793 = vmul.f32 %v550, %v792
    %v794 = vsub.f32 1.0, %v793
    %v795 = vmul.f32 %v792, %v794
    %v796 = vadd.f32 %v792, %v795
    %vm797 = vweird.f32 %v550
    %vm798 = vweird.f32 %v792
    %vm799 = vmor %vm797, %vm798
    %v800 = vsel %vm799, %v792, %v796
    %v801 = vand.u32 2147483647, %v550
    %vm802 = vcmp.eq.f32.partialorder %v801, 8.507059e+37
    %v803 = vand.u32 %v550, 2147483648
    %v804 = vor.u32 1.1754944e-38, %v803
    %v805 = vsel %vm802, %v804, %v800
    %v806 = vmul.f32 1.0, %v805
    %v807 = vrcp.pop %v551
    %v808 = vmul.f32 %v551, %v807
    %v809 = vsub.f32 1.0, %v808
    %v810 = vmul.f32 %v807, %v809
    %v811 = vadd.f32 %v807, %v810
    %vm812 = vweird.f32 %v551
    %vm813 = vweird.f32 %v807
    %vm814 = vmor %vm812, %vm813
    %v815 = vsel %vm814, %v807, %v811
    %v816 = vand.u32 2147483647, %v551
    %vm817 = vcmp.eq.f32.partialorder %v816, 8.507059e+37
    %v818 = vand.u32 %v551, 2147483648
    %v819 = vor.u32 1.1754944e-38, %v818
    %v820 = vsel %vm817, %v819, %v815
    %v821 = vmul.f32 1.0, %v820
    %v822 = vmul.f32 %v462, %v566
    %v823 = vmul.f32 %v463, %v581
    %v824 = vmul.f32 %v464, %v596
    %v825 = vmul.f32 %v465, %v611
    %v826 = vmul.f32 %v466, %v626
    %v827 = vmul.f32 %v467, %v641
    %v828 = vmul.f32 %v468, %v656
    %v829 = vmul.f32 %v469, %v671
    %v830 = vmul.f32 %v470, %v686
    %v831 = vmul.f32 %v471, %v701
    %v832 = vmul.f32 %v472, %v716
    %v833 = vmul.f32 %v473, %v731
    %v834 = vmul.f32 %v474, %v746
    %v835 = vmul.f32 %v475, %v761
    %v836 = vmul.f32 %v476, %v776
    %v837 = vmul.f32 %v477, %v791
    %v838 = vmul.f32 %v478, %v806
    %v839 = vmul.f32 %v479, %v821
    %v840 = vmul.f32 %v822, %v196
    %v841 = vmul.f32 %v823, %v197
    %v842 = vmul.f32 %v824, %v198
    %v843 = vmul.f32 %v825, %v199
    %v844 = vmul.f32 %v826, %v200
    %v845 = vmul.f32 %v827, %v201
    %v846 = vmul.f32 %v828, %v202
    %v847 = vmul.f32 %v829, %v203
    %v848 = vmul.f32 %v830, %v204
    %v849 = vmul.f32 %v831, %v196
    %v850 = vmul.f32 %v832, %v197
    %v851 = vmul.f32 %v833, %v198
    %v852 = vmul.f32 %v834, %v199
    %v853 = vmul.f32 %v835, %v200
    %v854 = vmul.f32 %v836, %v201
    %v855 = vmul.f32 %v837, %v202
    %v856 = vmul.f32 %v838, %v203
    %v857 = vmul.f32 %v839, %v204
    %vm876 = vcmask 1040384
    %v877 = vrot.slane %v840, 7
    %v878 = vrot.slane %v841, 7
    %v879 = vsel %vm876, %v877, %v878
    %v880 = vrot.slane %v842, 7
    %v881 = vsel %vm876, %v878, %v880
    %v882 = vrot.slane %v843, 7
    %v883 = vsel %vm876, %v880, %v882
    %v884 = vrot.slane %v844, 7
    %v885 = vsel %vm876, %v882, %v884
    %v886 = vrot.slane %v845, 7
    %v887 = vsel %vm876, %v884, %v886
    %v888 = vrot.slane %v846, 7
    %v889 = vsel %vm876, %v886, %v888
    %v890 = vrot.slane %v847, 7
    %v891 = vsel %vm876, %v888, %v890
    %v892 = vrot.slane %v848, 7
    %v893 = vsel %vm876, %v890, %v892
    %v894 = vrot.slane %v849, 7
    %v895 = vsel %vm876, %v892, %v894
    %v896 = vrot.slane %v850, 7
    %v897 = vsel %vm876, %v894, %v896
    %v898 = vrot.slane %v851, 7
    %v899 = vsel %vm876, %v896, %v898
    %v900 = vrot.slane %v852, 7
    %v901 = vsel %vm876, %v898, %v900
    %v902 = vrot.slane %v853, 7
    %v903 = vsel %vm876, %v900, %v902
    %v904 = vrot.slane %v854, 7
    %v905 = vsel %vm876, %v902, %v904
    %v906 = vrot.slane %v855, 7
    %v907 = vsel %vm876, %v904, %v906
    %v908 = vrot.slane %v856, 7
    %v909 = vsel %vm876, %v906, %v908
    %v910 = vrot.slane %v857, 7
    %v911 = vsel %vm876, %v908, %v910
    %v930 = vsel %vm876, 0.0, %v877
    %vm931 = vcmask 1046528
    %v932 = vrot.slane %v840, 1
    %v933 = vrot.slane %v841, 1
    %v934 = vsel %vm931, %v932, %v933
    %v935 = vrot.slane %v842, 1
    %v936 = vsel %vm931, %v933, %v935
    %v937 = vrot.slane %v843, 1
    %v938 = vsel %vm931, %v935, %v937
    %v939 = vrot.slane %v844, 1
    %v940 = vsel %vm931, %v937, %v939
    %v941 = vrot.slane %v845, 1
    %v942 = vsel %vm931, %v939, %v941
    %v943 = vrot.slane %v846, 1
    %v944 = vsel %vm931, %v941, %v943
    %v945 = vrot.slane %v847, 1
    %v946 = vsel %vm931, %v943, %v945
    %v947 = vrot.slane %v848, 1
    %v948 = vsel %vm931, %v945, %v947
    %v949 = vrot.slane %v849, 1
    %v950 = vsel %vm931, %v947, %v949
    %v951 = vrot.slane %v850, 1
    %v952 = vsel %vm931, %v949, %v951
    %v953 = vrot.slane %v851, 1
    %v954 = vsel %vm931, %v951, %v953
    %v955 = vrot.slane %v852, 1
    %v956 = vsel %vm931, %v953, %v955
    %v957 = vrot.slane %v853, 1
    %v958 = vsel %vm931, %v955, %v957
    %v959 = vrot.slane %v854, 1
    %v960 = vsel %vm931, %v957, %v959
    %v961 = vrot.slane %v855, 1
    %v962 = vsel %vm931, %v959, %v961
    %v963 = vrot.slane %v856, 1
    %v964 = vsel %vm931, %v961, %v963
    %v965 = vrot.slane %v857, 1
    %v966 = vsel %vm931, %v963, %v965
    %v985 = vsel %vm931, %v965, 0.0
    %v986 = vpack.c.bf16 %v841, %v840
    %v987 = vpack.c.bf16 %v843, %v842
    %v988 = vpack.c.bf16 %v845, %v844
    %v989 = vpack.c.bf16 %v847, %v846
    %v990 = vpack.c.bf16 %v849, %v848
    %v991 = vpack.c.bf16 %v851, %v850
    %v992 = vpack.c.bf16 %v853, %v852
    %v993 = vpack.c.bf16 %v855, %v854
    %v994 = vpack.c.bf16 %v857, %v856
    %s995 = scalar_lea.vmem [#allocation10], 64
    %v996 = vld [vmem:[%s995] sm:$0xf]
    %v997 = vld [vmem:[%s995 + $0x4] sm:$0xf]
    %v998 = vld [vmem:[%s995 + $0x8] sm:$0xf]
    %v999 = vld [vmem:[%s995 + $0xc] sm:$0xf]
    %v1000 = vld [vmem:[%s995 + $0x10] sm:$0xf]
    %v1001 = vld [vmem:[%s995 + $0x14] sm:$0xf]
    %v1002 = vld [vmem:[%s995 + $0x18] sm:$0xf]
    %v1003 = vld [vmem:[%s995 + $0x1c] sm:$0xf]
    %v1004 = vld [vmem:[%s995 + $0x20] sm:$0xf]
    %v1005 = vld [vmem:[%s995 + $0x24] sm:$0xf]
    %v1006 = vld [vmem:[%s995 + $0x28] sm:$0xf]
    %v1007 = vld [vmem:[%s995 + $0x2c] sm:$0xf]
    %v1008 = vld [vmem:[%s995 + $0x30] sm:$0xf]
    %v1009 = vld [vmem:[%s995 + $0x34] sm:$0xf]
    %v1010 = vld [vmem:[%s995 + $0x38] sm:$0xf]
    %v1011 = vld [vmem:[%s995 + $0x3c] sm:$0xf]
    %v1012 = vpack.c.bf16 %v879, %v930
    %v1013 = vpack.c.bf16 %v883, %v881
    %v1014 = vpack.c.bf16 %v887, %v885
    %v1015 = vpack.c.bf16 %v891, %v889
    %v1016 = vpack.c.bf16 %v895, %v893
    %v1017 = vpack.c.bf16 %v899, %v897
    %v1018 = vpack.c.bf16 %v903, %v901
    %v1019 = vpack.c.bf16 %v907, %v905
    %v1020 = vpack.c.bf16 %v911, %v909
    %v1021 = vld [vmem:[#allocation10] sm:$0xf]
    %v1022 = vld [vmem:[#allocation10 + $0x4] sm:$0xf]
    %v1023 = vld [vmem:[#allocation10 + $0x8] sm:$0xf]
    %v1024 = vld [vmem:[#allocation10 + $0xc] sm:$0xf]
    %v1025 = vld [vmem:[#allocation10 + $0x10] sm:$0xf]
    %v1026 = vld [vmem:[#allocation10 + $0x14] sm:$0xf]
    %v1027 = vld [vmem:[#allocation10 + $0x18] sm:$0xf]
    %v1028 = vld [vmem:[#allocation10 + $0x1c] sm:$0xf]
    %v1029 = vld [vmem:[#allocation10 + $0x20] sm:$0xf]
    %v1030 = vld [vmem:[#allocation10 + $0x24] sm:$0xf]
    %v1031 = vld [vmem:[#allocation10 + $0x28] sm:$0xf]
    %v1032 = vld [vmem:[#allocation10 + $0x2c] sm:$0xf]
    %v1033 = vld [vmem:[#allocation10 + $0x30] sm:$0xf]
    %v1034 = vld [vmem:[#allocation10 + $0x34] sm:$0xf]
    %v1035 = vld [vmem:[#allocation10 + $0x38] sm:$0xf]
    %v1036 = vld [vmem:[#allocation10 + $0x3c] sm:$0xf]
    %v1053 = vunpack.c.l.b16 %v1021
    %v1054 = vunpack.c.l.b16 %v1022
    %v1055 = vunpack.c.l.b16 %v1023
    %v1056 = vunpack.c.l.b16 %v1024
    %v1057 = vunpack.c.l.b16 %v1025
    %v1058 = vunpack.c.l.b16 %v1026
    %v1059 = vunpack.c.l.b16 %v1027
    %v1060 = vunpack.c.l.b16 %v1028
    %v1061 = vunpack.c.l.b16 %v1029
    %v1062 = vunpack.c.l.b16 %v1030
    %v1063 = vunpack.c.l.b16 %v1031
    %v1064 = vunpack.c.l.b16 %v1032
    %v1065 = vunpack.c.l.b16 %v1033
    %v1066 = vunpack.c.l.b16 %v1034
    %v1067 = vunpack.c.l.b16 %v1035
    %v1068 = vunpack.c.l.b16 %v1036
    %v1069 = vpack.c.b16 %v1054, %v1053
    %v1070 = vpack.c.b16 %v1056, %v1055
    %v1071 = vpack.c.b16 %v1058, %v1057
    %v1072 = vpack.c.b16 %v1060, %v1059
    %v1073 = vpack.c.b16 %v1062, %v1061
    %v1074 = vpack.c.b16 %v1064, %v1063
    %v1075 = vpack.c.b16 %v1066, %v1065
    %v1076 = vpack.c.b16 %v1068, %v1067
    %1085 = vmatpush.bf16.msra.mxu0 %v1076
    %1086 = vmatpush.bf16.msra.mxu0 %v1075
    %1087 = vmatpush.bf16.msra.mxu0 %v1074
    %1088 = vmatpush.bf16.msra.mxu0 %v1073
    %1089 = vmatpush.bf16.msra.mxu0 %v1072
    %1090 = vmatpush.bf16.msra.mxu0 %v1071
    %1091 = vmatpush.bf16.msra.mxu0 %v1070
    %1092 = vmatpush.bf16.msra.mxu0 %v1069
    %1093 = vmatmul.bf16.gmra.mxu0 %v1012
    %v1094 = vpop.f32.mrf.mxu0
    %v1095 = vadd.f32 0.0, %v1094
    %v1096 = vpop.f32.mrf.mxu0
    %v1097 = vadd.f32 0.0, %v1096
    %1098 = vmatmul.bf16.gmra.mxu0 %v1013
    %v1099 = vpop.f32.mrf.mxu0
    %v1100 = vadd.f32 0.0, %v1099
    %v1101 = vpop.f32.mrf.mxu0
    %v1102 = vadd.f32 0.0, %v1101
    %1103 = vmatmul.bf16.gmra.mxu0 %v1014
    %v1104 = vpop.f32.mrf.mxu0
    %v1105 = vadd.f32 0.0, %v1104
    %v1106 = vpop.f32.mrf.mxu0
    %v1107 = vadd.f32 0.0, %v1106
    %1108 = vmatmul.bf16.gmra.mxu0 %v1015
    %v1109 = vpop.f32.mrf.mxu0
    %v1110 = vadd.f32 0.0, %v1109
    %v1111 = vpop.f32.mrf.mxu0
    %v1112 = vadd.f32 0.0, %v1111
    %1113 = vmatmul.bf16.gmra.mxu0 %v1016
    %v1114 = vpop.f32.mrf.mxu0
    %v1115 = vadd.f32 0.0, %v1114
    %v1116 = vpop.f32.mrf.mxu0
    %v1117 = vadd.f32 0.0, %v1116
    %1118 = vmatmul.bf16.gmra.mxu0 %v1017
    %v1119 = vpop.f32.mrf.mxu0
    %v1120 = vadd.f32 0.0, %v1119
    %v1121 = vpop.f32.mrf.mxu0
    %v1122 = vadd.f32 0.0, %v1121
    %1123 = vmatmul.bf16.gmra.mxu0 %v1018
    %v1124 = vpop.f32.mrf.mxu0
    %v1125 = vadd.f32 0.0, %v1124
    %v1126 = vpop.f32.mrf.mxu0
    %v1127 = vadd.f32 0.0, %v1126
    %1128 = vmatmul.bf16.gmra.mxu0 %v1019
    %v1129 = vpop.f32.mrf.mxu0
    %v1130 = vadd.f32 0.0, %v1129
    %v1131 = vpop.f32.mrf.mxu0
    %v1132 = vadd.f32 0.0, %v1131
    %1133 = vmatmul.bf16.gmra.mxu0 %v1020
    %v1134 = vpop.f32.mrf.mxu0
    %v1135 = vadd.f32 0.0, %v1134
    %v1136 = vpop.f32.mrf.mxu0
    %v1137 = vadd.f32 0.0, %v1136
    %1138 = vdwg.mxu0
    %v1155 = vunpack.c.l.b16 %v996
    %v1156 = vunpack.c.l.b16 %v997
    %v1157 = vunpack.c.l.b16 %v998
    %v1158 = vunpack.c.l.b16 %v999
    %v1159 = vunpack.c.l.b16 %v1000
    %v1160 = vunpack.c.l.b16 %v1001
    %v1161 = vunpack.c.l.b16 %v1002
    %v1162 = vunpack.c.l.b16 %v1003
    %v1163 = vunpack.c.l.b16 %v1004
    %v1164 = vunpack.c.l.b16 %v1005
    %v1165 = vunpack.c.l.b16 %v1006
    %v1166 = vunpack.c.l.b16 %v1007
    %v1167 = vunpack.c.l.b16 %v1008
    %v1168 = vunpack.c.l.b16 %v1009
    %v1169 = vunpack.c.l.b16 %v1010
    %v1170 = vunpack.c.l.b16 %v1011
    %v1171 = vpack.c.b16 %v1156, %v1155
    %v1172 = vpack.c.b16 %v1158, %v1157
    %v1173 = vpack.c.b16 %v1160, %v1159
    %v1174 = vpack.c.b16 %v1162, %v1161
    %v1175 = vpack.c.b16 %v1164, %v1163
    %v1176 = vpack.c.b16 %v1166, %v1165
    %v1177 = vpack.c.b16 %v1168, %v1167
    %v1178 = vpack.c.b16 %v1170, %v1169
    %1187 = vmatpush.bf16.msra.mxu0 %v1178
    %1188 = vmatpush.bf16.msra.mxu0 %v1177
    %1189 = vmatpush.bf16.msra.mxu0 %v1176
    %1190 = vmatpush.bf16.msra.mxu0 %v1175
    %1191 = vmatpush.bf16.msra.mxu0 %v1174
    %1192 = vmatpush.bf16.msra.mxu0 %v1173
    %1193 = vmatpush.bf16.msra.mxu0 %v1172
    %1194 = vmatpush.bf16.msra.mxu0 %v1171
    %1195 = vmatmul.bf16.gmra.mxu0 %v986
    %v1196 = vpop.f32.mrf.mxu0
    %v1197 = vadd.f32 %v1095, %v1196
    %v1198 = vpop.f32.mrf.mxu0
    %v1199 = vadd.f32 %v1097, %v1198
    %1200 = vmatmul.bf16.gmra.mxu0 %v987
    %v1201 = vpop.f32.mrf.mxu0
    %v1202 = vadd.f32 %v1100, %v1201
    %v1203 = vpop.f32.mrf.mxu0
    %v1204 = vadd.f32 %v1102, %v1203
    %1205 = vmatmul.bf16.gmra.mxu0 %v988
    %v1206 = vpop.f32.mrf.mxu0
    %v1207 = vadd.f32 %v1105, %v1206
    %v1208 = vpop.f32.mrf.mxu0
    %v1209 = vadd.f32 %v1107, %v1208
    %1210 = vmatmul.bf16.gmra.mxu0 %v989
    %v1211 = vpop.f32.mrf.mxu0
    %v1212 = vadd.f32 %v1110, %v1211
    %v1213 = vpop.f32.mrf.mxu0
    %v1214 = vadd.f32 %v1112, %v1213
    %1215 = vmatmul.bf16.gmra.mxu0 %v990
    %v1216 = vpop.f32.mrf.mxu0
    %v1217 = vadd.f32 %v1115, %v1216
    %v1218 = vpop.f32.mrf.mxu0
    %v1219 = vadd.f32 %v1117, %v1218
    %1220 = vmatmul.bf16.gmra.mxu0 %v991
    %v1221 = vpop.f32.mrf.mxu0
    %v1222 = vadd.f32 %v1120, %v1221
    %v1223 = vpop.f32.mrf.mxu0
    %v1224 = vadd.f32 %v1122, %v1223
    %1225 = vmatmul.bf16.gmra.mxu0 %v992
    %v1226 = vpop.f32.mrf.mxu0
    %v1227 = vadd.f32 %v1125, %v1226
    %v1228 = vpop.f32.mrf.mxu0
    %v1229 = vadd.f32 %v1127, %v1228
    %1230 = vmatmul.bf16.gmra.mxu0 %v993
    %v1231 = vpop.f32.mrf.mxu0
    %v1232 = vadd.f32 %v1130, %v1231
    %v1233 = vpop.f32.mrf.mxu0
    %v1234 = vadd.f32 %v1132, %v1233
    %1235 = vmatmul.bf16.gmra.mxu0 %v994
    %v1236 = vpop.f32.mrf.mxu0
    %v1237 = vadd.f32 %v1135, %v1236
    %v1238 = vpop.f32.mrf.mxu0
    %v1239 = vadd.f32 %v1137, %v1238
    %1240 = vdwg.mxu0
    %v1241 = vpack.c.bf16 %v936, %v934
    %v1242 = vpack.c.bf16 %v940, %v938
    %v1243 = vpack.c.bf16 %v944, %v942
    %v1244 = vpack.c.bf16 %v948, %v946
    %v1245 = vpack.c.bf16 %v952, %v950
    %v1246 = vpack.c.bf16 %v956, %v954
    %v1247 = vpack.c.bf16 %v960, %v958
    %v1248 = vpack.c.bf16 %v964, %v962
    %v1249 = vpack.c.bf16 %v985, %v966
    %s1250 = scalar_lea.vmem [#allocation10], 128
    %v1251 = vld [vmem:[%s1250] sm:$0xf]
    %v1252 = vld [vmem:[%s1250 + $0x4] sm:$0xf]
    %v1253 = vld [vmem:[%s1250 + $0x8] sm:$0xf]
    %v1254 = vld [vmem:[%s1250 + $0xc] sm:$0xf]
    %v1255 = vld [vmem:[%s1250 + $0x10] sm:$0xf]
    %v1256 = vld [vmem:[%s1250 + $0x14] sm:$0xf]
    %v1257 = vld [vmem:[%s1250 + $0x18] sm:$0xf]
    %v1258 = vld [vmem:[%s1250 + $0x1c] sm:$0xf]
    %v1259 = vld [vmem:[%s1250 + $0x20] sm:$0xf]
    %v1260 = vld [vmem:[%s1250 + $0x24] sm:$0xf]
    %v1261 = vld [vmem:[%s1250 + $0x28] sm:$0xf]
    %v1262 = vld [vmem:[%s1250 + $0x2c] sm:$0xf]
    %v1263 = vld [vmem:[%s1250 + $0x30] sm:$0xf]
    %v1264 = vld [vmem:[%s1250 + $0x34] sm:$0xf]
    %v1265 = vld [vmem:[%s1250 + $0x38] sm:$0xf]
    %v1266 = vld [vmem:[%s1250 + $0x3c] sm:$0xf]
    %v1283 = vunpack.c.l.b16 %v1251
    %v1284 = vunpack.c.l.b16 %v1252
    %v1285 = vunpack.c.l.b16 %v1253
    %v1286 = vunpack.c.l.b16 %v1254
    %v1287 = vunpack.c.l.b16 %v1255
    %v1288 = vunpack.c.l.b16 %v1256
    %v1289 = vunpack.c.l.b16 %v1257
    %v1290 = vunpack.c.l.b16 %v1258
    %v1291 = vunpack.c.l.b16 %v1259
    %v1292 = vunpack.c.l.b16 %v1260
    %v1293 = vunpack.c.l.b16 %v1261
    %v1294 = vunpack.c.l.b16 %v1262
    %v1295 = vunpack.c.l.b16 %v1263
    %v1296 = vunpack.c.l.b16 %v1264
    %v1297 = vunpack.c.l.b16 %v1265
    %v1298 = vunpack.c.l.b16 %v1266
    %v1299 = vpack.c.b16 %v1284, %v1283
    %v1300 = vpack.c.b16 %v1286, %v1285
    %v1301 = vpack.c.b16 %v1288, %v1287
    %v1302 = vpack.c.b16 %v1290, %v1289
    %v1303 = vpack.c.b16 %v1292, %v1291
    %v1304 = vpack.c.b16 %v1294, %v1293
    %v1305 = vpack.c.b16 %v1296, %v1295
    %v1306 = vpack.c.b16 %v1298, %v1297
    %1315 = vmatpush.bf16.msra.mxu0 %v1306
    %1316 = vmatpush.bf16.msra.mxu0 %v1305
    %1317 = vmatpush.bf16.msra.mxu0 %v1304
    %1318 = vmatpush.bf16.msra.mxu0 %v1303
    %1319 = vmatpush.bf16.msra.mxu0 %v1302
    %1320 = vmatpush.bf16.msra.mxu0 %v1301
    %1321 = vmatpush.bf16.msra.mxu0 %v1300
    %1322 = vmatpush.bf16.msra.mxu0 %v1299
    %1323 = vmatmul.bf16.gmra.mxu0 %v1241
    %v1324 = vpop.f32.mrf.mxu0
    %v1325 = vadd.f32 0.0, %v1324
    %v1326 = vpop.f32.mrf.mxu0
    %v1327 = vadd.f32 0.0, %v1326
    %1328 = vmatmul.bf16.gmra.mxu0 %v1242
    %v1329 = vpop.f32.mrf.mxu0
    %v1330 = vadd.f32 0.0, %v1329
    %v1331 = vpop.f32.mrf.mxu0
    %v1332 = vadd.f32 0.0, %v1331
    %1333 = vmatmul.bf16.gmra.mxu0 %v1243
    %v1334 = vpop.f32.mrf.mxu0
    %v1335 = vadd.f32 0.0, %v1334
    %v1336 = vpop.f32.mrf.mxu0
    %v1337 = vadd.f32 0.0, %v1336
    %1338 = vmatmul.bf16.gmra.mxu0 %v1244
    %v1339 = vpop.f32.mrf.mxu0
    %v1340 = vadd.f32 0.0, %v1339
    %v1341 = vpop.f32.mrf.mxu0
    %v1342 = vadd.f32 0.0, %v1341
    %1343 = vmatmul.bf16.gmra.mxu0 %v1245
    %v1344 = vpop.f32.mrf.mxu0
    %v1345 = vadd.f32 0.0, %v1344
    %v1346 = vpop.f32.mrf.mxu0
    %v1347 = vadd.f32 0.0, %v1346
    %1348 = vmatmul.bf16.gmra.mxu0 %v1246
    %v1349 = vpop.f32.mrf.mxu0
    %v1350 = vadd.f32 0.0, %v1349
    %v1351 = vpop.f32.mrf.mxu0
    %v1352 = vadd.f32 0.0, %v1351
    %1353 = vmatmul.bf16.gmra.mxu0 %v1247
    %v1354 = vpop.f32.mrf.mxu0
    %v1355 = vadd.f32 0.0, %v1354
    %v1356 = vpop.f32.mrf.mxu0
    %v1357 = vadd.f32 0.0, %v1356
    %1358 = vmatmul.bf16.gmra.mxu0 %v1248
    %v1359 = vpop.f32.mrf.mxu0
    %v1360 = vadd.f32 0.0, %v1359
    %v1361 = vpop.f32.mrf.mxu0
    %v1362 = vadd.f32 0.0, %v1361
    %1363 = vmatmul.bf16.gmra.mxu0 %v1249
    %v1364 = vpop.f32.mrf.mxu0
    %v1365 = vadd.f32 0.0, %v1364
    %v1366 = vpop.f32.mrf.mxu0
    %v1367 = vadd.f32 0.0, %v1366
    %1368 = vdwg.mxu0
    %v1369 = vadd.f32 %v1197, %v1325
    %v1370 = vadd.f32 %v1199, %v1327
    %v1371 = vadd.f32 %v1202, %v1330
    %v1372 = vadd.f32 %v1204, %v1332
    %v1373 = vadd.f32 %v1207, %v1335
    %v1374 = vadd.f32 %v1209, %v1337
    %v1375 = vadd.f32 %v1212, %v1340
    %v1376 = vadd.f32 %v1214, %v1342
    %v1377 = vadd.f32 %v1217, %v1345
    %v1378 = vadd.f32 %v1219, %v1347
    %v1379 = vadd.f32 %v1222, %v1350
    %v1380 = vadd.f32 %v1224, %v1352
    %v1381 = vadd.f32 %v1227, %v1355
    %v1382 = vadd.f32 %v1229, %v1357
    %v1383 = vadd.f32 %v1232, %v1360
    %v1384 = vadd.f32 %v1234, %v1362
    %v1385 = vadd.f32 %v1237, %v1365
    %v1386 = vadd.f32 %v1239, %v1367
    %v1387 = vld [vmem:[%s6] sm:$0x1]
    %v1389 = vperm.slane %v1387, 0
    %v1391 = vadd.f32 %v1369, %v1389
    %v1392 = vadd.f32 %v1370, %v1389
    %v1393 = vadd.f32 %v1371, %v1389
    %v1394 = vadd.f32 %v1372, %v1389
    %v1395 = vadd.f32 %v1373, %v1389
    %v1396 = vadd.f32 %v1374, %v1389
    %v1397 = vadd.f32 %v1375, %v1389
    %v1398 = vadd.f32 %v1376, %v1389
    %v1399 = vadd.f32 %v1377, %v1389
    %v1400 = vadd.f32 %v1378, %v1389
    %v1401 = vadd.f32 %v1379, %v1389
    %v1402 = vadd.f32 %v1380, %v1389
    %v1403 = vadd.f32 %v1381, %v1389
    %v1404 = vadd.f32 %v1382, %v1389
    %v1405 = vadd.f32 %v1383, %v1389
    %v1406 = vadd.f32 %v1384, %v1389
    %v1407 = vadd.f32 %v1385, %v1389
    %v1408 = vadd.f32 %v1386, %v1389
    %v1409 = vmul.f32 %v1391, %v196
    %v1410 = vmul.f32 %v1392, %v197
    %v1411 = vmul.f32 %v1393, %v198
    %v1412 = vmul.f32 %v1394, %v199
    %v1413 = vmul.f32 %v1395, %v200
    %v1414 = vmul.f32 %v1396, %v201
    %v1415 = vmul.f32 %v1397, %v202
    %v1416 = vmul.f32 %v1398, %v203
    %v1417 = vmul.f32 %v1399, %v204
    %v1418 = vmul.f32 %v1400, %v196
    %v1419 = vmul.f32 %v1401, %v197
    %v1420 = vmul.f32 %v1402, %v198
    %v1421 = vmul.f32 %v1403, %v199
    %v1422 = vmul.f32 %v1404, %v200
    %v1423 = vmul.f32 %v1405, %v201
    %v1424 = vmul.f32 %v1406, %v202
    %v1425 = vmul.f32 %v1407, %v203
    %v1426 = vmul.f32 %v1408, %v204
    %v1427 = vadd.f32 %v1409, %v1410
    %v1428 = vadd.f32 %v1427, %v1411
    %v1429 = vadd.f32 %v1428, %v1412
    %v1430 = vadd.f32 %v1429, %v1413
    %v1431 = vadd.f32 %v1430, %v1414
    %v1432 = vadd.f32 %v1431, %v1415
    %v1433 = vadd.f32 %v1432, %v1416
    %v1434 = vadd.f32 %v1433, %v1417
    %v1435 = vrot.slane %v1434, 4
    %v1436 = vadd.f32 %v1434, %v1435
    %v1437 = vrot.slane %v1436, 2
    %v1438 = vadd.f32 %v1436, %v1437
    %v1439 = vrot.slane %v1438, 1
    %v1440 = vadd.f32 %v1438, %v1439
    %v1441 = vadd.f32 %v1418, %v1419
    %v1442 = vadd.f32 %v1441, %v1420
    %v1443 = vadd.f32 %v1442, %v1421
    %v1444 = vadd.f32 %v1443, %v1422
    %v1445 = vadd.f32 %v1444, %v1423
    %v1446 = vadd.f32 %v1445, %v1424
    %v1447 = vadd.f32 %v1446, %v1425
    %v1448 = vadd.f32 %v1447, %v1426
    %v1449 = vrot.slane %v1448, 4
    %v1450 = vadd.f32 %v1448, %v1449
    %v1451 = vrot.slane %v1450, 2
    %v1452 = vadd.f32 %v1450, %v1451
    %v1453 = vrot.slane %v1452, 1
    %v1454 = vadd.f32 %v1452, %v1453
    %v1455 = vmul.f32 %v1409, %v1409
    %v1456 = vmul.f32 %v1410, %v1410
    %v1457 = vmul.f32 %v1411, %v1411
    %v1458 = vmul.f32 %v1412, %v1412
    %v1459 = vmul.f32 %v1413, %v1413
    %v1460 = vmul.f32 %v1414, %v1414
    %v1461 = vmul.f32 %v1415, %v1415
    %v1462 = vmul.f32 %v1416, %v1416
    %v1463 = vmul.f32 %v1417, %v1417
    %v1464 = vmul.f32 %v1418, %v1418
    %v1465 = vmul.f32 %v1419, %v1419
    %v1466 = vmul.f32 %v1420, %v1420
    %v1467 = vmul.f32 %v1421, %v1421
    %v1468 = vmul.f32 %v1422, %v1422
    %v1469 = vmul.f32 %v1423, %v1423
    %v1470 = vmul.f32 %v1424, %v1424
    %v1471 = vmul.f32 %v1425, %v1425
    %v1472 = vmul.f32 %v1426, %v1426
    %v1473 = vadd.f32 %v1455, %v1456
    %v1474 = vadd.f32 %v1473, %v1457
    %v1475 = vadd.f32 %v1474, %v1458
    %v1476 = vadd.f32 %v1475, %v1459
    %v1477 = vadd.f32 %v1476, %v1460
    %v1478 = vadd.f32 %v1477, %v1461
    %v1479 = vadd.f32 %v1478, %v1462
    %v1480 = vadd.f32 %v1479, %v1463
    %v1481 = vrot.slane %v1480, 4
    %v1482 = vadd.f32 %v1480, %v1481
    %v1483 = vrot.slane %v1482, 2
    %v1484 = vadd.f32 %v1482, %v1483
    %v1485 = vrot.slane %v1484, 1
    %v1486 = vadd.f32 %v1484, %v1485
    %v1487 = vadd.f32 %v1464, %v1465
    %v1488 = vadd.f32 %v1487, %v1466
    %v1489 = vadd.f32 %v1488, %v1467
    %v1490 = vadd.f32 %v1489, %v1468
    %v1491 = vadd.f32 %v1490, %v1469
    %v1492 = vadd.f32 %v1491, %v1470
    %v1493 = vadd.f32 %v1492, %v1471
    %v1494 = vadd.f32 %v1493, %v1472
    %v1495 = vrot.slane %v1494, 4
    %v1496 = vadd.f32 %v1494, %v1495
    %v1497 = vrot.slane %v1496, 2
    %v1498 = vadd.f32 %v1496, %v1497
    %v1499 = vrot.slane %v1498, 1
    %v1500 = vadd.f32 %v1498, %v1499
    %v1503 = vsel %vm299, %v1454, %v1440
    %v1507 = vsel %vm304, %v1500, %v1486
    %v1509 = vsel %vm307, %v1503, %v1507
    %v1510 = vld [vmem:[#allocation11] sm:$0xff]
    %v1511 = vld [vmem:[#allocation11 + $0x8] sm:$0xff]
    %v1512 = vld [vmem:[#allocation11 + $0x10] sm:$0xff]
    %v1513 = vld [vmem:[#allocation11 + $0x18] sm:$0xff]
    %v1514 = vld [vmem:[#allocation11 + $0x20] sm:$0xff]
    %v1515 = vld [vmem:[#allocation11 + $0x28] sm:$0xff]
    %v1516 = vld [vmem:[#allocation11 + $0x30] sm:$0xff]
    %v1517 = vld [vmem:[#allocation11 + $0x38] sm:$0xff]
    %v1518 = vld [vmem:[#allocation11 + $0x40] sm:$0xff]
    %v1519 = vld [vmem:[#allocation11 + $0x48] sm:$0xff]
    %v1520 = vld [vmem:[#allocation11 + $0x50] sm:$0xff]
    %v1521 = vld [vmem:[#allocation11 + $0x58] sm:$0xff]
    %v1522 = vld [vmem:[#allocation11 + $0x60] sm:$0xff]
    %v1523 = vld [vmem:[#allocation11 + $0x68] sm:$0xff]
    %v1524 = vld [vmem:[#allocation11 + $0x70] sm:$0xff]
    %v1525 = vld [vmem:[#allocation11 + $0x78] sm:$0xff]
    %1526 = vmatpush.msra.mxu0 %v1525
    %1527 = vmatpush.msra.mxu0 %v1524
    %1528 = vmatpush.msra.mxu0 %v1523
    %1529 = vmatpush.msra.mxu0 %v1522
    %1530 = vmatpush.msra.mxu0 %v1521
    %1531 = vmatpush.msra.mxu0 %v1520
    %1532 = vmatpush.msra.mxu0 %v1519
    %1533 = vmatpush.msra.mxu0 %v1518
    %1534 = vmatpush.msra.mxu0 %v1517
    %1535 = vmatpush.msra.mxu0 %v1516
    %1536 = vmatpush.msra.mxu0 %v1515
    %1537 = vmatpush.msra.mxu0 %v1514
    %1538 = vmatpush.msra.mxu0 %v1513
    %1539 = vmatpush.msra.mxu0 %v1512
    %1540 = vmatpush.msra.mxu0 %v1511
    %1541 = vmatpush.msra.mxu0 %v1510
    %1542 = vmatmul.f32.gmra.mxu0 %v1509
    %v1543 = vpop.f32.mrf.mxu0
    %v1544 = vadd.f32 0.0, %v1543
    %1545 = vdwg.mxu0
    %v1546 = vmul.f32 %v1544, 0.0078125
    %v1547 = vmul.f32 %v1546, %v1546
    %v1549 = vrot.slane %v1547, 6
    %v1551 = vsub.f32 %v1546, %v1549
    %v1552 = vmax.f32 %v1551, 0.0
    %v1553 = vadd.f32 %v1552, 1e-05
    %v1554 = vrsqrt.pop %v1553
    %v1555 = vmul.f32 %v1554, %v1553
    %v1556 = vmul.f32 %v1555, %v1554
    %v1557 = vmul.f32 0.5, %v1556
    %v1558 = vsub.f32 1.5, %v1557
    %v1559 = vmul.f32 %v1554, %v1558
    %vm1560 = vweird.f32 %v1553
    %vm1561 = vweird.f32 %v1554
    %vm1562 = vmor %vm1560, %vm1561
    %v1563 = vsel %vm1562, %v1554, %v1559
    %v1564 = vsel %vm307, %v1546, %v1563
    %v1565 = vld [vmem:[#allocation13] sm:$0xff]
    %v1566 = vld [vmem:[#allocation13 + $0x8] sm:$0xff]
    %v1567 = vld [vmem:[#allocation13 + $0x10] sm:$0xff]
    %v1568 = vld [vmem:[#allocation13 + $0x18] sm:$0xff]
    %v1569 = vld [vmem:[#allocation13 + $0x20] sm:$0xff]
    %v1570 = vld [vmem:[#allocation13 + $0x28] sm:$0xff]
    %v1571 = vld [vmem:[#allocation13 + $0x30] sm:$0xff]
    %v1572 = vld [vmem:[#allocation13 + $0x38] sm:$0xff]
    %v1573 = vld [vmem:[#allocation13 + $0x40] sm:$0xff]
    %v1574 = vld [vmem:[#allocation13 + $0x48] sm:$0xff]
    %v1575 = vld [vmem:[#allocation13 + $0x50] sm:$0xff]
    %v1576 = vld [vmem:[#allocation13 + $0x58] sm:$0xff]
    %v1577 = vld [vmem:[#allocation13 + $0x60] sm:$0xff]
    %v1578 = vld [vmem:[#allocation13 + $0x68] sm:$0xff]
    %v1579 = vld [vmem:[#allocation13 + $0x70] sm:$0xff]
    %v1580 = vld [vmem:[#allocation13 + $0x78] sm:$0xff]
    %1581 = vmatpush.msra.mxu0 %v1580
    %1582 = vmatpush.msra.mxu0 %v1579
    %1583 = vmatpush.msra.mxu0 %v1578
    %1584 = vmatpush.msra.mxu0 %v1577
    %1585 = vmatpush.msra.mxu0 %v1576
    %1586 = vmatpush.msra.mxu0 %v1575
    %1587 = vmatpush.msra.mxu0 %v1574
    %1588 = vmatpush.msra.mxu0 %v1573
    %1589 = vmatpush.msra.mxu0 %v1572
    %1590 = vmatpush.msra.mxu0 %v1571
    %1591 = vmatpush.msra.mxu0 %v1570
    %1592 = vmatpush.msra.mxu0 %v1569
    %1593 = vmatpush.msra.mxu0 %v1568
    %1594 = vmatpush.msra.mxu0 %v1567
    %1595 = vmatpush.msra.mxu0 %v1566
    %1596 = vmatpush.msra.mxu0 %v1565
    %1597 = vmatmul.f32.gmra.mxu0 %v1564
    %v1598 = vpop.f32.mrf.mxu0
    %v1599 = vadd.f32 0.0, %v1598
    %1600 = vdwg.mxu0
    %v1602 = vrot.slane %v1599, 1
    %1603 = vst [vmem:[#allocation1] sm:$0xff] %v1599
    %s1604 = scalar_lea.vmem [#allocation1], 2
    %v1605 = vld [vmem:[%s1604] ss:$9 sm:$0xff]
    %s1606 = scalar_lea.vmem [#allocation1], 3
    %v1607 = vld [vmem:[%s1606] ss:$9 sm:$0xff]
    %v1610 = vperm.slane %v1599, 0
    %v1611 = vperm.slane %v1602, 0
    %v1614 = vsub.f32 %v1409, %v1610
    %v1615 = vsub.f32 %v1410, %v1610
    %v1616 = vsub.f32 %v1411, %v1610
    %v1617 = vsub.f32 %v1412, %v1610
    %v1618 = vsub.f32 %v1413, %v1610
    %v1619 = vsub.f32 %v1414, %v1610
    %v1620 = vsub.f32 %v1415, %v1610
    %v1621 = vsub.f32 %v1416, %v1610
    %v1622 = vsub.f32 %v1417, %v1610
    %v1623 = vsub.f32 %v1418, %v1611
    %v1624 = vsub.f32 %v1419, %v1611
    %v1625 = vsub.f32 %v1420, %v1611
    %v1626 = vsub.f32 %v1421, %v1611
    %v1627 = vsub.f32 %v1422, %v1611
    %v1628 = vsub.f32 %v1423, %v1611
    %v1629 = vsub.f32 %v1424, %v1611
    %v1630 = vsub.f32 %v1425, %v1611
    %v1631 = vsub.f32 %v1426, %v1611
    %v1632 = vld [vmem:[%s7] sm:$0x1]
    %v1633 = vmul.f32 %v1605, %v1632
    %v1634 = vmul.f32 %v1607, %v1632
    %v1637 = vperm.slane %v1633, 0
    %v1638 = vperm.slane %v1634, 0
    %v1641 = vmul.f32 %v1614, %v1637
    %v1642 = vmul.f32 %v1615, %v1637
    %v1643 = vmul.f32 %v1616, %v1637
    %v1644 = vmul.f32 %v1617, %v1637
    %v1645 = vmul.f32 %v1618, %v1637
    %v1646 = vmul.f32 %v1619, %v1637
    %v1647 = vmul.f32 %v1620, %v1637
    %v1648 = vmul.f32 %v1621, %v1637
    %v1649 = vmul.f32 %v1622, %v1637
    %v1650 = vmul.f32 %v1623, %v1638
    %v1651 = vmul.f32 %v1624, %v1638
    %v1652 = vmul.f32 %v1625, %v1638
    %v1653 = vmul.f32 %v1626, %v1638
    %v1654 = vmul.f32 %v1627, %v1638
    %v1655 = vmul.f32 %v1628, %v1638
    %v1656 = vmul.f32 %v1629, %v1638
    %v1657 = vmul.f32 %v1630, %v1638
    %v1658 = vmul.f32 %v1631, %v1638
    %v1659 = vld [vmem:[%s8] sm:$0x1]
    %v1661 = vperm.slane %v1659, 0
    %v1663 = vadd.f32 %v1641, %v1661
    %v1664 = vadd.f32 %v1642, %v1661
    %v1665 = vadd.f32 %v1643, %v1661
    %v1666 = vadd.f32 %v1644, %v1661
    %v1667 = vadd.f32 %v1645, %v1661
    %v1668 = vadd.f32 %v1646, %v1661
    %v1669 = vadd.f32 %v1647, %v1661
    %v1670 = vadd.f32 %v1648, %v1661
    %v1671 = vadd.f32 %v1649, %v1661
    %v1672 = vadd.f32 %v1650, %v1661
    %v1673 = vadd.f32 %v1651, %v1661
    %v1674 = vadd.f32 %v1652, %v1661
    %v1675 = vadd.f32 %v1653, %v1661
    %v1676 = vadd.f32 %v1654, %v1661
    %v1677 = vadd.f32 %v1655, %v1661
    %v1678 = vadd.f32 %v1656, %v1661
    %v1679 = vadd.f32 %v1657, %v1661
    %v1680 = vadd.f32 %v1658, %v1661
    %v1681 = vxor.u32 %v1663, 2147483648
    %v1682 = vxor.u32 %v1664, 2147483648
    %v1683 = vxor.u32 %v1665, 2147483648
    %v1684 = vxor.u32 %v1666, 2147483648
    %v1685 = vxor.u32 %v1667, 2147483648
    %v1686 = vxor.u32 %v1668, 2147483648
    %v1687 = vxor.u32 %v1669, 2147483648
    %v1688 = vxor.u32 %v1670, 2147483648
    %v1689 = vxor.u32 %v1671, 2147483648
    %v1690 = vxor.u32 %v1672, 2147483648
    %v1691 = vxor.u32 %v1673, 2147483648
    %v1692 = vxor.u32 %v1674, 2147483648
    %v1693 = vxor.u32 %v1675, 2147483648
    %v1694 = vxor.u32 %v1676, 2147483648
    %v1695 = vxor.u32 %v1677, 2147483648
    %v1696 = vxor.u32 %v1678, 2147483648
    %v1697 = vxor.u32 %v1679, 2147483648
    %v1698 = vxor.u32 %v1680, 2147483648
    %v1699 = vmul.f32 %v1681, 1.442695
    %v1700 = vpow.pop %v1699
    %v1701 = vmul.f32 %v1682, 1.442695
    %v1702 = vpow.pop %v1701
    %v1703 = vmul.f32 %v1683, 1.442695
    %v1704 = vpow.pop %v1703
    %v1705 = vmul.f32 %v1684, 1.442695
    %v1706 = vpow.pop %v1705
    %v1707 = vmul.f32 %v1685, 1.442695
    %v1708 = vpow.pop %v1707
    %v1709 = vmul.f32 %v1686, 1.442695
    %v1710 = vpow.pop %v1709
    %v1711 = vmul.f32 %v1687, 1.442695
    %v1712 = vpow.pop %v1711
    %v1713 = vmul.f32 %v1688, 1.442695
    %v1714 = vpow.pop %v1713
    %v1715 = vmul.f32 %v1689, 1.442695
    %v1716 = vpow.pop %v1715
    %v1717 = vmul.f32 %v1690, 1.442695
    %v1718 = vpow.pop %v1717
    %v1719 = vmul.f32 %v1691, 1.442695
    %v1720 = vpow.pop %v1719
    %v1721 = vmul.f32 %v1692, 1.442695
    %v1722 = vpow.pop %v1721
    %v1723 = vmul.f32 %v1693, 1.442695
    %v1724 = vpow.pop %v1723
    %v1725 = vmul.f32 %v1694, 1.442695
    %v1726 = vpow.pop %v1725
    %v1727 = vmul.f32 %v1695, 1.442695
    %v1728 = vpow.pop %v1727
    %v1729 = vmul.f32 %v1696, 1.442695
    %v1730 = vpow.pop %v1729
    %v1731 = vmul.f32 %v1697, 1.442695
    %v1732 = vpow.pop %v1731
    %v1733 = vmul.f32 %v1698, 1.442695
    %v1734 = vpow.pop %v1733
    %v1735 = vadd.f32 %v1700, 1.0
    %v1736 = vadd.f32 %v1702, 1.0
    %v1737 = vadd.f32 %v1704, 1.0
    %v1738 = vadd.f32 %v1706, 1.0
    %v1739 = vadd.f32 %v1708, 1.0
    %v1740 = vadd.f32 %v1710, 1.0
    %v1741 = vadd.f32 %v1712, 1.0
    %v1742 = vadd.f32 %v1714, 1.0
    %v1743 = vadd.f32 %v1716, 1.0
    %v1744 = vadd.f32 %v1718, 1.0
    %v1745 = vadd.f32 %v1720, 1.0
    %v1746 = vadd.f32 %v1722, 1.0
    %v1747 = vadd.f32 %v1724, 1.0
    %v1748 = vadd.f32 %v1726, 1.0
    %v1749 = vadd.f32 %v1728, 1.0
    %v1750 = vadd.f32 %v1730, 1.0
    %v1751 = vadd.f32 %v1732, 1.0
    %v1752 = vadd.f32 %v1734, 1.0
    %v1753 = vrcp.pop %v1735
    %v1754 = vmul.f32 %v1735, %v1753
    %v1755 = vsub.f32 1.0, %v1754
    %v1756 = vmul.f32 %v1753, %v1755
    %v1757 = vadd.f32 %v1753, %v1756
    %vm1758 = vweird.f32 %v1735
    %vm1759 = vweird.f32 %v1753
    %vm1760 = vmor %vm1758, %vm1759
    %v1761 = vsel %vm1760, %v1753, %v1757
    %v1762 = vand.u32 2147483647, %v1735
    %vm1763 = vcmp.eq.f32.partialorder %v1762, 8.507059e+37
    %v1764 = vand.u32 %v1735, 2147483648
    %v1765 = vor.u32 1.1754944e-38, %v1764
    %v1766 = vsel %vm1763, %v1765, %v1761
    %v1767 = vmul.f32 1.0, %v1766
    %v1768 = vrcp.pop %v1736
    %v1769 = vmul.f32 %v1736, %v1768
    %v1770 = vsub.f32 1.0, %v1769
    %v1771 = vmul.f32 %v1768, %v1770
    %v1772 = vadd.f32 %v1768, %v1771
    %vm1773 = vweird.f32 %v1736
    %vm1774 = vweird.f32 %v1768
    %vm1775 = vmor %vm1773, %vm1774
    %v1776 = vsel %vm1775, %v1768, %v1772
    %v1777 = vand.u32 2147483647, %v1736
    %vm1778 = vcmp.eq.f32.partialorder %v1777, 8.507059e+37
    %v1779 = vand.u32 %v1736, 2147483648
    %v1780 = vor.u32 1.1754944e-38, %v1779
    %v1781 = vsel %vm1778, %v1780, %v1776
    %v1782 = vmul.f32 1.0, %v1781
    %v1783 = vrcp.pop %v1737
    %v1784 = vmul.f32 %v1737, %v1783
    %v1785 = vsub.f32 1.0, %v1784
    %v1786 = vmul.f32 %v1783, %v1785
    %v1787 = vadd.f32 %v1783, %v1786
    %vm1788 = vweird.f32 %v1737
    %vm1789 = vweird.f32 %v1783
    %vm1790 = vmor %vm1788, %vm1789
    %v1791 = vsel %vm1790, %v1783, %v1787
    %v1792 = vand.u32 2147483647, %v1737
    %vm1793 = vcmp.eq.f32.partialorder %v1792, 8.507059e+37
    %v1794 = vand.u32 %v1737, 2147483648
    %v1795 = vor.u32 1.1754944e-38, %v1794
    %v1796 = vsel %vm1793, %v1795, %v1791
    %v1797 = vmul.f32 1.0, %v1796
    %v1798 = vrcp.pop %v1738
    %v1799 = vmul.f32 %v1738, %v1798
    %v1800 = vsub.f32 1.0, %v1799
    %v1801 = vmul.f32 %v1798, %v1800
    %v1802 = vadd.f32 %v1798, %v1801
    %vm1803 = vweird.f32 %v1738
    %vm1804 = vweird.f32 %v1798
    %vm1805 = vmor %vm1803, %vm1804
    %v1806 = vsel %vm1805, %v1798, %v1802
    %v1807 = vand.u32 2147483647, %v1738
    %vm1808 = vcmp.eq.f32.partialorder %v1807, 8.507059e+37
    %v1809 = vand.u32 %v1738, 2147483648
    %v1810 = vor.u32 1.1754944e-38, %v1809
    %v1811 = vsel %vm1808, %v1810, %v1806
    %v1812 = vmul.f32 1.0, %v1811
    %v1813 = vrcp.pop %v1739
    %v1814 = vmul.f32 %v1739, %v1813
    %v1815 = vsub.f32 1.0, %v1814
    %v1816 = vmul.f32 %v1813, %v1815
    %v1817 = vadd.f32 %v1813, %v1816
    %vm1818 = vweird.f32 %v1739
    %vm1819 = vweird.f32 %v1813
    %vm1820 = vmor %vm1818, %vm1819
    %v1821 = vsel %vm1820, %v1813, %v1817
    %v1822 = vand.u32 2147483647, %v1739
    %vm1823 = vcmp.eq.f32.partialorder %v1822, 8.507059e+37
    %v1824 = vand.u32 %v1739, 2147483648
    %v1825 = vor.u32 1.1754944e-38, %v1824
    %v1826 = vsel %vm1823, %v1825, %v1821
    %v1827 = vmul.f32 1.0, %v1826
    %v1828 = vrcp.pop %v1740
    %v1829 = vmul.f32 %v1740, %v1828
    %v1830 = vsub.f32 1.0, %v1829
    %v1831 = vmul.f32 %v1828, %v1830
    %v1832 = vadd.f32 %v1828, %v1831
    %vm1833 = vweird.f32 %v1740
    %vm1834 = vweird.f32 %v1828
    %vm1835 = vmor %vm1833, %vm1834
    %v1836 = vsel %vm1835, %v1828, %v1832
    %v1837 = vand.u32 2147483647, %v1740
    %vm1838 = vcmp.eq.f32.partialorder %v1837, 8.507059e+37
    %v1839 = vand.u32 %v1740, 2147483648
    %v1840 = vor.u32 1.1754944e-38, %v1839
    %v1841 = vsel %vm1838, %v1840, %v1836
    %v1842 = vmul.f32 1.0, %v1841
    %v1843 = vrcp.pop %v1741
    %v1844 = vmul.f32 %v1741, %v1843
    %v1845 = vsub.f32 1.0, %v1844
    %v1846 = vmul.f32 %v1843, %v1845
    %v1847 = vadd.f32 %v1843, %v1846
    %vm1848 = vweird.f32 %v1741
    %vm1849 = vweird.f32 %v1843
    %vm1850 = vmor %vm1848, %vm1849
    %v1851 = vsel %vm1850, %v1843, %v1847
    %v1852 = vand.u32 2147483647, %v1741
    %vm1853 = vcmp.eq.f32.partialorder %v1852, 8.507059e+37
    %v1854 = vand.u32 %v1741, 2147483648
    %v1855 = vor.u32 1.1754944e-38, %v1854
    %v1856 = vsel %vm1853, %v1855, %v1851
    %v1857 = vmul.f32 1.0, %v1856
    %v1858 = vrcp.pop %v1742
    %v1859 = vmul.f32 %v1742, %v1858
    %v1860 = vsub.f32 1.0, %v1859
    %v1861 = vmul.f32 %v1858, %v1860
    %v1862 = vadd.f32 %v1858, %v1861
    %vm1863 = vweird.f32 %v1742
    %vm1864 = vweird.f32 %v1858
    %vm1865 = vmor %vm1863, %vm1864
    %v1866 = vsel %vm1865, %v1858, %v1862
    %v1867 = vand.u32 2147483647, %v1742
    %vm1868 = vcmp.eq.f32.partialorder %v1867, 8.507059e+37
    %v1869 = vand.u32 %v1742, 2147483648
    %v1870 = vor.u32 1.1754944e-38, %v1869
    %v1871 = vsel %vm1868, %v1870, %v1866
    %v1872 = vmul.f32 1.0, %v1871
    %v1873 = vrcp.pop %v1743
    %v1874 = vmul.f32 %v1743, %v1873
    %v1875 = vsub.f32 1.0, %v1874
    %v1876 = vmul.f32 %v1873, %v1875
    %v1877 = vadd.f32 %v1873, %v1876
    %vm1878 = vweird.f32 %v1743
    %vm1879 = vweird.f32 %v1873
    %vm1880 = vmor %vm1878, %vm1879
    %v1881 = vsel %vm1880, %v1873, %v1877
    %v1882 = vand.u32 2147483647, %v1743
    %vm1883 = vcmp.eq.f32.partialorder %v1882, 8.507059e+37
    %v1884 = vand.u32 %v1743, 2147483648
    %v1885 = vor.u32 1.1754944e-38, %v1884
    %v1886 = vsel %vm1883, %v1885, %v1881
    %v1887 = vmul.f32 1.0, %v1886
    %v1888 = vrcp.pop %v1744
    %v1889 = vmul.f32 %v1744, %v1888
    %v1890 = vsub.f32 1.0, %v1889
    %v1891 = vmul.f32 %v1888, %v1890
    %v1892 = vadd.f32 %v1888, %v1891
    %vm1893 = vweird.f32 %v1744
    %vm1894 = vweird.f32 %v1888
    %vm1895 = vmor %vm1893, %vm1894
    %v1896 = vsel %vm1895, %v1888, %v1892
    %v1897 = vand.u32 2147483647, %v1744
    %vm1898 = vcmp.eq.f32.partialorder %v1897, 8.507059e+37
    %v1899 = vand.u32 %v1744, 2147483648
    %v1900 = vor.u32 1.1754944e-38, %v1899
    %v1901 = vsel %vm1898, %v1900, %v1896
    %v1902 = vmul.f32 1.0, %v1901
    %v1903 = vrcp.pop %v1745
    %v1904 = vmul.f32 %v1745, %v1903
    %v1905 = vsub.f32 1.0, %v1904
    %v1906 = vmul.f32 %v1903, %v1905
    %v1907 = vadd.f32 %v1903, %v1906
    %vm1908 = vweird.f32 %v1745
    %vm1909 = vweird.f32 %v1903
    %vm1910 = vmor %vm1908, %vm1909
    %v1911 = vsel %vm1910, %v1903, %v1907
    %v1912 = vand.u32 2147483647, %v1745
    %vm1913 = vcmp.eq.f32.partialorder %v1912, 8.507059e+37
    %v1914 = vand.u32 %v1745, 2147483648
    %v1915 = vor.u32 1.1754944e-38, %v1914
    %v1916 = vsel %vm1913, %v1915, %v1911
    %v1917 = vmul.f32 1.0, %v1916
    %v1918 = vrcp.pop %v1746
    %v1919 = vmul.f32 %v1746, %v1918
    %v1920 = vsub.f32 1.0, %v1919
    %v1921 = vmul.f32 %v1918, %v1920
    %v1922 = vadd.f32 %v1918, %v1921
    %vm1923 = vweird.f32 %v1746
    %vm1924 = vweird.f32 %v1918
    %vm1925 = vmor %vm1923, %vm1924
    %v1926 = vsel %vm1925, %v1918, %v1922
    %v1927 = vand.u32 2147483647, %v1746
    %vm1928 = vcmp.eq.f32.partialorder %v1927, 8.507059e+37
    %v1929 = vand.u32 %v1746, 2147483648
    %v1930 = vor.u32 1.1754944e-38, %v1929
    %v1931 = vsel %vm1928, %v1930, %v1926
    %v1932 = vmul.f32 1.0, %v1931
    %v1933 = vrcp.pop %v1747
    %v1934 = vmul.f32 %v1747, %v1933
    %v1935 = vsub.f32 1.0, %v1934
    %v1936 = vmul.f32 %v1933, %v1935
    %v1937 = vadd.f32 %v1933, %v1936
    %vm1938 = vweird.f32 %v1747
    %vm1939 = vweird.f32 %v1933
    %vm1940 = vmor %vm1938, %vm1939
    %v1941 = vsel %vm1940, %v1933, %v1937
    %v1942 = vand.u32 2147483647, %v1747
    %vm1943 = vcmp.eq.f32.partialorder %v1942, 8.507059e+37
    %v1944 = vand.u32 %v1747, 2147483648
    %v1945 = vor.u32 1.1754944e-38, %v1944
    %v1946 = vsel %vm1943, %v1945, %v1941
    %v1947 = vmul.f32 1.0, %v1946
    %v1948 = vrcp.pop %v1748
    %v1949 = vmul.f32 %v1748, %v1948
    %v1950 = vsub.f32 1.0, %v1949
    %v1951 = vmul.f32 %v1948, %v1950
    %v1952 = vadd.f32 %v1948, %v1951
    %vm1953 = vweird.f32 %v1748
    %vm1954 = vweird.f32 %v1948
    %vm1955 = vmor %vm1953, %vm1954
    %v1956 = vsel %vm1955, %v1948, %v1952
    %v1957 = vand.u32 2147483647, %v1748
    %vm1958 = vcmp.eq.f32.partialorder %v1957, 8.507059e+37
    %v1959 = vand.u32 %v1748, 2147483648
    %v1960 = vor.u32 1.1754944e-38, %v1959
    %v1961 = vsel %vm1958, %v1960, %v1956
    %v1962 = vmul.f32 1.0, %v1961
    %v1963 = vrcp.pop %v1749
    %v1964 = vmul.f32 %v1749, %v1963
    %v1965 = vsub.f32 1.0, %v1964
    %v1966 = vmul.f32 %v1963, %v1965
    %v1967 = vadd.f32 %v1963, %v1966
    %vm1968 = vweird.f32 %v1749
    %vm1969 = vweird.f32 %v1963
    %vm1970 = vmor %vm1968, %vm1969
    %v1971 = vsel %vm1970, %v1963, %v1967
    %v1972 = vand.u32 2147483647, %v1749
    %vm1973 = vcmp.eq.f32.partialorder %v1972, 8.507059e+37
    %v1974 = vand.u32 %v1749, 2147483648
    %v1975 = vor.u32 1.1754944e-38, %v1974
    %v1976 = vsel %vm1973, %v1975, %v1971
    %v1977 = vmul.f32 1.0, %v1976
    %v1978 = vrcp.pop %v1750
    %v1979 = vmul.f32 %v1750, %v1978
    %v1980 = vsub.f32 1.0, %v1979
    %v1981 = vmul.f32 %v1978, %v1980
    %v1982 = vadd.f32 %v1978, %v1981
    %vm1983 = vweird.f32 %v1750
    %vm1984 = vweird.f32 %v1978
    %vm1985 = vmor %vm1983, %vm1984
    %v1986 = vsel %vm1985, %v1978, %v1982
    %v1987 = vand.u32 2147483647, %v1750
    %vm1988 = vcmp.eq.f32.partialorder %v1987, 8.507059e+37
    %v1989 = vand.u32 %v1750, 2147483648
    %v1990 = vor.u32 1.1754944e-38, %v1989
    %v1991 = vsel %vm1988, %v1990, %v1986
    %v1992 = vmul.f32 1.0, %v1991
    %v1993 = vrcp.pop %v1751
    %v1994 = vmul.f32 %v1751, %v1993
    %v1995 = vsub.f32 1.0, %v1994
    %v1996 = vmul.f32 %v1993, %v1995
    %v1997 = vadd.f32 %v1993, %v1996
    %vm1998 = vweird.f32 %v1751
    %vm1999 = vweird.f32 %v1993
    %vm2000 = vmor %vm1998, %vm1999
    %v2001 = vsel %vm2000, %v1993, %v1997
    %v2002 = vand.u32 2147483647, %v1751
    %vm2003 = vcmp.eq.f32.partialorder %v2002, 8.507059e+37
    %v2004 = vand.u32 %v1751, 2147483648
    %v2005 = vor.u32 1.1754944e-38, %v2004
    %v2006 = vsel %vm2003, %v2005, %v2001
    %v2007 = vmul.f32 1.0, %v2006
    %v2008 = vrcp.pop %v1752
    %v2009 = vmul.f32 %v1752, %v2008
    %v2010 = vsub.f32 1.0, %v2009
    %v2011 = vmul.f32 %v2008, %v2010
    %v2012 = vadd.f32 %v2008, %v2011
    %vm2013 = vweird.f32 %v1752
    %vm2014 = vweird.f32 %v2008
    %vm2015 = vmor %vm2013, %vm2014
    %v2016 = vsel %vm2015, %v2008, %v2012
    %v2017 = vand.u32 2147483647, %v1752
    %vm2018 = vcmp.eq.f32.partialorder %v2017, 8.507059e+37
    %v2019 = vand.u32 %v1752, 2147483648
    %v2020 = vor.u32 1.1754944e-38, %v2019
    %v2021 = vsel %vm2018, %v2020, %v2016
    %v2022 = vmul.f32 1.0, %v2021
    %v2023 = vmul.f32 %v1663, %v1767
    %v2024 = vmul.f32 %v1664, %v1782
    %v2025 = vmul.f32 %v1665, %v1797
    %v2026 = vmul.f32 %v1666, %v1812
    %v2027 = vmul.f32 %v1667, %v1827
    %v2028 = vmul.f32 %v1668, %v1842
    %v2029 = vmul.f32 %v1669, %v1857
    %v2030 = vmul.f32 %v1670, %v1872
    %v2031 = vmul.f32 %v1671, %v1887
    %v2032 = vmul.f32 %v1672, %v1902
    %v2033 = vmul.f32 %v1673, %v1917
    %v2034 = vmul.f32 %v1674, %v1932
    %v2035 = vmul.f32 %v1675, %v1947
    %v2036 = vmul.f32 %v1676, %v1962
    %v2037 = vmul.f32 %v1677, %v1977
    %v2038 = vmul.f32 %v1678, %v1992
    %v2039 = vmul.f32 %v1679, %v2007
    %v2040 = vmul.f32 %v1680, %v2022
    %v2041 = vmul.f32 %v2023, %v196
    %v2042 = vmul.f32 %v2024, %v197
    %v2043 = vmul.f32 %v2025, %v198
    %v2044 = vmul.f32 %v2026, %v199
    %v2045 = vmul.f32 %v2027, %v200
    %v2046 = vmul.f32 %v2028, %v201
    %v2047 = vmul.f32 %v2029, %v202
    %v2048 = vmul.f32 %v2030, %v203
    %v2049 = vmul.f32 %v2031, %v204
    %v2050 = vmul.f32 %v2032, %v196
    %v2051 = vmul.f32 %v2033, %v197
    %v2052 = vmul.f32 %v2034, %v198
    %v2053 = vmul.f32 %v2035, %v199
    %v2054 = vmul.f32 %v2036, %v200
    %v2055 = vmul.f32 %v2037, %v201
    %v2056 = vmul.f32 %v2038, %v202
    %v2057 = vmul.f32 %v2039, %v203
    %v2058 = vmul.f32 %v2040, %v204
    %v2077 = vrot.slane %v2041, 7
    %v2078 = vrot.slane %v2042, 7
    %v2079 = vsel %vm876, %v2077, %v2078
    %v2080 = vrot.slane %v2043, 7
    %v2081 = vsel %vm876, %v2078, %v2080
    %v2082 = vrot.slane %v2044, 7
    %v2083 = vsel %vm876, %v2080, %v2082
    %v2084 = vrot.slane %v2045, 7
    %v2085 = vsel %vm876, %v2082, %v2084
    %v2086 = vrot.slane %v2046, 7
    %v2087 = vsel %vm876, %v2084, %v2086
    %v2088 = vrot.slane %v2047, 7
    %v2089 = vsel %vm876, %v2086, %v2088
    %v2090 = vrot.slane %v2048, 7
    %v2091 = vsel %vm876, %v2088, %v2090
    %v2092 = vrot.slane %v2049, 7
    %v2093 = vsel %vm876, %v2090, %v2092
    %v2094 = vrot.slane %v2050, 7
    %v2095 = vsel %vm876, %v2092, %v2094
    %v2096 = vrot.slane %v2051, 7
    %v2097 = vsel %vm876, %v2094, %v2096
    %v2098 = vrot.slane %v2052, 7
    %v2099 = vsel %vm876, %v2096, %v2098
    %v2100 = vrot.slane %v2053, 7
    %v2101 = vsel %vm876, %v2098, %v2100
    %v2102 = vrot.slane %v2054, 7
    %v2103 = vsel %vm876, %v2100, %v2102
    %v2104 = vrot.slane %v2055, 7
    %v2105 = vsel %vm876, %v2102, %v2104
    %v2106 = vrot.slane %v2056, 7
    %v2107 = vsel %vm876, %v2104, %v2106
    %v2108 = vrot.slane %v2057, 7
    %v2109 = vsel %vm876, %v2106, %v2108
    %v2110 = vrot.slane %v2058, 7
    %v2111 = vsel %vm876, %v2108, %v2110
    %v2130 = vsel %vm876, 0.0, %v2077
    %v2131 = vrot.slane %v2041, 1
    %v2132 = vrot.slane %v2042, 1
    %v2133 = vsel %vm931, %v2131, %v2132
    %v2134 = vrot.slane %v2043, 1
    %v2135 = vsel %vm931, %v2132, %v2134
    %v2136 = vrot.slane %v2044, 1
    %v2137 = vsel %vm931, %v2134, %v2136
    %v2138 = vrot.slane %v2045, 1
    %v2139 = vsel %vm931, %v2136, %v2138
    %v2140 = vrot.slane %v2046, 1
    %v2141 = vsel %vm931, %v2138, %v2140
    %v2142 = vrot.slane %v2047, 1
    %v2143 = vsel %vm931, %v2140, %v2142
    %v2144 = vrot.slane %v2048, 1
    %v2145 = vsel %vm931, %v2142, %v2144
    %v2146 = vrot.slane %v2049, 1
    %v2147 = vsel %vm931, %v2144, %v2146
    %v2148 = vrot.slane %v2050, 1
    %v2149 = vsel %vm931, %v2146, %v2148
    %v2150 = vrot.slane %v2051, 1
    %v2151 = vsel %vm931, %v2148, %v2150
    %v2152 = vrot.slane %v2052, 1
    %v2153 = vsel %vm931, %v2150, %v2152
    %v2154 = vrot.slane %v2053, 1
    %v2155 = vsel %vm931, %v2152, %v2154
    %v2156 = vrot.slane %v2054, 1
    %v2157 = vsel %vm931, %v2154, %v2156
    %v2158 = vrot.slane %v2055, 1
    %v2159 = vsel %vm931, %v2156, %v2158
    %v2160 = vrot.slane %v2056, 1
    %v2161 = vsel %vm931, %v2158, %v2160
    %v2162 = vrot.slane %v2057, 1
    %v2163 = vsel %vm931, %v2160, %v2162
    %v2164 = vrot.slane %v2058, 1
    %v2165 = vsel %vm931, %v2162, %v2164
    %v2184 = vsel %vm931, %v2164, 0.0
    %v2185 = vpack.c.bf16 %v2042, %v2041
    %v2186 = vpack.c.bf16 %v2044, %v2043
    %v2187 = vpack.c.bf16 %v2046, %v2045
    %v2188 = vpack.c.bf16 %v2048, %v2047
    %v2189 = vpack.c.bf16 %v2050, %v2049
    %v2190 = vpack.c.bf16 %v2052, %v2051
    %v2191 = vpack.c.bf16 %v2054, %v2053
    %v2192 = vpack.c.bf16 %v2056, %v2055
    %v2193 = vpack.c.bf16 %v2058, %v2057
    %s2194 = scalar_lea.vmem [#allocation14], 64
    %v2195 = vld [vmem:[%s2194] sm:$0xf]
    %v2196 = vld [vmem:[%s2194 + $0x4] sm:$0xf]
    %v2197 = vld [vmem:[%s2194 + $0x8] sm:$0xf]
    %v2198 = vld [vmem:[%s2194 + $0xc] sm:$0xf]
    %v2199 = vld [vmem:[%s2194 + $0x10] sm:$0xf]
    %v2200 = vld [vmem:[%s2194 + $0x14] sm:$0xf]
    %v2201 = vld [vmem:[%s2194 + $0x18] sm:$0xf]
    %v2202 = vld [vmem:[%s2194 + $0x1c] sm:$0xf]
    %v2203 = vld [vmem:[%s2194 + $0x20] sm:$0xf]
    %v2204 = vld [vmem:[%s2194 + $0x24] sm:$0xf]
    %v2205 = vld [vmem:[%s2194 + $0x28] sm:$0xf]
    %v2206 = vld [vmem:[%s2194 + $0x2c] sm:$0xf]
    %v2207 = vld [vmem:[%s2194 + $0x30] sm:$0xf]
    %v2208 = vld [vmem:[%s2194 + $0x34] sm:$0xf]
    %v2209 = vld [vmem:[%s2194 + $0x38] sm:$0xf]
    %v2210 = vld [vmem:[%s2194 + $0x3c] sm:$0xf]
    %v2211 = vpack.c.bf16 %v2079, %v2130
    %v2212 = vpack.c.bf16 %v2083, %v2081
    %v2213 = vpack.c.bf16 %v2087, %v2085
    %v2214 = vpack.c.bf16 %v2091, %v2089
    %v2215 = vpack.c.bf16 %v2095, %v2093
    %v2216 = vpack.c.bf16 %v2099, %v2097
    %v2217 = vpack.c.bf16 %v2103, %v2101
    %v2218 = vpack.c.bf16 %v2107, %v2105
    %v2219 = vpack.c.bf16 %v2111, %v2109
    %v2220 = vld [vmem:[#allocation14] sm:$0xf]
    %v2221 = vld [vmem:[#allocation14 + $0x4] sm:$0xf]
    %v2222 = vld [vmem:[#allocation14 + $0x8] sm:$0xf]
    %v2223 = vld [vmem:[#allocation14 + $0xc] sm:$0xf]
    %v2224 = vld [vmem:[#allocation14 + $0x10] sm:$0xf]
    %v2225 = vld [vmem:[#allocation14 + $0x14] sm:$0xf]
    %v2226 = vld [vmem:[#allocation14 + $0x18] sm:$0xf]
    %v2227 = vld [vmem:[#allocation14 + $0x1c] sm:$0xf]
    %v2228 = vld [vmem:[#allocation14 + $0x20] sm:$0xf]
    %v2229 = vld [vmem:[#allocation14 + $0x24] sm:$0xf]
    %v2230 = vld [vmem:[#allocation14 + $0x28] sm:$0xf]
    %v2231 = vld [vmem:[#allocation14 + $0x2c] sm:$0xf]
    %v2232 = vld [vmem:[#allocation14 + $0x30] sm:$0xf]
    %v2233 = vld [vmem:[#allocation14 + $0x34] sm:$0xf]
    %v2234 = vld [vmem:[#allocation14 + $0x38] sm:$0xf]
    %v2235 = vld [vmem:[#allocation14 + $0x3c] sm:$0xf]
    %v2252 = vunpack.c.l.b16 %v2220
    %v2253 = vunpack.c.l.b16 %v2221
    %v2254 = vunpack.c.l.b16 %v2222
    %v2255 = vunpack.c.l.b16 %v2223
    %v2256 = vunpack.c.l.b16 %v2224
    %v2257 = vunpack.c.l.b16 %v2225
    %v2258 = vunpack.c.l.b16 %v2226
    %v2259 = vunpack.c.l.b16 %v2227
    %v2260 = vunpack.c.l.b16 %v2228
    %v2261 = vunpack.c.l.b16 %v2229
    %v2262 = vunpack.c.l.b16 %v2230
    %v2263 = vunpack.c.l.b16 %v2231
    %v2264 = vunpack.c.l.b16 %v2232
    %v2265 = vunpack.c.l.b16 %v2233
    %v2266 = vunpack.c.l.b16 %v2234
    %v2267 = vunpack.c.l.b16 %v2235
    %v2268 = vpack.c.b16 %v2253, %v2252
    %v2269 = vpack.c.b16 %v2255, %v2254
    %v2270 = vpack.c.b16 %v2257, %v2256
    %v2271 = vpack.c.b16 %v2259, %v2258
    %v2272 = vpack.c.b16 %v2261, %v2260
    %v2273 = vpack.c.b16 %v2263, %v2262
    %v2274 = vpack.c.b16 %v2265, %v2264
    %v2275 = vpack.c.b16 %v2267, %v2266
    %2284 = vmatpush.bf16.msra.mxu0 %v2275
    %2285 = vmatpush.bf16.msra.mxu0 %v2274
    %2286 = vmatpush.bf16.msra.mxu0 %v2273
    %2287 = vmatpush.bf16.msra.mxu0 %v2272
    %2288 = vmatpush.bf16.msra.mxu0 %v2271
    %2289 = vmatpush.bf16.msra.mxu0 %v2270
    %2290 = vmatpush.bf16.msra.mxu0 %v2269
    %2291 = vmatpush.bf16.msra.mxu0 %v2268
    %2292 = vmatmul.bf16.gmra.mxu0 %v2211
    %v2293 = vpop.f32.mrf.mxu0
    %v2294 = vadd.f32 0.0, %v2293
    %v2295 = vpop.f32.mrf.mxu0
    %v2296 = vadd.f32 0.0, %v2295
    %2297 = vmatmul.bf16.gmra.mxu0 %v2212
    %v2298 = vpop.f32.mrf.mxu0
    %v2299 = vadd.f32 0.0, %v2298
    %v2300 = vpop.f32.mrf.mxu0
    %v2301 = vadd.f32 0.0, %v2300
    %2302 = vmatmul.bf16.gmra.mxu0 %v2213
    %v2303 = vpop.f32.mrf.mxu0
    %v2304 = vadd.f32 0.0, %v2303
    %v2305 = vpop.f32.mrf.mxu0
    %v2306 = vadd.f32 0.0, %v2305
    %2307 = vmatmul.bf16.gmra.mxu0 %v2214
    %v2308 = vpop.f32.mrf.mxu0
    %v2309 = vadd.f32 0.0, %v2308
    %v2310 = vpop.f32.mrf.mxu0
    %v2311 = vadd.f32 0.0, %v2310
    %2312 = vmatmul.bf16.gmra.mxu0 %v2215
    %v2313 = vpop.f32.mrf.mxu0
    %v2314 = vadd.f32 0.0, %v2313
    %v2315 = vpop.f32.mrf.mxu0
    %v2316 = vadd.f32 0.0, %v2315
    %2317 = vmatmul.bf16.gmra.mxu0 %v2216
    %v2318 = vpop.f32.mrf.mxu0
    %v2319 = vadd.f32 0.0, %v2318
    %v2320 = vpop.f32.mrf.mxu0
    %v2321 = vadd.f32 0.0, %v2320
    %2322 = vmatmul.bf16.gmra.mxu0 %v2217
    %v2323 = vpop.f32.mrf.mxu0
    %v2324 = vadd.f32 0.0, %v2323
    %v2325 = vpop.f32.mrf.mxu0
    %v2326 = vadd.f32 0.0, %v2325
    %2327 = vmatmul.bf16.gmra.mxu0 %v2218
    %v2328 = vpop.f32.mrf.mxu0
    %v2329 = vadd.f32 0.0, %v2328
    %v2330 = vpop.f32.mrf.mxu0
    %v2331 = vadd.f32 0.0, %v2330
    %2332 = vmatmul.bf16.gmra.mxu0 %v2219
    %v2333 = vpop.f32.mrf.mxu0
    %v2334 = vadd.f32 0.0, %v2333
    %v2335 = vpop.f32.mrf.mxu0
    %v2336 = vadd.f32 0.0, %v2335
    %2337 = vdwg.mxu0
    %v2354 = vunpack.c.l.b16 %v2195
    %v2355 = vunpack.c.l.b16 %v2196
    %v2356 = vunpack.c.l.b16 %v2197
    %v2357 = vunpack.c.l.b16 %v2198
    %v2358 = vunpack.c.l.b16 %v2199
    %v2359 = vunpack.c.l.b16 %v2200
    %v2360 = vunpack.c.l.b16 %v2201
    %v2361 = vunpack.c.l.b16 %v2202
    %v2362 = vunpack.c.l.b16 %v2203
    %v2363 = vunpack.c.l.b16 %v2204
    %v2364 = vunpack.c.l.b16 %v2205
    %v2365 = vunpack.c.l.b16 %v2206
    %v2366 = vunpack.c.l.b16 %v2207
    %v2367 = vunpack.c.l.b16 %v2208
    %v2368 = vunpack.c.l.b16 %v2209
    %v2369 = vunpack.c.l.b16 %v2210
    %v2370 = vpack.c.b16 %v2355, %v2354
    %v2371 = vpack.c.b16 %v2357, %v2356
    %v2372 = vpack.c.b16 %v2359, %v2358
    %v2373 = vpack.c.b16 %v2361, %v2360
    %v2374 = vpack.c.b16 %v2363, %v2362
    %v2375 = vpack.c.b16 %v2365, %v2364
    %v2376 = vpack.c.b16 %v2367, %v2366
    %v2377 = vpack.c.b16 %v2369, %v2368
    %2386 = vmatpush.bf16.msra.mxu0 %v2377
    %2387 = vmatpush.bf16.msra.mxu0 %v2376
    %2388 = vmatpush.bf16.msra.mxu0 %v2375
    %2389 = vmatpush.bf16.msra.mxu0 %v2374
    %2390 = vmatpush.bf16.msra.mxu0 %v2373
    %2391 = vmatpush.bf16.msra.mxu0 %v2372
    %2392 = vmatpush.bf16.msra.mxu0 %v2371
    %2393 = vmatpush.bf16.msra.mxu0 %v2370
    %2394 = vmatmul.bf16.gmra.mxu0 %v2185
    %v2395 = vpop.f32.mrf.mxu0
    %v2396 = vadd.f32 %v2294, %v2395
    %v2397 = vpop.f32.mrf.mxu0
    %v2398 = vadd.f32 %v2296, %v2397
    %2399 = vmatmul.bf16.gmra.mxu0 %v2186
    %v2400 = vpop.f32.mrf.mxu0
    %v2401 = vadd.f32 %v2299, %v2400
    %v2402 = vpop.f32.mrf.mxu0
    %v2403 = vadd.f32 %v2301, %v2402
    %2404 = vmatmul.bf16.gmra.mxu0 %v2187
    %v2405 = vpop.f32.mrf.mxu0
    %v2406 = vadd.f32 %v2304, %v2405
    %v2407 = vpop.f32.mrf.mxu0
    %v2408 = vadd.f32 %v2306, %v2407
    %2409 = vmatmul.bf16.gmra.mxu0 %v2188
    %v2410 = vpop.f32.mrf.mxu0
    %v2411 = vadd.f32 %v2309, %v2410
    %v2412 = vpop.f32.mrf.mxu0
    %v2413 = vadd.f32 %v2311, %v2412
    %2414 = vmatmul.bf16.gmra.mxu0 %v2189
    %v2415 = vpop.f32.mrf.mxu0
    %v2416 = vadd.f32 %v2314, %v2415
    %v2417 = vpop.f32.mrf.mxu0
    %v2418 = vadd.f32 %v2316, %v2417
    %2419 = vmatmul.bf16.gmra.mxu0 %v2190
    %v2420 = vpop.f32.mrf.mxu0
    %v2421 = vadd.f32 %v2319, %v2420
    %v2422 = vpop.f32.mrf.mxu0
    %v2423 = vadd.f32 %v2321, %v2422
    %2424 = vmatmul.bf16.gmra.mxu0 %v2191
    %v2425 = vpop.f32.mrf.mxu0
    %v2426 = vadd.f32 %v2324, %v2425
    %v2427 = vpop.f32.mrf.mxu0
    %v2428 = vadd.f32 %v2326, %v2427
    %2429 = vmatmul.bf16.gmra.mxu0 %v2192
    %v2430 = vpop.f32.mrf.mxu0
    %v2431 = vadd.f32 %v2329, %v2430
    %v2432 = vpop.f32.mrf.mxu0
    %v2433 = vadd.f32 %v2331, %v2432
    %2434 = vmatmul.bf16.gmra.mxu0 %v2193
    %v2435 = vpop.f32.mrf.mxu0
    %v2436 = vadd.f32 %v2334, %v2435
    %v2437 = vpop.f32.mrf.mxu0
    %v2438 = vadd.f32 %v2336, %v2437
    %2439 = vdwg.mxu0
    %v2440 = vpack.c.bf16 %v2135, %v2133
    %v2441 = vpack.c.bf16 %v2139, %v2137
    %v2442 = vpack.c.bf16 %v2143, %v2141
    %v2443 = vpack.c.bf16 %v2147, %v2145
    %v2444 = vpack.c.bf16 %v2151, %v2149
    %v2445 = vpack.c.bf16 %v2155, %v2153
    %v2446 = vpack.c.bf16 %v2159, %v2157
    %v2447 = vpack.c.bf16 %v2163, %v2161
    %v2448 = vpack.c.bf16 %v2184, %v2165
    %s2449 = scalar_lea.vmem [#allocation14], 128
    %v2450 = vld [vmem:[%s2449] sm:$0xf]
    %v2451 = vld [vmem:[%s2449 + $0x4] sm:$0xf]
    %v2452 = vld [vmem:[%s2449 + $0x8] sm:$0xf]
    %v2453 = vld [vmem:[%s2449 + $0xc] sm:$0xf]
    %v2454 = vld [vmem:[%s2449 + $0x10] sm:$0xf]
    %v2455 = vld [vmem:[%s2449 + $0x14] sm:$0xf]
    %v2456 = vld [vmem:[%s2449 + $0x18] sm:$0xf]
    %v2457 = vld [vmem:[%s2449 + $0x1c] sm:$0xf]
    %v2458 = vld [vmem:[%s2449 + $0x20] sm:$0xf]
    %v2459 = vld [vmem:[%s2449 + $0x24] sm:$0xf]
    %v2460 = vld [vmem:[%s2449 + $0x28] sm:$0xf]
    %v2461 = vld [vmem:[%s2449 + $0x2c] sm:$0xf]
    %v2462 = vld [vmem:[%s2449 + $0x30] sm:$0xf]
    %v2463 = vld [vmem:[%s2449 + $0x34] sm:$0xf]
    %v2464 = vld [vmem:[%s2449 + $0x38] sm:$0xf]
    %v2465 = vld [vmem:[%s2449 + $0x3c] sm:$0xf]
    %v2482 = vunpack.c.l.b16 %v2450
    %v2483 = vunpack.c.l.b16 %v2451
    %v2484 = vunpack.c.l.b16 %v2452
    %v2485 = vunpack.c.l.b16 %v2453
    %v2486 = vunpack.c.l.b16 %v2454
    %v2487 = vunpack.c.l.b16 %v2455
    %v2488 = vunpack.c.l.b16 %v2456
    %v2489 = vunpack.c.l.b16 %v2457
    %v2490 = vunpack.c.l.b16 %v2458
    %v2491 = vunpack.c.l.b16 %v2459
    %v2492 = vunpack.c.l.b16 %v2460
    %v2493 = vunpack.c.l.b16 %v2461
    %v2494 = vunpack.c.l.b16 %v2462
    %v2495 = vunpack.c.l.b16 %v2463
    %v2496 = vunpack.c.l.b16 %v2464
    %v2497 = vunpack.c.l.b16 %v2465
    %v2498 = vpack.c.b16 %v2483, %v2482
    %v2499 = vpack.c.b16 %v2485, %v2484
    %v2500 = vpack.c.b16 %v2487, %v2486
    %v2501 = vpack.c.b16 %v2489, %v2488
    %v2502 = vpack.c.b16 %v2491, %v2490
    %v2503 = vpack.c.b16 %v2493, %v2492
    %v2504 = vpack.c.b16 %v2495, %v2494
    %v2505 = vpack.c.b16 %v2497, %v2496
    %2514 = vmatpush.bf16.msra.mxu0 %v2505
    %2515 = vmatpush.bf16.msra.mxu0 %v2504
    %2516 = vmatpush.bf16.msra.mxu0 %v2503
    %2517 = vmatpush.bf16.msra.mxu0 %v2502
    %2518 = vmatpush.bf16.msra.mxu0 %v2501
    %2519 = vmatpush.bf16.msra.mxu0 %v2500
    %2520 = vmatpush.bf16.msra.mxu0 %v2499
    %2521 = vmatpush.bf16.msra.mxu0 %v2498
    %2522 = vmatmul.bf16.gmra.mxu0 %v2440
    %v2523 = vpop.f32.mrf.mxu0
    %v2524 = vadd.f32 0.0, %v2523
    %v2525 = vpop.f32.mrf.mxu0
    %v2526 = vadd.f32 0.0, %v2525
    %2527 = vmatmul.bf16.gmra.mxu0 %v2441
    %v2528 = vpop.f32.mrf.mxu0
    %v2529 = vadd.f32 0.0, %v2528
    %v2530 = vpop.f32.mrf.mxu0
    %v2531 = vadd.f32 0.0, %v2530
    %2532 = vmatmul.bf16.gmra.mxu0 %v2442
    %v2533 = vpop.f32.mrf.mxu0
    %v2534 = vadd.f32 0.0, %v2533
    %v2535 = vpop.f32.mrf.mxu0
    %v2536 = vadd.f32 0.0, %v2535
    %2537 = vmatmul.bf16.gmra.mxu0 %v2443
    %v2538 = vpop.f32.mrf.mxu0
    %v2539 = vadd.f32 0.0, %v2538
    %v2540 = vpop.f32.mrf.mxu0
    %v2541 = vadd.f32 0.0, %v2540
    %2542 = vmatmul.bf16.gmra.mxu0 %v2444
    %v2543 = vpop.f32.mrf.mxu0
    %v2544 = vadd.f32 0.0, %v2543
    %v2545 = vpop.f32.mrf.mxu0
    %v2546 = vadd.f32 0.0, %v2545
    %2547 = vmatmul.bf16.gmra.mxu0 %v2445
    %v2548 = vpop.f32.mrf.mxu0
    %v2549 = vadd.f32 0.0, %v2548
    %v2550 = vpop.f32.mrf.mxu0
    %v2551 = vadd.f32 0.0, %v2550
    %2552 = vmatmul.bf16.gmra.mxu0 %v2446
    %v2553 = vpop.f32.mrf.mxu0
    %v2554 = vadd.f32 0.0, %v2553
    %v2555 = vpop.f32.mrf.mxu0
    %v2556 = vadd.f32 0.0, %v2555
    %2557 = vmatmul.bf16.gmra.mxu0 %v2447
    %v2558 = vpop.f32.mrf.mxu0
    %v2559 = vadd.f32 0.0, %v2558
    %v2560 = vpop.f32.mrf.mxu0
    %v2561 = vadd.f32 0.0, %v2560
    %2562 = vmatmul.bf16.gmra.mxu0 %v2448
    %v2563 = vpop.f32.mrf.mxu0
    %v2564 = vadd.f32 0.0, %v2563
    %v2565 = vpop.f32.mrf.mxu0
    %v2566 = vadd.f32 0.0, %v2565
    %2567 = vdwg.mxu0
    %v2568 = vadd.f32 %v2396, %v2524
    %v2569 = vadd.f32 %v2398, %v2526
    %v2570 = vadd.f32 %v2401, %v2529
    %v2571 = vadd.f32 %v2403, %v2531
    %v2572 = vadd.f32 %v2406, %v2534
    %v2573 = vadd.f32 %v2408, %v2536
    %v2574 = vadd.f32 %v2411, %v2539
    %v2575 = vadd.f32 %v2413, %v2541
    %v2576 = vadd.f32 %v2416, %v2544
    %v2577 = vadd.f32 %v2418, %v2546
    %v2578 = vadd.f32 %v2421, %v2549
    %v2579 = vadd.f32 %v2423, %v2551
    %v2580 = vadd.f32 %v2426, %v2554
    %v2581 = vadd.f32 %v2428, %v2556
    %v2582 = vadd.f32 %v2431, %v2559
    %v2583 = vadd.f32 %v2433, %v2561
    %v2584 = vadd.f32 %v2436, %v2564
    %v2585 = vadd.f32 %v2438, %v2566
    %v2586 = vld [vmem:[%s12] sm:$0x1]
    %v2588 = vperm.slane %v2586, 0
    %v2590 = vadd.f32 %v2568, %v2588
    %v2591 = vadd.f32 %v2569, %v2588
    %v2592 = vadd.f32 %v2570, %v2588
    %v2593 = vadd.f32 %v2571, %v2588
    %v2594 = vadd.f32 %v2572, %v2588
    %v2595 = vadd.f32 %v2573, %v2588
    %v2596 = vadd.f32 %v2574, %v2588
    %v2597 = vadd.f32 %v2575, %v2588
    %v2598 = vadd.f32 %v2576, %v2588
    %v2599 = vadd.f32 %v2577, %v2588
    %v2600 = vadd.f32 %v2578, %v2588
    %v2601 = vadd.f32 %v2579, %v2588
    %v2602 = vadd.f32 %v2580, %v2588
    %v2603 = vadd.f32 %v2581, %v2588
    %v2604 = vadd.f32 %v2582, %v2588
    %v2605 = vadd.f32 %v2583, %v2588
    %v2606 = vadd.f32 %v2584, %v2588
    %v2607 = vadd.f32 %v2585, %v2588
    %v2608 = vadd.f32 %v205, %v2590
    %v2609 = vadd.f32 %v206, %v2591
    %v2610 = vadd.f32 %v207, %v2592
    %v2611 = vadd.f32 %v208, %v2593
    %v2612 = vadd.f32 %v209, %v2594
    %v2613 = vadd.f32 %v210, %v2595
    %v2614 = vadd.f32 %v211, %v2596
    %v2615 = vadd.f32 %v212, %v2597
    %v2616 = vadd.f32 %v213, %v2598
    %v2617 = vadd.f32 %v214, %v2599
    %v2618 = vadd.f32 %v215, %v2600
    %v2619 = vadd.f32 %v216, %v2601
    %v2620 = vadd.f32 %v217, %v2602
    %v2621 = vadd.f32 %v218, %v2603
    %v2622 = vadd.f32 %v219, %v2604
    %v2623 = vadd.f32 %v220, %v2605
    %v2624 = vadd.f32 %v221, %v2606
    %v2625 = vadd.f32 %v222, %v2607
    %2626 = vst [vmem:[#allocation16] sm:$0xff] %v2608
    %2627 = vst [vmem:[#allocation16 + $0x8] sm:$0xff] %v2609
    %2628 = vst [vmem:[#allocation16 + $0x10] sm:$0xff] %v2610
    %2629 = vst [vmem:[#allocation16 + $0x18] sm:$0xff] %v2611
    %2630 = vst [vmem:[#allocation16 + $0x20] sm:$0xff] %v2612
    %2631 = vst [vmem:[#allocation16 + $0x28] sm:$0xff] %v2613
    %2632 = vst [vmem:[#allocation16 + $0x30] sm:$0xff] %v2614
    %2633 = vst [vmem:[#allocation16 + $0x38] sm:$0xff] %v2615
    %2634 = vst [vmem:[#allocation16 + $0x40] sm:$0xff] %v2616
    %2635 = vst [vmem:[#allocation16 + $0x48] sm:$0xff] %v2617
    %2636 = vst [vmem:[#allocation16 + $0x50] sm:$0xff] %v2618
    %2637 = vst [vmem:[#allocation16 + $0x58] sm:$0xff] %v2619
    %2638 = vst [vmem:[#allocation16 + $0x60] sm:$0xff] %v2620
    %2639 = vst [vmem:[#allocation16 + $0x68] sm:$0xff] %v2621
    %2640 = vst [vmem:[#allocation16 + $0x70] sm:$0xff] %v2622
    %2641 = vst [vmem:[#allocation16 + $0x78] sm:$0xff] %v2623
    %2642 = vst [vmem:[#allocation16 + $0x80] sm:$0xff] %v2624
    %2643 = vst [vmem:[#allocation16 + $0x88] sm:$0xff] %v2625
    // Predicated region
    $region86: #{tpu_custom_call.1} parent=1 // pred_check
      _
    $region87: #{tpu_custom_call.1} parent=1 // pred_check_branch
      %2645 = sbr.rel (0) target = $region89
    $region88: #{tpu_custom_call.1} parent=1 // pred_region
      %2647 = vsyncadd [#allocation4], 0
      %s2648 = sshll.u32 [#allocation16], 4
      %s2649 = int_to_ptr.vmem [resolvable:$true] %s2648
      %s2650 = sshll.u32 %s13, 4
      %s2651 = int_to_ptr.hbm [resolvable:$true] %s2650
      %2656 = dma.vmem_to_hbm [thread:$0]  %s2649, 2304, %s2651, [#allocation4], 128, 128, 8
    $region89: #{tpu_custom_call.1} parent=1 // pred_fallthru
      _
    // Predicated region
    $region90: #{tpu_custom_call.1} parent=1 // pred_check
      _
    $region91: #{tpu_custom_call.1} parent=1 // pred_check_branch
      %2658 = sbr.rel (0) target = $region93
    $region92: #{tpu_custom_call.1} parent=1 // pred_region
      %2660 = dma.done [#allocation4], 2304
    $region93: #{tpu_custom_call.1} parent=1 // pred_fallthru
      _
    %2661 = vsyncpa [#allocation3], 1
    %2662 = vsyncpa [#allocation6], 1
    %2663 = vsyncpa [#allocation9], 1
    %2664 = vsyncpa [#allocation12], 1
    %2665 = vsyncpa [#allocation15], 1
    %2666 = vsyncpa [#allocation4], 1

// kernel: tpu_custom_call.1
$region0: #{tpu_custom_call.1}
  #allocation0 [shape = 'u32[]', space=smem, size = 0x4, offset = 0x4, fixed_abs, tag = 'smem constant byte address 0x4 - core index']
  #allocation1 [shape = 'u32[72,128]{1,0:T(1,128)}', space=vmem, size = 0x9000, scoped, tag = 'internal scratch']
  %s0 = inlined_call_operand.hbm [shape: f32[2,72,128], index: 0, kind: input, shape index: {}]
  %s1 = inlined_call_operand.hbm [shape: f32[1,128], index: 1, kind: input, shape index: {}]
  %s2 = inlined_call_operand.vmem [shape: f32[1,128], index: 2, kind: input, shape index: {}]
  %s3 = inlined_call_operand.hbm [shape: f32[128,128], index: 3, kind: input, shape index: {}]
  %s4 = inlined_call_operand.hbm [shape: f32[128,128], index: 4, kind: input, shape index: {}]
  %s5 = inlined_call_operand.hbm [shape: bf16[3,128,128], index: 5, kind: input, shape index: {}]
  %s6 = inlined_call_operand.vmem [shape: f32[1,128], index: 6, kind: input, shape index: {}]
  %s7 = inlined_call_operand.vmem [shape: f32[1,128], index: 7, kind: input, shape index: {}]
  %s8 = inlined_call_operand.vmem [shape: f32[1,128], index: 8, kind: input, shape index: {}]
  %s9 = inlined_call_operand.hbm [shape: f32[128,128], index: 9, kind: input, shape index: {}]
  %s10 = inlined_call_operand.hbm [shape: f32[128,128], index: 10, kind: input, shape index: {}]
  %s11 = inlined_call_operand.hbm [shape: bf16[3,128,128], index: 11, kind: input, shape index: {}]
  %s12 = inlined_call_operand.vmem [shape: f32[1,128], index: 12, kind: input, shape index: {}]
  %s13 = inlined_call_operand.hbm [shape: f32[2,72,128], index: 13, kind: output, shape index: {}]
  %s14 = sld [smem:[#allocation0]]
  $region94: #{tpu_custom_call.1} parent=0
    _
  %s16 = ssub.s32 1, %s14
  %s17 = scalar_select 0, %s16, %s14
  $region1: #{tpu_custom_call.1} parent=0
    #allocation2 [shape = 'u8[73728]{0}', space=vmem, size = 0x12000, scoped, tag = 'input window, operand 0, single buffered']
    #allocation3 [shape = 's32[1]{0}', space=sflag, size = 0x4, scoped, tag = 'scoped memory for tpu_custom_call.1']
    #allocation4 [shape = 's32[1]{0}', space=sflag, size = 0x4, scoped, tag = 'scoped memory for tpu_custom_call.1']
    #allocation5 [shape = 'u8[512]{0}', space=vmem, size = 0x400, scoped, tag = 'input window, operand 1, single buffered']
    #allocation6 [shape = 's32[1]{0}', space=sflag, size = 0x4, scoped, tag = 'scoped memory for tpu_custom_call.1']
    #allocation7 [shape = 'u8[65536]{0}', space=vmem, size = 0x10000, scoped, tag = 'input window, operand 3, single buffered']
    #allocation8 [shape = 'u8[65536]{0}', space=vmem, size = 0x10000, scoped, tag = 'input window, operand 4, single buffered']
    #allocation9 [shape = 's32[1]{0}', space=sflag, size = 0x4, scoped, tag = 'scoped memory for tpu_custom_call.1']
    #allocation10 [shape = 'u8[98304]{0}', space=vmem, size = 0x18000, scoped, tag = 'input window, operand 5, single buffered']
    #allocation11 [shape = 'u8[65536]{0}', space=vmem, size = 0x10000, scoped, tag = 'input window, operand 9, single buffered']
    #allocation12 [shape = 's32[1]{0}', space=sflag, size = 0x4, scoped, tag = 'scoped memory for tpu_custom_call.1']
    #allocation13 [shape = 'u8[65536]{0}', space=vmem, size = 0x10000, scoped, tag = 'input window, operand 10, single buffered']
    #allocation14 [shape = 'u8[98304]{0}', space=vmem, size = 0x18000, scoped, tag = 'input window, operand 11, single buffered']
    #allocation15 [shape = 's32[1]{0}', space=sflag, size = 0x4, scoped, tag = 'scoped memory for tpu_custom_call.1']
    #allocation16 [shape = 'u8[73728]{0}', space=vmem, size = 0x12000, scoped, tag = 'output window, operand 0, single buffered']
    %18 = vsyncpa [#allocation3], 0
    %19 = vsyncpa [#allocation6], 0
    %20 = vsyncpa [#allocation9], 0
    %21 = vsyncpa [#allocation12], 0
    %22 = vsyncpa [#allocation15], 0
    %23 = vsyncpa [#allocation4], 0
    // Predicated region
    $region2: #{tpu_custom_call.1} parent=1 // pred_check
      _
    $region3: #{tpu_custom_call.1} parent=1 // pred_check_branch
      %25 = sbr.rel (0) target = $region5
    $region4: #{tpu_custom_call.1} parent=1 // pred_region
      %27 = vsyncadd [#allocation3], 0
      %s28 = sshll.u32 %s0, 4
      %s29 = int_to_ptr.hbm [resolvable:$true] %s28
      %s30 = sshll.u32 [#allocation2], 4
      %s31 = int_to_ptr.vmem [resolvable:$true] %s30
      %36 = dma.hbm_to_vmem [thread:$0]  %s29, 2304, %s31, [#allocation3], 128, 128, 8
    $region5: #{tpu_custom_call.1} parent=1 // pred_fallthru
      _
    // Predicated region
    $region6: #{tpu_custom_call.1} parent=1 // pred_check
      _
    $region7: #{tpu_custom_call.1} parent=1 // pred_check_branch
      %38 = sbr.rel (0) target = $region9
    $region8: #{tpu_custom_call.1} parent=1 // pred_region
      %40 = vsyncadd [#allocation6], 0
      %s42 = sshll.u32 %s1, 4
      %s43 = int_to_ptr.hbm [resolvable:$true] %s42
      %s44 = sshll.u32 [#allocation5], 4
      %s45 = int_to_ptr.vmem [resolvable:$true] %s44
      %47 = dma.hbm_to_vmem [thread:$0]  %s43, 16, %s45, [#allocation6]
    $region9: #{tpu_custom_call.1} parent=1 // pred_fallthru
      _
    // Predicated region
    $region10: #{tpu_custom_call.1} parent=1 // pred_check
      _
    $region11: #{tpu_custom_call.1} parent=1 // pred_check_branch
      %49 = sbr.rel (0) target = $region13
    $region12: #{tpu_custom_call.1} parent=1 // pred_region
      _
    $region13: #{tpu_custom_call.1} parent=1 // pred_fallthru
      _
    // Predicated region
    $region14: #{tpu_custom_call.1} parent=1 // pred_check
      _
    $region15: #{tpu_custom_call.1} parent=1 // pred_check_branch
      %51 = sbr.rel (0) target = $region17
    $region16: #{tpu_custom_call.1} parent=1 // pred_region
      %53 = vsyncadd [#allocation6], 0
      %s54 = sshll.u32 %s3, 4
      %s55 = int_to_ptr.hbm [resolvable:$true] %s54
      %s56 = sshll.u32 [#allocation7], 4
      %s57 = int_to_ptr.vmem [resolvable:$true] %s56
      %62 = dma.hbm_to_vmem [thread:$0]  %s55, 2048, %s57, [#allocation6], 128, 128, 8
    $region17: #{tpu_custom_call.1} parent=1 // pred_fallthru
      _
    // Predicated region
    $region18: #{tpu_custom_call.1} parent=1 // pred_check
      _
    $region19: #{tpu_custom_call.1} parent=1 // pred_check_branch
      %64 = sbr.rel (0) target = $region21
    $region20: #{tpu_custom_call.1} parent=1 // pred_region
      %66 = vsyncadd [#allocation9], 0
      %s67 = sshll.u32 %s4, 4
      %s68 = int_to_ptr.hbm [resolvable:$true] %s67
      %s69 = sshll.u32 [#allocation8], 4
      %s70 = int_to_ptr.vmem [resolvable:$true] %s69
      %75 = dma.hbm_to_vmem [thread:$0]  %s68, 2048, %s70, [#allocation9], 128, 128, 8
    $region21: #{tpu_custom_call.1} parent=1 // pred_fallthru
      _
    // Predicated region
    $region22: #{tpu_custom_call.1} parent=1 // pred_check
      _
    $region23: #{tpu_custom_call.1} parent=1 // pred_check_branch
      %77 = sbr.rel (0) target = $region25
    $region24: #{tpu_custom_call.1} parent=1 // pred_region
      %79 = vsyncadd [#allocation9], 0
      %s80 = sshll.u32 %s5, 4
      %s81 = int_to_ptr.hbm [resolvable:$true] %s80
      %s82 = sshll.u32 [#allocation10], 4
      %s83 = int_to_ptr.vmem [resolvable:$true] %s82
      %88 = dma.hbm_to_vmem [thread:$0]  %s81, 3072, %s83, [#allocation9], 64, 64, 4
    $region25: #{tpu_custom_call.1} parent=1 // pred_fallthru
      _
    // Predicated region
    $region26: #{tpu_custom_call.1} parent=1 // pred_check
      _
    $region27: #{tpu_custom_call.1} parent=1 // pred_check_branch
      %90 = sbr.rel (0) target = $region29
    $region28: #{tpu_custom_call.1} parent=1 // pred_region
      _
    $region29: #{tpu_custom_call.1} parent=1 // pred_fallthru
      _
    // Predicated region
    $region30: #{tpu_custom_call.1} parent=1 // pred_check
      _
    $region31: #{tpu_custom_call.1} parent=1 // pred_check_branch
      %92 = sbr.rel (0) target = $region33
    $region32: #{tpu_custom_call.1} parent=1 // pred_region
      _
    $region33: #{tpu_custom_call.1} parent=1 // pred_fallthru
      _
    // Predicated region
    $region34: #{tpu_custom_call.1} parent=1 // pred_check
      _
    $region35: #{tpu_custom_call.1} parent=1 // pred_check_branch
      %94 = sbr.rel (0) target = $region37
    $region36: #{tpu_custom_call.1} parent=1 // pred_region
      _
    $region37: #{tpu_custom_call.1} parent=1 // pred_fallthru
      _
    // Predicated region
    $region38: #{tpu_custom_call.1} parent=1 // pred_check
      _
    $region39: #{tpu_custom_call.1} parent=1 // pred_check_branch
      %96 = sbr.rel (0) target = $region41
    $region40: #{tpu_custom_call.1} parent=1 // pred_region
      %98 = vsyncadd [#allocation12], 0
      %s99 = sshll.u32 %s9, 4
      %s100 = int_to_ptr.hbm [resolvable:$true] %s99
      %s101 = sshll.u32 [#allocation11], 4
      %s102 = int_to_ptr.vmem [resolvable:$true] %s101
      %107 = dma.hbm_to_vmem [thread:$0]  %s100, 2048, %s102, [#allocation12], 128, 128, 8
    $region41: #{tpu_custom_call.1} parent=1 // pred_fallthru
      _
    // Predicated region
    $region42: #{tpu_custom_call.1} parent=1 // pred_check
      _
    $region43: #{tpu_custom_call.1} parent=1 // pred_check_branch
      %109 = sbr.rel (0) target = $region45
    $region44: #{tpu_custom_call.1} parent=1 // pred_region
      %111 = vsyncadd [#allocation12], 0
      %s112 = sshll.u32 %s10, 4
      %s113 = int_to_ptr.hbm [resolvable:$true] %s112
      %s114 = sshll.u32 [#allocation13], 4
      %s115 = int_to_ptr.vmem [resolvable:$true] %s114
      %120 = dma.hbm_to_vmem [thread:$0]  %s113, 2048, %s115, [#allocation12], 128, 128, 8
    $region45: #{tpu_custom_call.1} parent=1 // pred_fallthru
      _
    // Predicated region
    $region46: #{tpu_custom_call.1} parent=1 // pred_check
      _
    $region47: #{tpu_custom_call.1} parent=1 // pred_check_branch
      %122 = sbr.rel (0) target = $region49
    $region48: #{tpu_custom_call.1} parent=1 // pred_region
      %124 = vsyncadd [#allocation15], 0
      %s125 = sshll.u32 %s11, 4
      %s126 = int_to_ptr.hbm [resolvable:$true] %s125
      %s127 = sshll.u32 [#allocation14], 4
      %s128 = int_to_ptr.vmem [resolvable:$true] %s127
      %133 = dma.hbm_to_vmem [thread:$0]  %s126, 3072, %s128, [#allocation15], 64, 64, 4
    $region49: #{tpu_custom_call.1} parent=1 // pred_fallthru
      _
    // Predicated region
    $region50: #{tpu_custom_call.1} parent=1 // pred_check
      _
    $region51: #{tpu_custom_call.1} parent=1 // pred_check_branch
      %135 = sbr.rel (0) target = $region53
    $region52: #{tpu_custom_call.1} parent=1 // pred_region
      _
    $region53: #{tpu_custom_call.1} parent=1 // pred_fallthru
      _
    // Predicated region
    $region54: #{tpu_custom_call.1} parent=1 // pred_check
      _
    $region55: #{tpu_custom_call.1} parent=1 // pred_check_branch
      %137 = sbr.rel (0) target = $region57
    $region56: #{tpu_custom_call.1} parent=1 // pred_region
      %139 = dma.done [#allocation3], 2304
    $region57: #{tpu_custom_call.1} parent=1 // pred_fallthru
      _
    // Predicated region
    $region58: #{tpu_custom_call.1} parent=1 // pred_check
      _
    $region59: #{tpu_custom_call.1} parent=1 // pred_check_branch
      %141 = sbr.rel (0) target = $region61
    $region60: #{tpu_custom_call.1} parent=1 // pred_region
      %143 = dma.done [#allocation6], 16
    $region61: #{tpu_custom_call.1} parent=1 // pred_fallthru
      _
    // Predicated region
    $region62: #{tpu_custom_call.1} parent=1 // pred_check
      _
    $region63: #{tpu_custom_call.1} parent=1 // pred_check_branch
      %145 = sbr.rel (0) target = $region65
    $region64: #{tpu_custom_call.1} parent=1 // pred_region
      %147 = dma.done [#allocation6], 2048
    $region65: #{tpu_custom_call.1} parent=1 // pred_fallthru
      _
    // Predicated region
    $region66: #{tpu_custom_call.1} parent=1 // pred_check
      _
    $region67: #{tpu_custom_call.1} parent=1 // pred_check_branch
      %149 = sbr.rel (0) target = $region69
    $region68: #{tpu_custom_call.1} parent=1 // pred_region
      %151 = dma.done [#allocation9], 2048
    $region69: #{tpu_custom_call.1} parent=1 // pred_fallthru
      _
    // Predicated region
    $region70: #{tpu_custom_call.1} parent=1 // pred_check
      _
    $region71: #{tpu_custom_call.1} parent=1 // pred_check_branch
      %153 = sbr.rel (0) target = $region73
    $region72: #{tpu_custom_call.1} parent=1 // pred_region
      %155 = dma.done [#allocation9], 3072
    $region73: #{tpu_custom_call.1} parent=1 // pred_fallthru
      _
    // Predicated region
    $region74: #{tpu_custom_call.1} parent=1 // pred_check
      _
    $region75: #{tpu_custom_call.1} parent=1 // pred_check_branch
      %157 = sbr.rel (0) target = $region77
    $region76: #{tpu_custom_call.1} parent=1 // pred_region
      %159 = dma.done [#allocation12], 2048
    $region77: #{tpu_custom_call.1} parent=1 // pred_fallthru
      _
    // Predicated region
    $region78: #{tpu_custom_call.1} parent=1 // pred_check
      _
    $region79: #{tpu_custom_call.1} parent=1 // pred_check_branch
      %161 = sbr.rel (0) target = $region81
    $region80: #{tpu_custom_call.1} parent=1 // pred_region
      %163 = dma.done [#allocation12], 2048
    $region81: #{tpu_custom_call.1} parent=1 // pred_fallthru
      _
    // Predicated region
    $region82: #{tpu_custom_call.1} parent=1 // pred_check
      _
    $region83: #{tpu_custom_call.1} parent=1 // pred_check_branch
      %165 = sbr.rel (0) target = $region85
    $region84: #{tpu_custom_call.1} parent=1 // pred_region
      %167 = dma.done [#allocation15], 3072
    $region85: #{tpu_custom_call.1} parent=1 // pred_fallthru
      _
    %v168 = vlaneseq
    %v169 = vshrl.u32 %v168, 7
    %v170 = vadd.s32 %v169, 8
    %v171 = vadd.s32 %v169, 16
    %v172 = vadd.s32 %v169, 24
    %v173 = vadd.s32 %v169, 32
    %v174 = vadd.s32 %v169, 40
    %v175 = vadd.s32 %v169, 48
    %v176 = vadd.s32 %v169, 56
    %v177 = vadd.s32 %v169, 64
    %vm178 = vcmp.lt.s32.totalorder %v169, 64
    %vm179 = vcmp.lt.s32.totalorder %v170, 64
    %vm180 = vcmp.lt.s32.totalorder %v171, 64
    %vm181 = vcmp.lt.s32.totalorder %v172, 64
    %vm182 = vcmp.lt.s32.totalorder %v173, 64
    %vm183 = vcmp.lt.s32.totalorder %v174, 64
    %vm184 = vcmp.lt.s32.totalorder %v175, 64
    %vm185 = vcmp.lt.s32.totalorder %v176, 64
    %vm186 = vcmp.lt.s32.totalorder %v177, 64
    %v187 = vsel %vm178, 1, 0
    %v188 = vsel %vm179, 1, 0
    %v189 = vsel %vm180, 1, 0
    %v190 = vsel %vm181, 1, 0
    %v191 = vsel %vm182, 1, 0
    %v192 = vsel %vm183, 1, 0
    %v193 = vsel %vm184, 1, 0
    %v194 = vsel %vm185, 1, 0
    %v195 = vsel %vm186, 1, 0
    %v196 = vcvt.s32.f32 %v187
    %v197 = vcvt.s32.f32 %v188
    %v198 = vcvt.s32.f32 %v189
    %v199 = vcvt.s32.f32 %v190
    %v200 = vcvt.s32.f32 %v191
    %v201 = vcvt.s32.f32 %v192
    %v202 = vcvt.s32.f32 %v193
    %v203 = vcvt.s32.f32 %v194
    %v204 = vcvt.s32.f32 %v195
    %v205 = vld [vmem:[#allocation2] sm:$0xff]
    %v206 = vld [vmem:[#allocation2 + $0x8] sm:$0xff]
    %v207 = vld [vmem:[#allocation2 + $0x10] sm:$0xff]
    %v208 = vld [vmem:[#allocation2 + $0x18] sm:$0xff]
    %v209 = vld [vmem:[#allocation2 + $0x20] sm:$0xff]
    %v210 = vld [vmem:[#allocation2 + $0x28] sm:$0xff]
    %v211 = vld [vmem:[#allocation2 + $0x30] sm:$0xff]
    %v212 = vld [vmem:[#allocation2 + $0x38] sm:$0xff]
    %v213 = vld [vmem:[#allocation2 + $0x40] sm:$0xff]
    %v214 = vld [vmem:[#allocation2 + $0x48] sm:$0xff]
    %v215 = vld [vmem:[#allocation2 + $0x50] sm:$0xff]
    %v216 = vld [vmem:[#allocation2 + $0x58] sm:$0xff]
    %v217 = vld [vmem:[#allocation2 + $0x60] sm:$0xff]
    %v218 = vld [vmem:[#allocation2 + $0x68] sm:$0xff]
    %v219 = vld [vmem:[#allocation2 + $0x70] sm:$0xff]
    %v220 = vld [vmem:[#allocation2 + $0x78] sm:$0xff]
    %v221 = vld [vmem:[#allocation2 + $0x80] sm:$0xff]
    %v222 = vld [vmem:[#allocation2 + $0x88] sm:$0xff]
    %v223 = vadd.f32 %v205, %v206
    %v224 = vadd.f32 %v223, %v207
    %v225 = vadd.f32 %v224, %v208
    %v226 = vadd.f32 %v225, %v209
    %v227 = vadd.f32 %v226, %v210
    %v228 = vadd.f32 %v227, %v211
    %v229 = vadd.f32 %v228, %v212
    %v230 = vadd.f32 %v229, %v213
    %v231 = vrot.slane %v230, 4
    %v232 = vadd.f32 %v230, %v231
    %v233 = vrot.slane %v232, 2
    %v234 = vadd.f32 %v232, %v233
    %v235 = vrot.slane %v234, 1
    %v236 = vadd.f32 %v234, %v235
    %v237 = vadd.f32 %v214, %v215
    %v238 = vadd.f32 %v237, %v216
    %v239 = vadd.f32 %v238, %v217
    %v240 = vadd.f32 %v239, %v218
    %v241 = vadd.f32 %v240, %v219
    %v242 = vadd.f32 %v241, %v220
    %v243 = vadd.f32 %v242, %v221
    %v244 = vadd.f32 %v243, %v222
    %v245 = vrot.slane %v244, 4
    %v246 = vadd.f32 %v244, %v245
    %v247 = vrot.slane %v246, 2
    %v248 = vadd.f32 %v246, %v247
    %v249 = vrot.slane %v248, 1
    %v250 = vadd.f32 %v248, %v249
    %v251 = vmul.f32 %v205, %v205
    %v252 = vmul.f32 %v206, %v206
    %v253 = vmul.f32 %v207, %v207
    %v254 = vmul.f32 %v208, %v208
    %v255 = vmul.f32 %v209, %v209
    %v256 = vmul.f32 %v210, %v210
    %v257 = vmul.f32 %v211, %v211
    %v258 = vmul.f32 %v212, %v212
    %v259 = vmul.f32 %v213, %v213
    %v260 = vmul.f32 %v214, %v214
    %v261 = vmul.f32 %v215, %v215
    %v262 = vmul.f32 %v216, %v216
    %v263 = vmul.f32 %v217, %v217
    %v264 = vmul.f32 %v218, %v218
    %v265 = vmul.f32 %v219, %v219
    %v266 = vmul.f32 %v220, %v220
    %v267 = vmul.f32 %v221, %v221
    %v268 = vmul.f32 %v222, %v222
    %v269 = vadd.f32 %v251, %v252
    %v270 = vadd.f32 %v269, %v253
    %v271 = vadd.f32 %v270, %v254
    %v272 = vadd.f32 %v271, %v255
    %v273 = vadd.f32 %v272, %v256
    %v274 = vadd.f32 %v273, %v257
    %v275 = vadd.f32 %v274, %v258
    %v276 = vadd.f32 %v275, %v259
    %v277 = vrot.slane %v276, 4
    %v278 = vadd.f32 %v276, %v277
    %v279 = vrot.slane %v278, 2
    %v280 = vadd.f32 %v278, %v279
    %v281 = vrot.slane %v280, 1
    %v282 = vadd.f32 %v280, %v281
    %v283 = vadd.f32 %v260, %v261
    %v284 = vadd.f32 %v283, %v262
    %v285 = vadd.f32 %v284, %v263
    %v286 = vadd.f32 %v285, %v264
    %v287 = vadd.f32 %v286, %v265
    %v288 = vadd.f32 %v287, %v266
    %v289 = vadd.f32 %v288, %v267
    %v290 = vadd.f32 %v289, %v268
    %v291 = vrot.slane %v290, 4
    %v292 = vadd.f32 %v290, %v291
    %v293 = vrot.slane %v292, 2
    %v294 = vadd.f32 %v292, %v293
    %v295 = vrot.slane %v294, 1
    %v296 = vadd.f32 %v294, %v295
    %vm299 = vcmask 1041409
    %v300 = vsel %vm299, %v250, %v236
    %vm304 = vcmask 1043459
    %v305 = vsel %vm304, %v296, %v282
    %vm307 = vcmask 1041408
    %v308 = vsel %vm307, %v300, %v305
    %v309 = vld [vmem:[#allocation7] sm:$0xff]
    %v310 = vld [vmem:[#allocation7 + $0x8] sm:$0xff]
    %v311 = vld [vmem:[#allocation7 + $0x10] sm:$0xff]
    %v312 = vld [vmem:[#allocation7 + $0x18] sm:$0xff]
    %v313 = vld [vmem:[#allocation7 + $0x20] sm:$0xff]
    %v314 = vld [vmem:[#allocation7 + $0x28] sm:$0xff]
    %v315 = vld [vmem:[#allocation7 + $0x30] sm:$0xff]
    %v316 = vld [vmem:[#allocation7 + $0x38] sm:$0xff]
    %v317 = vld [vmem:[#allocation7 + $0x40] sm:$0xff]
    %v318 = vld [vmem:[#allocation7 + $0x48] sm:$0xff]
    %v319 = vld [vmem:[#allocation7 + $0x50] sm:$0xff]
    %v320 = vld [vmem:[#allocation7 + $0x58] sm:$0xff]
    %v321 = vld [vmem:[#allocation7 + $0x60] sm:$0xff]
    %v322 = vld [vmem:[#allocation7 + $0x68] sm:$0xff]
    %v323 = vld [vmem:[#allocation7 + $0x70] sm:$0xff]
    %v324 = vld [vmem:[#allocation7 + $0x78] sm:$0xff]
    %325 = vmatpush.msra.mxu0 %v324
    %326 = vmatpush.msra.mxu0 %v323
    %327 = vmatpush.msra.mxu0 %v322
    %328 = vmatpush.msra.mxu0 %v321
    %329 = vmatpush.msra.mxu0 %v320
    %330 = vmatpush.msra.mxu0 %v319
    %331 = vmatpush.msra.mxu0 %v318
    %332 = vmatpush.msra.mxu0 %v317
    %333 = vmatpush.msra.mxu0 %v316
    %334 = vmatpush.msra.mxu0 %v315
    %335 = vmatpush.msra.mxu0 %v314
    %336 = vmatpush.msra.mxu0 %v313
    %337 = vmatpush.msra.mxu0 %v312
    %338 = vmatpush.msra.mxu0 %v311
    %339 = vmatpush.msra.mxu0 %v310
    %340 = vmatpush.msra.mxu0 %v309
    %341 = vmatmul.f32.gmra.mxu0 %v308
    %v342 = vpop.f32.mrf.mxu0
    %v343 = vadd.f32 0.0, %v342
    %344 = vdwg.mxu0
    %v345 = vmul.f32 %v343, 0.0078125
    %v346 = vmul.f32 %v345, %v345
    %v348 = vrot.slane %v346, 6
    %v350 = vsub.f32 %v345, %v348
    %v351 = vmax.f32 %v350, 0.0
    %v352 = vadd.f32 %v351, 1e-05
    %v353 = vrsqrt.pop %v352
    %v354 = vmul.f32 %v353, %v352
    %v355 = vmul.f32 %v354, %v353
    %v356 = vmul.f32 0.5, %v355
    %v357 = vsub.f32 1.5, %v356
    %v358 = vmul.f32 %v353, %v357
    %vm359 = vweird.f32 %v352
    %vm360 = vweird.f32 %v353
    %vm361 = vmor %vm359, %vm360
    %v362 = vsel %vm361, %v353, %v358
    %v363 = vsel %vm307, %v345, %v362
    %v364 = vld [vmem:[#allocation8] sm:$0xff]
    %v365 = vld [vmem:[#allocation8 + $0x8] sm:$0xff]
    %v366 = vld [vmem:[#allocation8 + $0x10] sm:$0xff]
    %v367 = vld [vmem:[#allocation8 + $0x18] sm:$0xff]
    %v368 = vld [vmem:[#allocation8 + $0x20] sm:$0xff]
    %v369 = vld [vmem:[#allocation8 + $0x28] sm:$0xff]
    %v370 = vld [vmem:[#allocation8 + $0x30] sm:$0xff]
    %v371 = vld [vmem:[#allocation8 + $0x38] sm:$0xff]
    %v372 = vld [vmem:[#allocation8 + $0x40] sm:$0xff]
    %v373 = vld [vmem:[#allocation8 + $0x48] sm:$0xff]
    %v374 = vld [vmem:[#allocation8 + $0x50] sm:$0xff]
    %v375 = vld [vmem:[#allocation8 + $0x58] sm:$0xff]
    %v376 = vld [vmem:[#allocation8 + $0x60] sm:$0xff]
    %v377 = vld [vmem:[#allocation8 + $0x68] sm:$0xff]
    %v378 = vld [vmem:[#allocation8 + $0x70] sm:$0xff]
    %v379 = vld [vmem:[#allocation8 + $0x78] sm:$0xff]
    %380 = vmatpush.msra.mxu0 %v379
    %381 = vmatpush.msra.mxu0 %v378
    %382 = vmatpush.msra.mxu0 %v377
    %383 = vmatpush.msra.mxu0 %v376
    %384 = vmatpush.msra.mxu0 %v375
    %385 = vmatpush.msra.mxu0 %v374
    %386 = vmatpush.msra.mxu0 %v373
    %387 = vmatpush.msra.mxu0 %v372
    %388 = vmatpush.msra.mxu0 %v371
    %389 = vmatpush.msra.mxu0 %v370
    %390 = vmatpush.msra.mxu0 %v369
    %391 = vmatpush.msra.mxu0 %v368
    %392 = vmatpush.msra.mxu0 %v367
    %393 = vmatpush.msra.mxu0 %v366
    %394 = vmatpush.msra.mxu0 %v365
    %395 = vmatpush.msra.mxu0 %v364
    %396 = vmatmul.f32.gmra.mxu0 %v363
    %v397 = vpop.f32.mrf.mxu0
    %v398 = vadd.f32 0.0, %v397
    %399 = vdwg.mxu0
    %v401 = vrot.slane %v398, 1
    %402 = vst [vmem:[#allocation1] sm:$0xff] %v398
    %s403 = scalar_lea.vmem [#allocation1], 2
    %v404 = vld [vmem:[%s403] ss:$9 sm:$0xff]
    %s405 = scalar_lea.vmem [#allocation1], 3
    %v406 = vld [vmem:[%s405] ss:$9 sm:$0xff]
    %v409 = vperm.slane %v398, 0
    %v410 = vperm.slane %v401, 0
    %v413 = vsub.f32 %v205, %v409
    %v414 = vsub.f32 %v206, %v409
    %v415 = vsub.f32 %v207, %v409
    %v416 = vsub.f32 %v208, %v409
    %v417 = vsub.f32 %v209, %v409
    %v418 = vsub.f32 %v210, %v409
    %v419 = vsub.f32 %v211, %v409
    %v420 = vsub.f32 %v212, %v409
    %v421 = vsub.f32 %v213, %v409
    %v422 = vsub.f32 %v214, %v410
    %v423 = vsub.f32 %v215, %v410
    %v424 = vsub.f32 %v216, %v410
    %v425 = vsub.f32 %v217, %v410
    %v426 = vsub.f32 %v218, %v410
    %v427 = vsub.f32 %v219, %v410
    %v428 = vsub.f32 %v220, %v410
    %v429 = vsub.f32 %v221, %v410
    %v430 = vsub.f32 %v222, %v410
    %v431 = vld [vmem:[#allocation5] sm:$0x1]
    %v432 = vmul.f32 %v404, %v431
    %v433 = vmul.f32 %v406, %v431
    %v436 = vperm.slane %v432, 0
    %v437 = vperm.slane %v433, 0
    %v440 = vmul.f32 %v413, %v436
    %v441 = vmul.f32 %v414, %v436
    %v442 = vmul.f32 %v415, %v436
    %v443 = vmul.f32 %v416, %v436
    %v444 = vmul.f32 %v417, %v436
    %v445 = vmul.f32 %v418, %v436
    %v446 = vmul.f32 %v419, %v436
    %v447 = vmul.f32 %v420, %v436
    %v448 = vmul.f32 %v421, %v436
    %v449 = vmul.f32 %v422, %v437
    %v450 = vmul.f32 %v423, %v437
    %v451 = vmul.f32 %v424, %v437
    %v452 = vmul.f32 %v425, %v437
    %v453 = vmul.f32 %v426, %v437
    %v454 = vmul.f32 %v427, %v437
    %v455 = vmul.f32 %v428, %v437
    %v456 = vmul.f32 %v429, %v437
    %v457 = vmul.f32 %v430, %v437
    %v458 = vld [vmem:[%s2] sm:$0x1]
    %v460 = vperm.slane %v458, 0
    %v462 = vadd.f32 %v440, %v460
    %v463 = vadd.f32 %v441, %v460
    %v464 = vadd.f32 %v442, %v460
    %v465 = vadd.f32 %v443, %v460
    %v466 = vadd.f32 %v444, %v460
    %v467 = vadd.f32 %v445, %v460
    %v468 = vadd.f32 %v446, %v460
    %v469 = vadd.f32 %v447, %v460
    %v470 = vadd.f32 %v448, %v460
    %v471 = vadd.f32 %v449, %v460
    %v472 = vadd.f32 %v450, %v460
    %v473 = vadd.f32 %v451, %v460
    %v474 = vadd.f32 %v452, %v460
    %v475 = vadd.f32 %v453, %v460
    %v476 = vadd.f32 %v454, %v460
    %v477 = vadd.f32 %v455, %v460
    %v478 = vadd.f32 %v456, %v460
    %v479 = vadd.f32 %v457, %v460
    %v480 = vxor.u32 %v462, 2147483648
    %v481 = vxor.u32 %v463, 2147483648
    %v482 = vxor.u32 %v464, 2147483648
    %v483 = vxor.u32 %v465, 2147483648
    %v484 = vxor.u32 %v466, 2147483648
    %v485 = vxor.u32 %v467, 2147483648
    %v486 = vxor.u32 %v468, 2147483648
    %v487 = vxor.u32 %v469, 2147483648
    %v488 = vxor.u32 %v470, 2147483648
    %v489 = vxor.u32 %v471, 2147483648
    %v490 = vxor.u32 %v472, 2147483648
    %v491 = vxor.u32 %v473, 2147483648
    %v492 = vxor.u32 %v474, 2147483648
    %v493 = vxor.u32 %v475, 2147483648
    %v494 = vxor.u32 %v476, 2147483648
    %v495 = vxor.u32 %v477, 2147483648
    %v496 = vxor.u32 %v478, 2147483648
    %v497 = vxor.u32 %v479, 2147483648
    %v498 = vmul.f32 %v480, 1.442695
    %v499 = vpow.pop %v498
    %v500 = vmul.f32 %v481, 1.442695
    %v501 = vpow.pop %v500
    %v502 = vmul.f32 %v482, 1.442695
    %v503 = vpow.pop %v502
    %v504 = vmul.f32 %v483, 1.442695
    %v505 = vpow.pop %v504
    %v506 = vmul.f32 %v484, 1.442695
    %v507 = vpow.pop %v506
    %v508 = vmul.f32 %v485, 1.442695
    %v509 = vpow.pop %v508
    %v510 = vmul.f32 %v486, 1.442695
    %v511 = vpow.pop %v510
    %v512 = vmul.f32 %v487, 1.442695
    %v513 = vpow.pop %v512
    %v514 = vmul.f32 %v488, 1.442695
    %v515 = vpow.pop %v514
    %v516 = vmul.f32 %v489, 1.442695
    %v517 = vpow.pop %v516
    %v518 = vmul.f32 %v490, 1.442695
    %v519 = vpow.pop %v518
    %v520 = vmul.f32 %v491, 1.442695
    %v521 = vpow.pop %v520
    %v522 = vmul.f32 %v492, 1.442695
    %v523 = vpow.pop %v522
    %v524 = vmul.f32 %v493, 1.442695
    %v525 = vpow.pop %v524
    %v526 = vmul.f32 %v494, 1.442695
    %v527 = vpow.pop %v526
    %v528 = vmul.f32 %v495, 1.442695
    %v529 = vpow.pop %v528
    %v530 = vmul.f32 %v496, 1.442695
    %v531 = vpow.pop %v530
    %v532 = vmul.f32 %v497, 1.442695
    %v533 = vpow.pop %v532
    %v534 = vadd.f32 %v499, 1.0
    %v535 = vadd.f32 %v501, 1.0
    %v536 = vadd.f32 %v503, 1.0
    %v537 = vadd.f32 %v505, 1.0
    %v538 = vadd.f32 %v507, 1.0
    %v539 = vadd.f32 %v509, 1.0
    %v540 = vadd.f32 %v511, 1.0
    %v541 = vadd.f32 %v513, 1.0
    %v542 = vadd.f32 %v515, 1.0
    %v543 = vadd.f32 %v517, 1.0
    %v544 = vadd.f32 %v519, 1.0
    %v545 = vadd.f32 %v521, 1.0
    %v546 = vadd.f32 %v523, 1.0
    %v547 = vadd.f32 %v525, 1.0
    %v548 = vadd.f32 %v527, 1.0
    %v549 = vadd.f32 %v529, 1.0
    %v550 = vadd.f32 %v531, 1.0
    %v551 = vadd.f32 %v533, 1.0
    %v552 = vrcp.pop %v534
    %v553 = vmul.f32 %v534, %v552
    %v554 = vsub.f32 1.0, %v553
    %v555 = vmul.f32 %v552, %v554
    %v556 = vadd.f32 %v552, %v555
    %vm557 = vweird.f32 %v534
    %vm558 = vweird.f32 %v552
    %vm559 = vmor %vm557, %vm558
    %v560 = vsel %vm559, %v552, %v556
    %v561 = vand.u32 2147483647, %v534
    %vm562 = vcmp.eq.f32.partialorder %v561, 8.507059e+37
    %v563 = vand.u32 %v534, 2147483648
    %v564 = vor.u32 1.1754944e-38, %v563
    %v565 = vsel %vm562, %v564, %v560
    %v566 = vmul.f32 1.0, %v565
    %v567 = vrcp.pop %v535
    %v568 = vmul.f32 %v535, %v567
    %v569 = vsub.f32 1.0, %v568
    %v570 = vmul.f32 %v567, %v569
    %v571 = vadd.f32 %v567, %v570
    %vm572 = vweird.f32 %v535
    %vm573 = vweird.f32 %v567
    %vm574 = vmor %vm572, %vm573
    %v575 = vsel %vm574, %v567, %v571
    %v576 = vand.u32 2147483647, %v535
    %vm577 = vcmp.eq.f32.partialorder %v576, 8.507059e+37
    %v578 = vand.u32 %v535, 2147483648
    %v579 = vor.u32 1.1754944e-38, %v578
    %v580 = vsel %vm577, %v579, %v575
    %v581 = vmul.f32 1.0, %v580
    %v582 = vrcp.pop %v536
    %v583 = vmul.f32 %v536, %v582
    %v584 = vsub.f32 1.0, %v583
    %v585 = vmul.f32 %v582, %v584
    %v586 = vadd.f32 %v582, %v585
    %vm587 = vweird.f32 %v536
    %vm588 = vweird.f32 %v582
    %vm589 = vmor %vm587, %vm588
    %v590 = vsel %vm589, %v582, %v586
    %v591 = vand.u32 2147483647, %v536
    %vm592 = vcmp.eq.f32.partialorder %v591, 8.507059e+37
    %v593 = vand.u32 %v536, 2147483648
    %v594 = vor.u32 1.1754944e-38, %v593
    %v595 = vsel %vm592, %v594, %v590
    %v596 = vmul.f32 1.0, %v595
    %v597 = vrcp.pop %v537
    %v598 = vmul.f32 %v537, %v597
    %v599 = vsub.f32 1.0, %v598
    %v600 = vmul.f32 %v597, %v599
    %v601 = vadd.f32 %v597, %v600
    %vm602 = vweird.f32 %v537
    %vm603 = vweird.f32 %v597
    %vm604 = vmor %vm602, %vm603
    %v605 = vsel %vm604, %v597, %v601
    %v606 = vand.u32 2147483647, %v537
    %vm607 = vcmp.eq.f32.partialorder %v606, 8.507059e+37
    %v608 = vand.u32 %v537, 2147483648
    %v609 = vor.u32 1.1754944e-38, %v608
    %v610 = vsel %vm607, %v609, %v605
    %v611 = vmul.f32 1.0, %v610
    %v612 = vrcp.pop %v538
    %v613 = vmul.f32 %v538, %v612
    %v614 = vsub.f32 1.0, %v613
    %v615 = vmul.f32 %v612, %v614
    %v616 = vadd.f32 %v612, %v615
    %vm617 = vweird.f32 %v538
    %vm618 = vweird.f32 %v612
    %vm619 = vmor %vm617, %vm618
    %v620 = vsel %vm619, %v612, %v616
    %v621 = vand.u32 2147483647, %v538
    %vm622 = vcmp.eq.f32.partialorder %v621, 8.507059e+37
    %v623 = vand.u32 %v538, 2147483648
    %v624 = vor.u32 1.1754944e-38, %v623
    %v625 = vsel %vm622, %v624, %v620
    %v626 = vmul.f32 1.0, %v625
    %v627 = vrcp.pop %v539
    %v628 = vmul.f32 %v539, %v627
    %v629 = vsub.f32 1.0, %v628
    %v630 = vmul.f32 %v627, %v629
    %v631 = vadd.f32 %v627, %v630
    %vm632 = vweird.f32 %v539
    %vm633 = vweird.f32 %v627
    %vm634 = vmor %vm632, %vm633
    %v635 = vsel %vm634, %v627, %v631
    %v636 = vand.u32 2147483647, %v539
    %vm637 = vcmp.eq.f32.partialorder %v636, 8.507059e+37
    %v638 = vand.u32 %v539, 2147483648
    %v639 = vor.u32 1.1754944e-38, %v638
    %v640 = vsel %vm637, %v639, %v635
    %v641 = vmul.f32 1.0, %v640
    %v642 = vrcp.pop %v540
    %v643 = vmul.f32 %v540, %v642
    %v644 = vsub.f32 1.0, %v643
    %v645 = vmul.f32 %v642, %v644
    %v646 = vadd.f32 %v642, %v645
    %vm647 = vweird.f32 %v540
    %vm648 = vweird.f32 %v642
    %vm649 = vmor %vm647, %vm648
    %v650 = vsel %vm649, %v642, %v646
    %v651 = vand.u32 2147483647, %v540
    %vm652 = vcmp.eq.f32.partialorder %v651, 8.507059e+37
    %v653 = vand.u32 %v540, 2147483648
    %v654 = vor.u32 1.1754944e-38, %v653
    %v655 = vsel %vm652, %v654, %v650
    %v656 = vmul.f32 1.0, %v655
    %v657 = vrcp.pop %v541
    %v658 = vmul.f32 %v541, %v657
    %v659 = vsub.f32 1.0, %v658
    %v660 = vmul.f32 %v657, %v659
    %v661 = vadd.f32 %v657, %v660
    %vm662 = vweird.f32 %v541
    %vm663 = vweird.f32 %v657
    %vm664 = vmor %vm662, %vm663
    %v665 = vsel %vm664, %v657, %v661
    %v666 = vand.u32 2147483647, %v541
    %vm667 = vcmp.eq.f32.partialorder %v666, 8.507059e+37
    %v668 = vand.u32 %v541, 2147483648
    %v669 = vor.u32 1.1754944e-38, %v668
    %v670 = vsel %vm667, %v669, %v665
    %v671 = vmul.f32 1.0, %v670
    %v672 = vrcp.pop %v542
    %v673 = vmul.f32 %v542, %v672
    %v674 = vsub.f32 1.0, %v673
    %v675 = vmul.f32 %v672, %v674
    %v676 = vadd.f32 %v672, %v675
    %vm677 = vweird.f32 %v542
    %vm678 = vweird.f32 %v672
    %vm679 = vmor %vm677, %vm678
    %v680 = vsel %vm679, %v672, %v676
    %v681 = vand.u32 2147483647, %v542
    %vm682 = vcmp.eq.f32.partialorder %v681, 8.507059e+37
    %v683 = vand.u32 %v542, 2147483648
    %v684 = vor.u32 1.1754944e-38, %v683
    %v685 = vsel %vm682, %v684, %v680
    %v686 = vmul.f32 1.0, %v685
    %v687 = vrcp.pop %v543
    %v688 = vmul.f32 %v543, %v687
    %v689 = vsub.f32 1.0, %v688
    %v690 = vmul.f32 %v687, %v689
    %v691 = vadd.f32 %v687, %v690
    %vm692 = vweird.f32 %v543
    %vm693 = vweird.f32 %v687
    %vm694 = vmor %vm692, %vm693
    %v695 = vsel %vm694, %v687, %v691
    %v696 = vand.u32 2147483647, %v543
    %vm697 = vcmp.eq.f32.partialorder %v696, 8.507059e+37
    %v698 = vand.u32 %v543, 2147483648
    %v699 = vor.u32 1.1754944e-38, %v698
    %v700 = vsel %vm697, %v699, %v695
    %v701 = vmul.f32 1.0, %v700
    %v702 = vrcp.pop %v544
    %v703 = vmul.f32 %v544, %v702
    %v704 = vsub.f32 1.0, %v703
    %v705 = vmul.f32 %v702, %v704
    %v706 = vadd.f32 %v702, %v705
    %vm707 = vweird.f32 %v544
    %vm708 = vweird.f32 %v702
    %vm709 = vmor %vm707, %vm708
    %v710 = vsel %vm709, %v702, %v706
    %v711 = vand.u32 2147483647, %v544
    %vm712 = vcmp.eq.f32.partialorder %v711, 8.507059e+37
    %v713 = vand.u32 %v544, 2147483648
    %v714 = vor.u32 1.1754944e-38, %v713
    %v715 = vsel %vm712, %v714, %v710
    %v716 = vmul.f32 1.0, %v715
    %v717 = vrcp.pop %v545
    %v718 = vmul.f32 %v545, %v717
    %v719 = vsub.f32 1.0, %v718
    %v720 = vmul.f32 %v717, %v719
    %v721 = vadd.f32 %v717, %v720
    %vm722 = vweird.f32 %v545
    %vm723 = vweird.f32 %v717
    %vm724 = vmor %vm722, %vm723
    %v725 = vsel %vm724, %v717, %v721
    %v726 = vand.u32 2147483647, %v545
    %vm727 = vcmp.eq.f32.partialorder %v726, 8.507059e+37
    %v728 = vand.u32 %v545, 2147483648
    %v729 = vor.u32 1.1754944e-38, %v728
    %v730 = vsel %vm727, %v729, %v725
    %v731 = vmul.f32 1.0, %v730
    %v732 = vrcp.pop %v546
    %v733 = vmul.f32 %v546, %v732
    %v734 = vsub.f32 1.0, %v733
    %v735 = vmul.f32 %v732, %v734
    %v736 = vadd.f32 %v732, %v735
    %vm737 = vweird.f32 %v546
    %vm738 = vweird.f32 %v732
    %vm739 = vmor %vm737, %vm738
    %v740 = vsel %vm739, %v732, %v736
    %v741 = vand.u32 2147483647, %v546
    %vm742 = vcmp.eq.f32.partialorder %v741, 8.507059e+37
    %v743 = vand.u32 %v546, 2147483648
    %v744 = vor.u32 1.1754944e-38, %v743
    %v745 = vsel %vm742, %v744, %v740
    %v746 = vmul.f32 1.0, %v745
    %v747 = vrcp.pop %v547
    %v748 = vmul.f32 %v547, %v747
    %v749 = vsub.f32 1.0, %v748
    %v750 = vmul.f32 %v747, %v749
    %v751 = vadd.f32 %v747, %v750
    %vm752 = vweird.f32 %v547
    %vm753 = vweird.f32 %v747
    %vm754 = vmor %vm752, %vm753
    %v755 = vsel %vm754, %v747, %v751
    %v756 = vand.u32 2147483647, %v547
    %vm757 = vcmp.eq.f32.partialorder %v756, 8.507059e+37
    %v758 = vand.u32 %v547, 2147483648
    %v759 = vor.u32 1.1754944e-38, %v758
    %v760 = vsel %vm757, %v759, %v755
    %v761 = vmul.f32 1.0, %v760
    %v762 = vrcp.pop %v548
    %v763 = vmul.f32 %v548, %v762
    %v764 = vsub.f32 1.0, %v763
    %v765 = vmul.f32 %v762, %v764
    %v766 = vadd.f32 %v762, %v765
    %vm767 = vweird.f32 %v548
    %vm768 = vweird.f32 %v762
    %vm769 = vmor %vm767, %vm768
    %v770 = vsel %vm769, %v762, %v766
    %v771 = vand.u32 2147483647, %v548
    %vm772 = vcmp.eq.f32.partialorder %v771, 8.507059e+37
    %v773 = vand.u32 %v548, 2147483648
    %v774 = vor.u32 1.1754944e-38, %v773
    %v775 = vsel %vm772, %v774, %v770
    %v776 = vmul.f32 1.0, %v775
    %v777 = vrcp.pop %v549
    %v778 = vmul.f32 %v549, %v777
    %v779 = vsub.f32 1.0, %v778
    %v780 = vmul.f32 %v777, %v779
    %v781 = vadd.f32 %v777, %v780
    %vm782 = vweird.f32 %v549
    %vm783 = vweird.f32 %v777
    %vm784 = vmor %vm782, %vm783
    %v785 = vsel %vm784, %v777, %v781
    %v786 = vand.u32 2147483647, %v549
    %vm787 = vcmp.eq.f32.partialorder %v786, 8.507059e+37
    %v788 = vand.u32 %v549, 2147483648
    %v789 = vor.u32 1.1754944e-38, %v788
    %v790 = vsel %vm787, %v789, %v785
    %v791 = vmul.f32 1.0, %v790
    %v792 = vrcp.pop %v550
    %v793 = vmul.f32 %v550, %v792
    %v794 = vsub.f32 1.0, %v793
    %v795 = vmul.f32 %v792, %v794
    %v796 = vadd.f32 %v792, %v795
    %vm797 = vweird.f32 %v550
    %vm798 = vweird.f32 %v792
    %vm799 = vmor %vm797, %vm798
    %v800 = vsel %vm799, %v792, %v796
    %v801 = vand.u32 2147483647, %v550
    %vm802 = vcmp.eq.f32.partialorder %v801, 8.507059e+37
    %v803 = vand.u32 %v550, 2147483648
    %v804 = vor.u32 1.1754944e-38, %v803
    %v805 = vsel %vm802, %v804, %v800
    %v806 = vmul.f32 1.0, %v805
    %v807 = vrcp.pop %v551
    %v808 = vmul.f32 %v551, %v807
    %v809 = vsub.f32 1.0, %v808
    %v810 = vmul.f32 %v807, %v809
    %v811 = vadd.f32 %v807, %v810
    %vm812 = vweird.f32 %v551
    %vm813 = vweird.f32 %v807
    %vm814 = vmor %vm812, %vm813
    %v815 = vsel %vm814, %v807, %v811
    %v816 = vand.u32 2147483647, %v551
    %vm817 = vcmp.eq.f32.partialorder %v816, 8.507059e+37
    %v818 = vand.u32 %v551, 2147483648
    %v819 = vor.u32 1.1754944e-38, %v818
    %v820 = vsel %vm817, %v819, %v815
    %v821 = vmul.f32 1.0, %v820
    %v822 = vmul.f32 %v462, %v566
    %v823 = vmul.f32 %v463, %v581
    %v824 = vmul.f32 %v464, %v596
    %v825 = vmul.f32 %v465, %v611
    %v826 = vmul.f32 %v466, %v626
    %v827 = vmul.f32 %v467, %v641
    %v828 = vmul.f32 %v468, %v656
    %v829 = vmul.f32 %v469, %v671
    %v830 = vmul.f32 %v470, %v686
    %v831 = vmul.f32 %v471, %v701
    %v832 = vmul.f32 %v472, %v716
    %v833 = vmul.f32 %v473, %v731
    %v834 = vmul.f32 %v474, %v746
    %v835 = vmul.f32 %v475, %v761
    %v836 = vmul.f32 %v476, %v776
    %v837 = vmul.f32 %v477, %v791
    %v838 = vmul.f32 %v478, %v806
    %v839 = vmul.f32 %v479, %v821
    %v840 = vmul.f32 %v822, %v196
    %v841 = vmul.f32 %v823, %v197
    %v842 = vmul.f32 %v824, %v198
    %v843 = vmul.f32 %v825, %v199
    %v844 = vmul.f32 %v826, %v200
    %v845 = vmul.f32 %v827, %v201
    %v846 = vmul.f32 %v828, %v202
    %v847 = vmul.f32 %v829, %v203
    %v848 = vmul.f32 %v830, %v204
    %v849 = vmul.f32 %v831, %v196
    %v850 = vmul.f32 %v832, %v197
    %v851 = vmul.f32 %v833, %v198
    %v852 = vmul.f32 %v834, %v199
    %v853 = vmul.f32 %v835, %v200
    %v854 = vmul.f32 %v836, %v201
    %v855 = vmul.f32 %v837, %v202
    %v856 = vmul.f32 %v838, %v203
    %v857 = vmul.f32 %v839, %v204
    %vm876 = vcmask 1040384
    %v877 = vrot.slane %v840, 7
    %v878 = vrot.slane %v841, 7
    %v879 = vsel %vm876, %v877, %v878
    %v880 = vrot.slane %v842, 7
    %v881 = vsel %vm876, %v878, %v880
    %v882 = vrot.slane %v843, 7
    %v883 = vsel %vm876, %v880, %v882
    %v884 = vrot.slane %v844, 7
    %v885 = vsel %vm876, %v882, %v884
    %v886 = vrot.slane %v845, 7
    %v887 = vsel %vm876, %v884, %v886
    %v888 = vrot.slane %v846, 7
    %v889 = vsel %vm876, %v886, %v888
    %v890 = vrot.slane %v847, 7
    %v891 = vsel %vm876, %v888, %v890
    %v892 = vrot.slane %v848, 7
    %v893 = vsel %vm876, %v890, %v892
    %v894 = vrot.slane %v849, 7
    %v895 = vsel %vm876, %v892, %v894
    %v896 = vrot.slane %v850, 7
    %v897 = vsel %vm876, %v894, %v896
    %v898 = vrot.slane %v851, 7
    %v899 = vsel %vm876, %v896, %v898
    %v900 = vrot.slane %v852, 7
    %v901 = vsel %vm876, %v898, %v900
    %v902 = vrot.slane %v853, 7
    %v903 = vsel %vm876, %v900, %v902
    %v904 = vrot.slane %v854, 7
    %v905 = vsel %vm876, %v902, %v904
    %v906 = vrot.slane %v855, 7
    %v907 = vsel %vm876, %v904, %v906
    %v908 = vrot.slane %v856, 7
    %v909 = vsel %vm876, %v906, %v908
    %v910 = vrot.slane %v857, 7
    %v911 = vsel %vm876, %v908, %v910
    %v930 = vsel %vm876, 0.0, %v877
    %vm931 = vcmask 1046528
    %v932 = vrot.slane %v840, 1
    %v933 = vrot.slane %v841, 1
    %v934 = vsel %vm931, %v932, %v933
    %v935 = vrot.slane %v842, 1
    %v936 = vsel %vm931, %v933, %v935
    %v937 = vrot.slane %v843, 1
    %v938 = vsel %vm931, %v935, %v937
    %v939 = vrot.slane %v844, 1
    %v940 = vsel %vm931, %v937, %v939
    %v941 = vrot.slane %v845, 1
    %v942 = vsel %vm931, %v939, %v941
    %v943 = vrot.slane %v846, 1
    %v944 = vsel %vm931, %v941, %v943
    %v945 = vrot.slane %v847, 1
    %v946 = vsel %vm931, %v943, %v945
    %v947 = vrot.slane %v848, 1
    %v948 = vsel %vm931, %v945, %v947
    %v949 = vrot.slane %v849, 1
    %v950 = vsel %vm931, %v947, %v949
    %v951 = vrot.slane %v850, 1
    %v952 = vsel %vm931, %v949, %v951
    %v953 = vrot.slane %v851, 1
    %v954 = vsel %vm931, %v951, %v953
    %v955 = vrot.slane %v852, 1
    %v956 = vsel %vm931, %v953, %v955
    %v957 = vrot.slane %v853, 1
    %v958 = vsel %vm931, %v955, %v957
    %v959 = vrot.slane %v854, 1
    %v960 = vsel %vm931, %v957, %v959
    %v961 = vrot.slane %v855, 1
    %v962 = vsel %vm931, %v959, %v961
    %v963 = vrot.slane %v856, 1
    %v964 = vsel %vm931, %v961, %v963
    %v965 = vrot.slane %v857, 1
    %v966 = vsel %vm931, %v963, %v965
    %v985 = vsel %vm931, %v965, 0.0
    %v986 = vpack.c.bf16 %v841, %v840
    %v987 = vpack.c.bf16 %v843, %v842
    %v988 = vpack.c.bf16 %v845, %v844
    %v989 = vpack.c.bf16 %v847, %v846
    %v990 = vpack.c.bf16 %v849, %v848
    %v991 = vpack.c.bf16 %v851, %v850
    %v992 = vpack.c.bf16 %v853, %v852
    %v993 = vpack.c.bf16 %v855, %v854
    %v994 = vpack.c.bf16 %v857, %v856
    %s995 = scalar_lea.vmem [#allocation10], 64
    %v996 = vld [vmem:[%s995] sm:$0xf]
    %v997 = vld [vmem:[%s995 + $0x4] sm:$0xf]
    %v998 = vld [vmem:[%s995 + $0x8] sm:$0xf]
    %v999 = vld [vmem:[%s995 + $0xc] sm:$0xf]
    %v1000 = vld [vmem:[%s995 + $0x10] sm:$0xf]
    %v1001 = vld [vmem:[%s995 + $0x14] sm:$0xf]
    %v1002 = vld [vmem:[%s995 + $0x18] sm:$0xf]
    %v1003 = vld [vmem:[%s995 + $0x1c] sm:$0xf]
    %v1004 = vld [vmem:[%s995 + $0x20] sm:$0xf]
    %v1005 = vld [vmem:[%s995 + $0x24] sm:$0xf]
    %v1006 = vld [vmem:[%s995 + $0x28] sm:$0xf]
    %v1007 = vld [vmem:[%s995 + $0x2c] sm:$0xf]
    %v1008 = vld [vmem:[%s995 + $0x30] sm:$0xf]
    %v1009 = vld [vmem:[%s995 + $0x34] sm:$0xf]
    %v1010 = vld [vmem:[%s995 + $0x38] sm:$0xf]
    %v1011 = vld [vmem:[%s995 + $0x3c] sm:$0xf]
    %v1012 = vpack.c.bf16 %v879, %v930
    %v1013 = vpack.c.bf16 %v883, %v881
    %v1014 = vpack.c.bf16 %v887, %v885
    %v1015 = vpack.c.bf16 %v891, %v889
    %v1016 = vpack.c.bf16 %v895, %v893
    %v1017 = vpack.c.bf16 %v899, %v897
    %v1018 = vpack.c.bf16 %v903, %v901
    %v1019 = vpack.c.bf16 %v907, %v905
    %v1020 = vpack.c.bf16 %v911, %v909
    %v1021 = vld [vmem:[#allocation10] sm:$0xf]
    %v1022 = vld [vmem:[#allocation10 + $0x4] sm:$0xf]
    %v1023 = vld [vmem:[#allocation10 + $0x8] sm:$0xf]
    %v1024 = vld [vmem:[#allocation10 + $0xc] sm:$0xf]
    %v1025 = vld [vmem:[#allocation10 + $0x10] sm:$0xf]
    %v1026 = vld [vmem:[#allocation10 + $0x14] sm:$0xf]
    %v1027 = vld [vmem:[#allocation10 + $0x18] sm:$0xf]
    %v1028 = vld [vmem:[#allocation10 + $0x1c] sm:$0xf]
    %v1029 = vld [vmem:[#allocation10 + $0x20] sm:$0xf]
    %v1030 = vld [vmem:[#allocation10 + $0x24] sm:$0xf]
    %v1031 = vld [vmem:[#allocation10 + $0x28] sm:$0xf]
    %v1032 = vld [vmem:[#allocation10 + $0x2c] sm:$0xf]
    %v1033 = vld [vmem:[#allocation10 + $0x30] sm:$0xf]
    %v1034 = vld [vmem:[#allocation10 + $0x34] sm:$0xf]
    %v1035 = vld [vmem:[#allocation10 + $0x38] sm:$0xf]
    %v1036 = vld [vmem:[#allocation10 + $0x3c] sm:$0xf]
    %v1053 = vunpack.c.l.b16 %v1021
    %v1054 = vunpack.c.l.b16 %v1022
    %v1055 = vunpack.c.l.b16 %v1023
    %v1056 = vunpack.c.l.b16 %v1024
    %v1057 = vunpack.c.l.b16 %v1025
    %v1058 = vunpack.c.l.b16 %v1026
    %v1059 = vunpack.c.l.b16 %v1027
    %v1060 = vunpack.c.l.b16 %v1028
    %v1061 = vunpack.c.l.b16 %v1029
    %v1062 = vunpack.c.l.b16 %v1030
    %v1063 = vunpack.c.l.b16 %v1031
    %v1064 = vunpack.c.l.b16 %v1032
    %v1065 = vunpack.c.l.b16 %v1033
    %v1066 = vunpack.c.l.b16 %v1034
    %v1067 = vunpack.c.l.b16 %v1035
    %v1068 = vunpack.c.l.b16 %v1036
    %v1069 = vpack.c.b16 %v1054, %v1053
    %v1070 = vpack.c.b16 %v1056, %v1055
    %v1071 = vpack.c.b16 %v1058, %v1057
    %v1072 = vpack.c.b16 %v1060, %v1059
    %v1073 = vpack.c.b16 %v1062, %v1061
    %v1074 = vpack.c.b16 %v1064, %v1063
    %v1075 = vpack.c.b16 %v1066, %v1065
    %v1076 = vpack.c.b16 %v1068, %v1067
    %1085 = vmatpush.bf16.msra.mxu0 %v1076
    %1086 = vmatpush.bf16.msra.mxu0 %v1075
    %1087 = vmatpush.bf16.msra.mxu0 %v1074
    %1088 = vmatpush.bf16.msra.mxu0 %v1073
    %1089 = vmatpush.bf16.msra.mxu0 %v1072
    %1090 = vmatpush.bf16.msra.mxu0 %v1071
    %1091 = vmatpush.bf16.msra.mxu0 %v1070
    %1092 = vmatpush.bf16.msra.mxu0 %v1069
    %1093 = vmatmul.bf16.gmra.mxu0 %v1012
    %v1094 = vpop.f32.mrf.mxu0
    %v1095 = vadd.f32 0.0, %v1094
    %v1096 = vpop.f32.mrf.mxu0
    %v1097 = vadd.f32 0.0, %v1096
    %1098 = vmatmul.bf16.gmra.mxu0 %v1013
    %v1099 = vpop.f32.mrf.mxu0
    %v1100 = vadd.f32 0.0, %v1099
    %v1101 = vpop.f32.mrf.mxu0
    %v1102 = vadd.f32 0.0, %v1101
    %1103 = vmatmul.bf16.gmra.mxu0 %v1014
    %v1104 = vpop.f32.mrf.mxu0
    %v1105 = vadd.f32 0.0, %v1104
    %v1106 = vpop.f32.mrf.mxu0
    %v1107 = vadd.f32 0.0, %v1106
    %1108 = vmatmul.bf16.gmra.mxu0 %v1015
    %v1109 = vpop.f32.mrf.mxu0
    %v1110 = vadd.f32 0.0, %v1109
    %v1111 = vpop.f32.mrf.mxu0
    %v1112 = vadd.f32 0.0, %v1111
    %1113 = vmatmul.bf16.gmra.mxu0 %v1016
    %v1114 = vpop.f32.mrf.mxu0
    %v1115 = vadd.f32 0.0, %v1114
    %v1116 = vpop.f32.mrf.mxu0
    %v1117 = vadd.f32 0.0, %v1116
    %1118 = vmatmul.bf16.gmra.mxu0 %v1017
    %v1119 = vpop.f32.mrf.mxu0
    %v1120 = vadd.f32 0.0, %v1119
    %v1121 = vpop.f32.mrf.mxu0
    %v1122 = vadd.f32 0.0, %v1121
    %1123 = vmatmul.bf16.gmra.mxu0 %v1018
    %v1124 = vpop.f32.mrf.mxu0
    %v1125 = vadd.f32 0.0, %v1124
    %v1126 = vpop.f32.mrf.mxu0
    %v1127 = vadd.f32 0.0, %v1126
    %1128 = vmatmul.bf16.gmra.mxu0 %v1019
    %v1129 = vpop.f32.mrf.mxu0
    %v1130 = vadd.f32 0.0, %v1129
    %v1131 = vpop.f32.mrf.mxu0
    %v1132 = vadd.f32 0.0, %v1131
    %1133 = vmatmul.bf16.gmra.mxu0 %v1020
    %v1134 = vpop.f32.mrf.mxu0
    %v1135 = vadd.f32 0.0, %v1134
    %v1136 = vpop.f32.mrf.mxu0
    %v1137 = vadd.f32 0.0, %v1136
    %1138 = vdwg.mxu0
    %v1155 = vunpack.c.l.b16 %v996
    %v1156 = vunpack.c.l.b16 %v997
    %v1157 = vunpack.c.l.b16 %v998
    %v1158 = vunpack.c.l.b16 %v999
    %v1159 = vunpack.c.l.b16 %v1000
    %v1160 = vunpack.c.l.b16 %v1001
    %v1161 = vunpack.c.l.b16 %v1002
    %v1162 = vunpack.c.l.b16 %v1003
    %v1163 = vunpack.c.l.b16 %v1004
    %v1164 = vunpack.c.l.b16 %v1005
    %v1165 = vunpack.c.l.b16 %v1006
    %v1166 = vunpack.c.l.b16 %v1007
    %v1167 = vunpack.c.l.b16 %v1008
    %v1168 = vunpack.c.l.b16 %v1009
    %v1169 = vunpack.c.l.b16 %v1010
    %v1170 = vunpack.c.l.b16 %v1011
    %v1171 = vpack.c.b16 %v1156, %v1155
    %v1172 = vpack.c.b16 %v1158, %v1157
    %v1173 = vpack.c.b16 %v1160, %v1159
    %v1174 = vpack.c.b16 %v1162, %v1161
    %v1175 = vpack.c.b16 %v1164, %v1163
    %v1176 = vpack.c.b16 %v1166, %v1165
    %v1177 = vpack.c.b16 %v1168, %v1167
    %v1178 = vpack.c.b16 %v1170, %v1169
    %1187 = vmatpush.bf16.msra.mxu0 %v1178
    %1188 = vmatpush.bf16.msra.mxu0 %v1177
    %1189 = vmatpush.bf16.msra.mxu0 %v1176
    %1190 = vmatpush.bf16.msra.mxu0 %v1175
    %1191 = vmatpush.bf16.msra.mxu0 %v1174
    %1192 = vmatpush.bf16.msra.mxu0 %v1173
    %1193 = vmatpush.bf16.msra.mxu0 %v1172
    %1194 = vmatpush.bf16.msra.mxu0 %v1171
    %1195 = vmatmul.bf16.gmra.mxu0 %v986
    %v1196 = vpop.f32.mrf.mxu0
    %v1197 = vadd.f32 %v1095, %v1196
    %v1198 = vpop.f32.mrf.mxu0
    %v1199 = vadd.f32 %v1097, %v1198
    %1200 = vmatmul.bf16.gmra.mxu0 %v987
    %v1201 = vpop.f32.mrf.mxu0
    %v1202 = vadd.f32 %v1100, %v1201
    %v1203 = vpop.f32.mrf.mxu0
    %v1204 = vadd.f32 %v1102, %v1203
    %1205 = vmatmul.bf16.gmra.mxu0 %v988
    %v1206 = vpop.f32.mrf.mxu0
    %v1207 = vadd.f32 %v1105, %v1206
    %v1208 = vpop.f32.mrf.mxu0
    %v1209 = vadd.f32 %v1107, %v1208
    %1210 = vmatmul.bf16.gmra.mxu0 %v989
    %v1211 = vpop.f32.mrf.mxu0
    %v1212 = vadd.f32 %v1110, %v1211
    %v1213 = vpop.f32.mrf.mxu0
    %v1214 = vadd.f32 %v1112, %v1213
    %1215 = vmatmul.bf16.gmra.mxu0 %v990
    %v1216 = vpop.f32.mrf.mxu0
    %v1217 = vadd.f32 %v1115, %v1216
    %v1218 = vpop.f32.mrf.mxu0
    %v1219 = vadd.f32 %v1117, %v1218
    %1220 = vmatmul.bf16.gmra.mxu0 %v991
    %v1221 = vpop.f32.mrf.mxu0
    %v1222 = vadd.f32 %v1120, %v1221
    %v1223 = vpop.f32.mrf.mxu0
    %v1224 = vadd.f32 %v1122, %v1223
    %1225 = vmatmul.bf16.gmra.mxu0 %v992
    %v1226 = vpop.f32.mrf.mxu0
    %v1227 = vadd.f32 %v1125, %v1226
    %v1228 = vpop.f32.mrf.mxu0
    %v1229 = vadd.f32 %v1127, %v1228
    %1230 = vmatmul.bf16.gmra.mxu0 %v993
    %v1231 = vpop.f32.mrf.mxu0
    %v1232 = vadd.f32 %v1130, %v1231
    %v1233 = vpop.f32.mrf.mxu0
    %v1234 = vadd.f32 %v1132, %v1233
    %1235 = vmatmul.bf16.gmra.mxu0 %v994
    %v1236 = vpop.f32.mrf.mxu0
    %v1237 = vadd.f32 %v1135, %v1236
    %v1238 = vpop.f32.mrf.mxu0
    %v1239 = vadd.f32 %v1137, %v1238
    %1240 = vdwg.mxu0
    %v1241 = vpack.c.bf16 %v936, %v934
    %v1242 = vpack.c.bf16 %v940, %v938
    %v1243 = vpack.c.bf16 %v944, %v942
    %v1244 = vpack.c.bf16 %v948, %v946
    %v1245 = vpack.c.bf16 %v952, %v950
    %v1246 = vpack.c.bf16 %v956, %v954
    %v1247 = vpack.c.bf16 %v960, %v958
    %v1248 = vpack.c.bf16 %v964, %v962
    %v1249 = vpack.c.bf16 %v985, %v966
    %s1250 = scalar_lea.vmem [#allocation10], 128
    %v1251 = vld [vmem:[%s1250] sm:$0xf]
    %v1252 = vld [vmem:[%s1250 + $0x4] sm:$0xf]
    %v1253 = vld [vmem:[%s1250 + $0x8] sm:$0xf]
    %v1254 = vld [vmem:[%s1250 + $0xc] sm:$0xf]
    %v1255 = vld [vmem:[%s1250 + $0x10] sm:$0xf]
    %v1256 = vld [vmem:[%s1250 + $0x14] sm:$0xf]
    %v1257 = vld [vmem:[%s1250 + $0x18] sm:$0xf]
    %v1258 = vld [vmem:[%s1250 + $0x1c] sm:$0xf]
    %v1259 = vld [vmem:[%s1250 + $0x20] sm:$0xf]
    %v1260 = vld [vmem:[%s1250 + $0x24] sm:$0xf]
    %v1261 = vld [vmem:[%s1250 + $0x28] sm:$0xf]
    %v1262 = vld [vmem:[%s1250 + $0x2c] sm:$0xf]
    %v1263 = vld [vmem:[%s1250 + $0x30] sm:$0xf]
    %v1264 = vld [vmem:[%s1250 + $0x34] sm:$0xf]
    %v1265 = vld [vmem:[%s1250 + $0x38] sm:$0xf]
    %v1266 = vld [vmem:[%s1250 + $0x3c] sm:$0xf]
    %v1283 = vunpack.c.l.b16 %v1251
    %v1284 = vunpack.c.l.b16 %v1252
    %v1285 = vunpack.c.l.b16 %v1253
    %v1286 = vunpack.c.l.b16 %v1254
    %v1287 = vunpack.c.l.b16 %v1255
    %v1288 = vunpack.c.l.b16 %v1256
    %v1289 = vunpack.c.l.b16 %v1257
    %v1290 = vunpack.c.l.b16 %v1258
    %v1291 = vunpack.c.l.b16 %v1259
    %v1292 = vunpack.c.l.b16 %v1260
    %v1293 = vunpack.c.l.b16 %v1261
    %v1294 = vunpack.c.l.b16 %v1262
    %v1295 = vunpack.c.l.b16 %v1263
    %v1296 = vunpack.c.l.b16 %v1264
    %v1297 = vunpack.c.l.b16 %v1265
    %v1298 = vunpack.c.l.b16 %v1266
    %v1299 = vpack.c.b16 %v1284, %v1283
    %v1300 = vpack.c.b16 %v1286, %v1285
    %v1301 = vpack.c.b16 %v1288, %v1287
    %v1302 = vpack.c.b16 %v1290, %v1289
    %v1303 = vpack.c.b16 %v1292, %v1291
    %v1304 = vpack.c.b16 %v1294, %v1293
    %v1305 = vpack.c.b16 %v1296, %v1295
    %v1306 = vpack.c.b16 %v1298, %v1297
    %1315 = vmatpush.bf16.msra.mxu0 %v1306
    %1316 = vmatpush.bf16.msra.mxu0 %v1305
    %1317 = vmatpush.bf16.msra.mxu0 %v1304
    %1318 = vmatpush.bf16.msra.mxu0 %v1303
    %1319 = vmatpush.bf16.msra.mxu0 %v1302
    %1320 = vmatpush.bf16.msra.mxu0 %v1301
    %1321 = vmatpush.bf16.msra.mxu0 %v1300
    %1322 = vmatpush.bf16.msra.mxu0 %v1299
    %1323 = vmatmul.bf16.gmra.mxu0 %v1241
    %v1324 = vpop.f32.mrf.mxu0
    %v1325 = vadd.f32 0.0, %v1324
    %v1326 = vpop.f32.mrf.mxu0
    %v1327 = vadd.f32 0.0, %v1326
    %1328 = vmatmul.bf16.gmra.mxu0 %v1242
    %v1329 = vpop.f32.mrf.mxu0
    %v1330 = vadd.f32 0.0, %v1329
    %v1331 = vpop.f32.mrf.mxu0
    %v1332 = vadd.f32 0.0, %v1331
    %1333 = vmatmul.bf16.gmra.mxu0 %v1243
    %v1334 = vpop.f32.mrf.mxu0
    %v1335 = vadd.f32 0.0, %v1334
    %v1336 = vpop.f32.mrf.mxu0
    %v1337 = vadd.f32 0.0, %v1336
    %1338 = vmatmul.bf16.gmra.mxu0 %v1244
    %v1339 = vpop.f32.mrf.mxu0
    %v1340 = vadd.f32 0.0, %v1339
    %v1341 = vpop.f32.mrf.mxu0
    %v1342 = vadd.f32 0.0, %v1341
    %1343 = vmatmul.bf16.gmra.mxu0 %v1245
    %v1344 = vpop.f32.mrf.mxu0
    %v1345 = vadd.f32 0.0, %v1344
    %v1346 = vpop.f32.mrf.mxu0
    %v1347 = vadd.f32 0.0, %v1346
    %1348 = vmatmul.bf16.gmra.mxu0 %v1246
    %v1349 = vpop.f32.mrf.mxu0
    %v1350 = vadd.f32 0.0, %v1349
    %v1351 = vpop.f32.mrf.mxu0
    %v1352 = vadd.f32 0.0, %v1351
    %1353 = vmatmul.bf16.gmra.mxu0 %v1247
    %v1354 = vpop.f32.mrf.mxu0
    %v1355 = vadd.f32 0.0, %v1354
    %v1356 = vpop.f32.mrf.mxu0
    %v1357 = vadd.f32 0.0, %v1356
    %1358 = vmatmul.bf16.gmra.mxu0 %v1248
    %v1359 = vpop.f32.mrf.mxu0
    %v1360 = vadd.f32 0.0, %v1359
    %v1361 = vpop.f32.mrf.mxu0
    %v1362 = vadd.f32 0.0, %v1361
    %1363 = vmatmul.bf16.gmra.mxu0 %v1249
    %v1364 = vpop.f32.mrf.mxu0
    %v1365 = vadd.f32 0.0, %v1364
    %v1366 = vpop.f32.mrf.mxu0
    %v1367 = vadd.f32 0.0, %v1366
    %1368 = vdwg.mxu0
    %v1369 = vadd.f32 %v1197, %v1325
    %v1370 = vadd.f32 %v1199, %v1327
    %v1371 = vadd.f32 %v1202, %v1330
    %v1372 = vadd.f32 %v1204, %v1332
    %v1373 = vadd.f32 %v1207, %v1335
    %v1374 = vadd.f32 %v1209, %v1337
    %v1375 = vadd.f32 %v1212, %v1340
    %v1376 = vadd.f32 %v1214, %v1342
    %v1377 = vadd.f32 %v1217, %v1345
    %v1378 = vadd.f32 %v1219, %v1347
    %v1379 = vadd.f32 %v1222, %v1350
    %v1380 = vadd.f32 %v1224, %v1352
    %v1381 = vadd.f32 %v1227, %v1355
    %v1382 = vadd.f32 %v1229, %v1357
    %v1383 = vadd.f32 %v1232, %v1360
    %v1384 = vadd.f32 %v1234, %v1362
    %v1385 = vadd.f32 %v1237, %v1365
    %v1386 = vadd.f32 %v1239, %v1367
    %v1387 = vld [vmem:[%s6] sm:$0x1]
    %v1389 = vperm.slane %v1387, 0
    %v1391 = vadd.f32 %v1369, %v1389
    %v1392 = vadd.f32 %v1370, %v1389
    %v1393 = vadd.f32 %v1371, %v1389
    %v1394 = vadd.f32 %v1372, %v1389
    %v1395 = vadd.f32 %v1373, %v1389
    %v1396 = vadd.f32 %v1374, %v1389
    %v1397 = vadd.f32 %v1375, %v1389
    %v1398 = vadd.f32 %v1376, %v1389
    %v1399 = vadd.f32 %v1377, %v1389
    %v1400 = vadd.f32 %v1378, %v1389
    %v1401 = vadd.f32 %v1379, %v1389
    %v1402 = vadd.f32 %v1380, %v1389
    %v1403 = vadd.f32 %v1381, %v1389
    %v1404 = vadd.f32 %v1382, %v1389
    %v1405 = vadd.f32 %v1383, %v1389
    %v1406 = vadd.f32 %v1384, %v1389
    %v1407 = vadd.f32 %v1385, %v1389
    %v1408 = vadd.f32 %v1386, %v1389
    %v1409 = vmul.f32 %v1391, %v196
    %v1410 = vmul.f32 %v1392, %v197
    %v1411 = vmul.f32 %v1393, %v198
    %v1412 = vmul.f32 %v1394, %v199
    %v1413 = vmul.f32 %v1395, %v200
    %v1414 = vmul.f32 %v1396, %v201
    %v1415 = vmul.f32 %v1397, %v202
    %v1416 = vmul.f32 %v1398, %v203
    %v1417 = vmul.f32 %v1399, %v204
    %v1418 = vmul.f32 %v1400, %v196
    %v1419 = vmul.f32 %v1401, %v197
    %v1420 = vmul.f32 %v1402, %v198
    %v1421 = vmul.f32 %v1403, %v199
    %v1422 = vmul.f32 %v1404, %v200
    %v1423 = vmul.f32 %v1405, %v201
    %v1424 = vmul.f32 %v1406, %v202
    %v1425 = vmul.f32 %v1407, %v203
    %v1426 = vmul.f32 %v1408, %v204
    %v1427 = vadd.f32 %v1409, %v1410
    %v1428 = vadd.f32 %v1427, %v1411
    %v1429 = vadd.f32 %v1428, %v1412
    %v1430 = vadd.f32 %v1429, %v1413
    %v1431 = vadd.f32 %v1430, %v1414
    %v1432 = vadd.f32 %v1431, %v1415
    %v1433 = vadd.f32 %v1432, %v1416
    %v1434 = vadd.f32 %v1433, %v1417
    %v1435 = vrot.slane %v1434, 4
    %v1436 = vadd.f32 %v1434, %v1435
    %v1437 = vrot.slane %v1436, 2
    %v1438 = vadd.f32 %v1436, %v1437
    %v1439 = vrot.slane %v1438, 1
    %v1440 = vadd.f32 %v1438, %v1439
    %v1441 = vadd.f32 %v1418, %v1419
    %v1442 = vadd.f32 %v1441, %v1420
    %v1443 = vadd.f32 %v1442, %v1421
    %v1444 = vadd.f32 %v1443, %v1422
    %v1445 = vadd.f32 %v1444, %v1423
    %v1446 = vadd.f32 %v1445, %v1424
    %v1447 = vadd.f32 %v1446, %v1425
    %v1448 = vadd.f32 %v1447, %v1426
    %v1449 = vrot.slane %v1448, 4
    %v1450 = vadd.f32 %v1448, %v1449
    %v1451 = vrot.slane %v1450, 2
    %v1452 = vadd.f32 %v1450, %v1451
    %v1453 = vrot.slane %v1452, 1
    %v1454 = vadd.f32 %v1452, %v1453
    %v1455 = vmul.f32 %v1409, %v1409
    %v1456 = vmul.f32 %v1410, %v1410
    %v1457 = vmul.f32 %v1411, %v1411
    %v1458 = vmul.f32 %v1412, %v1412
    %v1459 = vmul.f32 %v1413, %v1413
    %v1460 = vmul.f32 %v1414, %v1414
    %v1461 = vmul.f32 %v1415, %v1415
    %v1462 = vmul.f32 %v1416, %v1416
    %v1463 = vmul.f32 %v1417, %v1417
    %v1464 = vmul.f32 %v1418, %v1418
    %v1465 = vmul.f32 %v1419, %v1419
    %v1466 = vmul.f32 %v1420, %v1420
    %v1467 = vmul.f32 %v1421, %v1421
    %v1468 = vmul.f32 %v1422, %v1422
    %v1469 = vmul.f32 %v1423, %v1423
    %v1470 = vmul.f32 %v1424, %v1424
    %v1471 = vmul.f32 %v1425, %v1425
    %v1472 = vmul.f32 %v1426, %v1426
    %v1473 = vadd.f32 %v1455, %v1456
    %v1474 = vadd.f32 %v1473, %v1457
    %v1475 = vadd.f32 %v1474, %v1458
    %v1476 = vadd.f32 %v1475, %v1459
    %v1477 = vadd.f32 %v1476, %v1460
    %v1478 = vadd.f32 %v1477, %v1461
    %v1479 = vadd.f32 %v1478, %v1462
    %v1480 = vadd.f32 %v1479, %v1463
    %v1481 = vrot.slane %v1480, 4
    %v1482 = vadd.f32 %v1480, %v1481
    %v1483 = vrot.slane %v1482, 2
    %v1484 = vadd.f32 %v1482, %v1483
    %v1485 = vrot.slane %v1484, 1
    %v1486 = vadd.f32 %v1484, %v1485
    %v1487 = vadd.f32 %v1464, %v1465
    %v1488 = vadd.f32 %v1487, %v1466
    %v1489 = vadd.f32 %v1488, %v1467
    %v1490 = vadd.f32 %v1489, %v1468
    %v1491 = vadd.f32 %v1490, %v1469
    %v1492 = vadd.f32 %v1491, %v1470
    %v1493 = vadd.f32 %v1492, %v1471
    %v1494 = vadd.f32 %v1493, %v1472
    %v1495 = vrot.slane %v1494, 4
    %v1496 = vadd.f32 %v1494, %v1495
    %v1497 = vrot.slane %v1496, 2
    %v1498 = vadd.f32 %v1496, %v1497
    %v1499 = vrot.slane %v1498, 1
    %v1500 = vadd.f32 %v1498, %v1499
    %v1503 = vsel %vm299, %v1454, %v1440
    %v1507 = vsel %vm304, %v1500, %v1486
    %v1509 = vsel %vm307, %v1503, %v1507
    %v1510 = vld [vmem:[#allocation11] sm:$0xff]
    %v1511 = vld [vmem:[#allocation11 + $0x8] sm:$0xff]
    %v1512 = vld [vmem:[#allocation11 + $0x10] sm:$0xff]
    %v1513 = vld [vmem:[#allocation11 + $0x18] sm:$0xff]
    %v1514 = vld [vmem:[#allocation11 + $0x20] sm:$0xff]
    %v1515 = vld [vmem:[#allocation11 + $0x28] sm:$0xff]
    %v1516 = vld [vmem:[#allocation11 + $0x30] sm:$0xff]
    %v1517 = vld [vmem:[#allocation11 + $0x38] sm:$0xff]
    %v1518 = vld [vmem:[#allocation11 + $0x40] sm:$0xff]
    %v1519 = vld [vmem:[#allocation11 + $0x48] sm:$0xff]
    %v1520 = vld [vmem:[#allocation11 + $0x50] sm:$0xff]
    %v1521 = vld [vmem:[#allocation11 + $0x58] sm:$0xff]
    %v1522 = vld [vmem:[#allocation11 + $0x60] sm:$0xff]
    %v1523 = vld [vmem:[#allocation11 + $0x68] sm:$0xff]
    %v1524 = vld [vmem:[#allocation11 + $0x70] sm:$0xff]
    %v1525 = vld [vmem:[#allocation11 + $0x78] sm:$0xff]
    %1526 = vmatpush.msra.mxu0 %v1525
    %1527 = vmatpush.msra.mxu0 %v1524
    %1528 = vmatpush.msra.mxu0 %v1523
    %1529 = vmatpush.msra.mxu0 %v1522
    %1530 = vmatpush.msra.mxu0 %v1521
    %1531 = vmatpush.msra.mxu0 %v1520
    %1532 = vmatpush.msra.mxu0 %v1519
    %1533 = vmatpush.msra.mxu0 %v1518
    %1534 = vmatpush.msra.mxu0 %v1517
    %1535 = vmatpush.msra.mxu0 %v1516
    %1536 = vmatpush.msra.mxu0 %v1515
    %1537 = vmatpush.msra.mxu0 %v1514
    %1538 = vmatpush.msra.mxu0 %v1513
    %1539 = vmatpush.msra.mxu0 %v1512
    %1540 = vmatpush.msra.mxu0 %v1511
    %1541 = vmatpush.msra.mxu0 %v1510
    %1542 = vmatmul.f32.gmra.mxu0 %v1509
    %v1543 = vpop.f32.mrf.mxu0
    %v1544 = vadd.f32 0.0, %v1543
    %1545 = vdwg.mxu0
    %v1546 = vmul.f32 %v1544, 0.0078125
    %v1547 = vmul.f32 %v1546, %v1546
    %v1549 = vrot.slane %v1547, 6
    %v1551 = vsub.f32 %v1546, %v1549
    %v1552 = vmax.f32 %v1551, 0.0
    %v1553 = vadd.f32 %v1552, 1e-05
    %v1554 = vrsqrt.pop %v1553
    %v1555 = vmul.f32 %v1554, %v1553
    %v1556 = vmul.f32 %v1555, %v1554
    %v1557 = vmul.f32 0.5, %v1556
    %v1558 = vsub.f32 1.5, %v1557
    %v1559 = vmul.f32 %v1554, %v1558
    %vm1560 = vweird.f32 %v1553
    %vm1561 = vweird.f32 %v1554
    %vm1562 = vmor %vm1560, %vm1561
    %v1563 = vsel %vm1562, %v1554, %v1559
    %v1564 = vsel %vm307, %v1546, %v1563
    %v1565 = vld [vmem:[#allocation13] sm:$0xff]
    %v1566 = vld [vmem:[#allocation13 + $0x8] sm:$0xff]
    %v1567 = vld [vmem:[#allocation13 + $0x10] sm:$0xff]
    %v1568 = vld [vmem:[#allocation13 + $0x18] sm:$0xff]
    %v1569 = vld [vmem:[#allocation13 + $0x20] sm:$0xff]
    %v1570 = vld [vmem:[#allocation13 + $0x28] sm:$0xff]
    %v1571 = vld [vmem:[#allocation13 + $0x30] sm:$0xff]
    %v1572 = vld [vmem:[#allocation13 + $0x38] sm:$0xff]
    %v1573 = vld [vmem:[#allocation13 + $0x40] sm:$0xff]
    %v1574 = vld [vmem:[#allocation13 + $0x48] sm:$0xff]
    %v1575 = vld [vmem:[#allocation13 + $0x50] sm:$0xff]
    %v1576 = vld [vmem:[#allocation13 + $0x58] sm:$0xff]
    %v1577 = vld [vmem:[#allocation13 + $0x60] sm:$0xff]
    %v1578 = vld [vmem:[#allocation13 + $0x68] sm:$0xff]
    %v1579 = vld [vmem:[#allocation13 + $0x70] sm:$0xff]
    %v1580 = vld [vmem:[#allocation13 + $0x78] sm:$0xff]
    %1581 = vmatpush.msra.mxu0 %v1580
    %1582 = vmatpush.msra.mxu0 %v1579
    %1583 = vmatpush.msra.mxu0 %v1578
    %1584 = vmatpush.msra.mxu0 %v1577
    %1585 = vmatpush.msra.mxu0 %v1576
    %1586 = vmatpush.msra.mxu0 %v1575
    %1587 = vmatpush.msra.mxu0 %v1574
    %1588 = vmatpush.msra.mxu0 %v1573
    %1589 = vmatpush.msra.mxu0 %v1572
    %1590 = vmatpush.msra.mxu0 %v1571
    %1591 = vmatpush.msra.mxu0 %v1570
    %1592 = vmatpush.msra.mxu0 %v1569
    %1593 = vmatpush.msra.mxu0 %v1568
    %1594 = vmatpush.msra.mxu0 %v1567
    %1595 = vmatpush.msra.mxu0 %v1566
    %1596 = vmatpush.msra.mxu0 %v1565
    %1597 = vmatmul.f32.gmra.mxu0 %v1564
    %v1598 = vpop.f32.mrf.mxu0
    %v1599 = vadd.f32 0.0, %v1598
    %1600 = vdwg.mxu0
    %v1602 = vrot.slane %v1599, 1
    %1603 = vst [vmem:[#allocation1] sm:$0xff] %v1599
    %s1604 = scalar_lea.vmem [#allocation1], 2
    %v1605 = vld [vmem:[%s1604] ss:$9 sm:$0xff]
    %s1606 = scalar_lea.vmem [#allocation1], 3
    %v1607 = vld [vmem:[%s1606] ss:$9 sm:$0xff]
    %v1610 = vperm.slane %v1599, 0
    %v1611 = vperm.slane %v1602, 0
    %v1614 = vsub.f32 %v1409, %v1610
    %v1615 = vsub.f32 %v1410, %v1610
    %v1616 = vsub.f32 %v1411, %v1610
    %v1617 = vsub.f32 %v1412, %v1610
    %v1618 = vsub.f32 %v1413, %v1610
    %v1619 = vsub.f32 %v1414, %v1610
    %v1620 = vsub.f32 %v1415, %v1610
    %v1621 = vsub.f32 %v1416, %v1610
    %v1622 = vsub.f32 %v1417, %v1610
    %v1623 = vsub.f32 %v1418, %v1611
    %v1624 = vsub.f32 %v1419, %v1611
    %v1625 = vsub.f32 %v1420, %v1611
    %v1626 = vsub.f32 %v1421, %v1611
    %v1627 = vsub.f32 %v1422, %v1611
    %v1628 = vsub.f32 %v1423, %v1611
    %v1629 = vsub.f32 %v1424, %v1611
    %v1630 = vsub.f32 %v1425, %v1611
    %v1631 = vsub.f32 %v1426, %v1611
    %v1632 = vld [vmem:[%s7] sm:$0x1]
    %v1633 = vmul.f32 %v1605, %v1632
    %v1634 = vmul.f32 %v1607, %v1632
    %v1637 = vperm.slane %v1633, 0
    %v1638 = vperm.slane %v1634, 0
    %v1641 = vmul.f32 %v1614, %v1637
    %v1642 = vmul.f32 %v1615, %v1637
    %v1643 = vmul.f32 %v1616, %v1637
    %v1644 = vmul.f32 %v1617, %v1637
    %v1645 = vmul.f32 %v1618, %v1637
    %v1646 = vmul.f32 %v1619, %v1637
    %v1647 = vmul.f32 %v1620, %v1637
    %v1648 = vmul.f32 %v1621, %v1637
    %v1649 = vmul.f32 %v1622, %v1637
    %v1650 = vmul.f32 %v1623, %v1638
    %v1651 = vmul.f32 %v1624, %v1638
    %v1652 = vmul.f32 %v1625, %v1638
    %v1653 = vmul.f32 %v1626, %v1638
    %v1654 = vmul.f32 %v1627, %v1638
    %v1655 = vmul.f32 %v1628, %v1638
    %v1656 = vmul.f32 %v1629, %v1638
    %v1657 = vmul.f32 %v1630, %v1638
    %v1658 = vmul.f32 %v1631, %v1638
    %v1659 = vld [vmem:[%s8] sm:$0x1]
    %v1661 = vperm.slane %v1659, 0
    %v1663 = vadd.f32 %v1641, %v1661
    %v1664 = vadd.f32 %v1642, %v1661
    %v1665 = vadd.f32 %v1643, %v1661
    %v1666 = vadd.f32 %v1644, %v1661
    %v1667 = vadd.f32 %v1645, %v1661
    %v1668 = vadd.f32 %v1646, %v1661
    %v1669 = vadd.f32 %v1647, %v1661
    %v1670 = vadd.f32 %v1648, %v1661
    %v1671 = vadd.f32 %v1649, %v1661
    %v1672 = vadd.f32 %v1650, %v1661
    %v1673 = vadd.f32 %v1651, %v1661
    %v1674 = vadd.f32 %v1652, %v1661
    %v1675 = vadd.f32 %v1653, %v1661
    %v1676 = vadd.f32 %v1654, %v1661
    %v1677 = vadd.f32 %v1655, %v1661
    %v1678 = vadd.f32 %v1656, %v1661
    %v1679 = vadd.f32 %v1657, %v1661
    %v1680 = vadd.f32 %v1658, %v1661
    %v1681 = vxor.u32 %v1663, 2147483648
    %v1682 = vxor.u32 %v1664, 2147483648
    %v1683 = vxor.u32 %v1665, 2147483648
    %v1684 = vxor.u32 %v1666, 2147483648
    %v1685 = vxor.u32 %v1667, 2147483648
    %v1686 = vxor.u32 %v1668, 2147483648
    %v1687 = vxor.u32 %v1669, 2147483648
    %v1688 = vxor.u32 %v1670, 2147483648
    %v1689 = vxor.u32 %v1671, 2147483648
    %v1690 = vxor.u32 %v1672, 2147483648
    %v1691 = vxor.u32 %v1673, 2147483648
    %v1692 = vxor.u32 %v1674, 2147483648
    %v1693 = vxor.u32 %v1675, 2147483648
    %v1694 = vxor.u32 %v1676, 2147483648
    %v1695 = vxor.u32 %v1677, 2147483648
    %v1696 = vxor.u32 %v1678, 2147483648
    %v1697 = vxor.u32 %v1679, 2147483648
    %v1698 = vxor.u32 %v1680, 2147483648
    %v1699 = vmul.f32 %v1681, 1.442695
    %v1700 = vpow.pop %v1699
    %v1701 = vmul.f32 %v1682, 1.442695
    %v1702 = vpow.pop %v1701
    %v1703 = vmul.f32 %v1683, 1.442695
    %v1704 = vpow.pop %v1703
    %v1705 = vmul.f32 %v1684, 1.442695
    %v1706 = vpow.pop %v1705
    %v1707 = vmul.f32 %v1685, 1.442695
    %v1708 = vpow.pop %v1707
    %v1709 = vmul.f32 %v1686, 1.442695
    %v1710 = vpow.pop %v1709
    %v1711 = vmul.f32 %v1687, 1.442695
    %v1712 = vpow.pop %v1711
    %v1713 = vmul.f32 %v1688, 1.442695
    %v1714 = vpow.pop %v1713
    %v1715 = vmul.f32 %v1689, 1.442695
    %v1716 = vpow.pop %v1715
    %v1717 = vmul.f32 %v1690, 1.442695
    %v1718 = vpow.pop %v1717
    %v1719 = vmul.f32 %v1691, 1.442695
    %v1720 = vpow.pop %v1719
    %v1721 = vmul.f32 %v1692, 1.442695
    %v1722 = vpow.pop %v1721
    %v1723 = vmul.f32 %v1693, 1.442695
    %v1724 = vpow.pop %v1723
    %v1725 = vmul.f32 %v1694, 1.442695
    %v1726 = vpow.pop %v1725
    %v1727 = vmul.f32 %v1695, 1.442695
    %v1728 = vpow.pop %v1727
    %v1729 = vmul.f32 %v1696, 1.442695
    %v1730 = vpow.pop %v1729
    %v1731 = vmul.f32 %v1697, 1.442695
    %v1732 = vpow.pop %v1731
    %v1733 = vmul.f32 %v1698, 1.442695
    %v1734 = vpow.pop %v1733
    %v1735 = vadd.f32 %v1700, 1.0
    %v1736 = vadd.f32 %v1702, 1.0
    %v1737 = vadd.f32 %v1704, 1.0
    %v1738 = vadd.f32 %v1706, 1.0
    %v1739 = vadd.f32 %v1708, 1.0
    %v1740 = vadd.f32 %v1710, 1.0
    %v1741 = vadd.f32 %v1712, 1.0
    %v1742 = vadd.f32 %v1714, 1.0
    %v1743 = vadd.f32 %v1716, 1.0
    %v1744 = vadd.f32 %v1718, 1.0
    %v1745 = vadd.f32 %v1720, 1.0
    %v1746 = vadd.f32 %v1722, 1.0
    %v1747 = vadd.f32 %v1724, 1.0
    %v1748 = vadd.f32 %v1726, 1.0
    %v1749 = vadd.f32 %v1728, 1.0
    %v1750 = vadd.f32 %v1730, 1.0
    %v1751 = vadd.f32 %v1732, 1.0
    %v1752 = vadd.f32 %v1734, 1.0
    %v1753 = vrcp.pop %v1735
    %v1754 = vmul.f32 %v1735, %v1753
    %v1755 = vsub.f32 1.0, %v1754
    %v1756 = vmul.f32 %v1753, %v1755
    %v1757 = vadd.f32 %v1753, %v1756
    %vm1758 = vweird.f32 %v1735
    %vm1759 = vweird.f32 %v1753
    %vm1760 = vmor %vm1758, %vm1759
    %v1761 = vsel %vm1760, %v1753, %v1757
    %v1762 = vand.u32 2147483647, %v1735
    %vm1763 = vcmp.eq.f32.partialorder %v1762, 8.507059e+37
    %v1764 = vand.u32 %v1735, 2147483648
    %v1765 = vor.u32 1.1754944e-38, %v1764
    %v1766 = vsel %vm1763, %v1765, %v1761
    %v1767 = vmul.f32 1.0, %v1766
    %v1768 = vrcp.pop %v1736
    %v1769 = vmul.f32 %v1736, %v1768
    %v1770 = vsub.f32 1.0, %v1769
    %v1771 = vmul.f32 %v1768, %v1770
    %v1772 = vadd.f32 %v1768, %v1771
    %vm1773 = vweird.f32 %v1736
    %vm1774 = vweird.f32 %v1768
    %vm1775 = vmor %vm1773, %vm1774
    %v1776 = vsel %vm1775, %v1768, %v1772
    %v1777 = vand.u32 2147483647, %v1736
    %vm1778 = vcmp.eq.f32.partialorder %v1777, 8.507059e+37
    %v1779 = vand.u32 %v1736, 2147483648
    %v1780 = vor.u32 1.1754944e-38, %v1779
    %v1781 = vsel %vm1778, %v1780, %v1776
    %v1782 = vmul.f32 1.0, %v1781
    %v1783 = vrcp.pop %v1737
    %v1784 = vmul.f32 %v1737, %v1783
    %v1785 = vsub.f32 1.0, %v1784
    %v1786 = vmul.f32 %v1783, %v1785
    %v1787 = vadd.f32 %v1783, %v1786
    %vm1788 = vweird.f32 %v1737
    %vm1789 = vweird.f32 %v1783
    %vm1790 = vmor %vm1788, %vm1789
    %v1791 = vsel %vm1790, %v1783, %v1787
    %v1792 = vand.u32 2147483647, %v1737
    %vm1793 = vcmp.eq.f32.partialorder %v1792, 8.507059e+37
    %v1794 = vand.u32 %v1737, 2147483648
    %v1795 = vor.u32 1.1754944e-38, %v1794
    %v1796 = vsel %vm1793, %v1795, %v1791
    %v1797 = vmul.f32 1.0, %v1796
    %v1798 = vrcp.pop %v1738
    %v1799 = vmul.f32 %v1738, %v1798
    %v1800 = vsub.f32 1.0, %v1799
    %v1801 = vmul.f32 %v1798, %v1800
    %v1802 = vadd.f32 %v1798, %v1801
    %vm1803 = vweird.f32 %v1738
    %vm1804 = vweird.f32 %v1798
    %vm1805 = vmor %vm1803, %vm1804
    %v1806 = vsel %vm1805, %v1798, %v1802
    %v1807 = vand.u32 2147483647, %v1738
    %vm1808 = vcmp.eq.f32.partialorder %v1807, 8.507059e+37
    %v1809 = vand.u32 %v1738, 2147483648
    %v1810 = vor.u32 1.1754944e-38, %v1809
    %v1811 = vsel %vm1808, %v1810, %v1806
    %v1812 = vmul.f32 1.0, %v1811
    %v1813 = vrcp.pop %v1739
    %v1814 = vmul.f32 %v1739, %v1813
    %v1815 = vsub.f32 1.0, %v1814
    %v1816 = vmul.f32 %v1813, %v1815
    %v1817 = vadd.f32 %v1813, %v1816
    %vm1818 = vweird.f32 %v1739
    %vm1819 = vweird.f32 %v1813
    %vm1820 = vmor %vm1818, %vm1819
    %v1821 = vsel %vm1820, %v1813, %v1817
    %v1822 = vand.u32 2147483647, %v1739
    %vm1823 = vcmp.eq.f32.partialorder %v1822, 8.507059e+37
    %v1824 = vand.u32 %v1739, 2147483648
    %v1825 = vor.u32 1.1754944e-38, %v1824
    %v1826 = vsel %vm1823, %v1825, %v1821
    %v1827 = vmul.f32 1.0, %v1826
    %v1828 = vrcp.pop %v1740
    %v1829 = vmul.f32 %v1740, %v1828
    %v1830 = vsub.f32 1.0, %v1829
    %v1831 = vmul.f32 %v1828, %v1830
    %v1832 = vadd.f32 %v1828, %v1831
    %vm1833 = vweird.f32 %v1740
    %vm1834 = vweird.f32 %v1828
    %vm1835 = vmor %vm1833, %vm1834
    %v1836 = vsel %vm1835, %v1828, %v1832
    %v1837 = vand.u32 2147483647, %v1740
    %vm1838 = vcmp.eq.f32.partialorder %v1837, 8.507059e+37
    %v1839 = vand.u32 %v1740, 2147483648
    %v1840 = vor.u32 1.1754944e-38, %v1839
    %v1841 = vsel %vm1838, %v1840, %v1836
    %v1842 = vmul.f32 1.0, %v1841
    %v1843 = vrcp.pop %v1741
    %v1844 = vmul.f32 %v1741, %v1843
    %v1845 = vsub.f32 1.0, %v1844
    %v1846 = vmul.f32 %v1843, %v1845
    %v1847 = vadd.f32 %v1843, %v1846
    %vm1848 = vweird.f32 %v1741
    %vm1849 = vweird.f32 %v1843
    %vm1850 = vmor %vm1848, %vm1849
    %v1851 = vsel %vm1850, %v1843, %v1847
    %v1852 = vand.u32 2147483647, %v1741
    %vm1853 = vcmp.eq.f32.partialorder %v1852, 8.507059e+37
    %v1854 = vand.u32 %v1741, 2147483648
    %v1855 = vor.u32 1.1754944e-38, %v1854
    %v1856 = vsel %vm1853, %v1855, %v1851
    %v1857 = vmul.f32 1.0, %v1856
    %v1858 = vrcp.pop %v1742
    %v1859 = vmul.f32 %v1742, %v1858
    %v1860 = vsub.f32 1.0, %v1859
    %v1861 = vmul.f32 %v1858, %v1860
    %v1862 = vadd.f32 %v1858, %v1861
    %vm1863 = vweird.f32 %v1742
    %vm1864 = vweird.f32 %v1858
    %vm1865 = vmor %vm1863, %vm1864
    %v1866 = vsel %vm1865, %v1858, %v1862
    %v1867 = vand.u32 2147483647, %v1742
    %vm1868 = vcmp.eq.f32.partialorder %v1867, 8.507059e+37
    %v1869 = vand.u32 %v1742, 2147483648
    %v1870 = vor.u32 1.1754944e-38, %v1869
    %v1871 = vsel %vm1868, %v1870, %v1866
    %v1872 = vmul.f32 1.0, %v1871
    %v1873 = vrcp.pop %v1743
    %v1874 = vmul.f32 %v1743, %v1873
    %v1875 = vsub.f32 1.0, %v1874
    %v1876 = vmul.f32 %v1873, %v1875
    %v1877 = vadd.f32 %v1873, %v1876
    %vm1878 = vweird.f32 %v1743
    %vm1879 = vweird.f32 %v1873
    %vm1880 = vmor %vm1878, %vm1879
    %v1881 = vsel %vm1880, %v1873, %v1877
    %v1882 = vand.u32 2147483647, %v1743
    %vm1883 = vcmp.eq.f32.partialorder %v1882, 8.507059e+37
    %v1884 = vand.u32 %v1743, 2147483648
    %v1885 = vor.u32 1.1754944e-38, %v1884
    %v1886 = vsel %vm1883, %v1885, %v1881
    %v1887 = vmul.f32 1.0, %v1886
    %v1888 = vrcp.pop %v1744
    %v1889 = vmul.f32 %v1744, %v1888
    %v1890 = vsub.f32 1.0, %v1889
    %v1891 = vmul.f32 %v1888, %v1890
    %v1892 = vadd.f32 %v1888, %v1891
    %vm1893 = vweird.f32 %v1744
    %vm1894 = vweird.f32 %v1888
    %vm1895 = vmor %vm1893, %vm1894
    %v1896 = vsel %vm1895, %v1888, %v1892
    %v1897 = vand.u32 2147483647, %v1744
    %vm1898 = vcmp.eq.f32.partialorder %v1897, 8.507059e+37
    %v1899 = vand.u32 %v1744, 2147483648
    %v1900 = vor.u32 1.1754944e-38, %v1899
    %v1901 = vsel %vm1898, %v1900, %v1896
    %v1902 = vmul.f32 1.0, %v1901
    %v1903 = vrcp.pop %v1745
    %v1904 = vmul.f32 %v1745, %v1903
    %v1905 = vsub.f32 1.0, %v1904
    %v1906 = vmul.f32 %v1903, %v1905
    %v1907 = vadd.f32 %v1903, %v1906
    %vm1908 = vweird.f32 %v1745
    %vm1909 = vweird.f32 %v1903
    %vm1910 = vmor %vm1908, %vm1909
    %v1911 = vsel %vm1910, %v1903, %v1907
    %v1912 = vand.u32 2147483647, %v1745
    %vm1913 = vcmp.eq.f32.partialorder %v1912, 8.507059e+37
    %v1914 = vand.u32 %v1745, 2147483648
    %v1915 = vor.u32 1.1754944e-38, %v1914
    %v1916 = vsel %vm1913, %v1915, %v1911
    %v1917 = vmul.f32 1.0, %v1916
    %v1918 = vrcp.pop %v1746
    %v1919 = vmul.f32 %v1746, %v1918
    %v1920 = vsub.f32 1.0, %v1919
    %v1921 = vmul.f32 %v1918, %v1920
    %v1922 = vadd.f32 %v1918, %v1921
    %vm1923 = vweird.f32 %v1746
    %vm1924 = vweird.f32 %v1918
    %vm1925 = vmor %vm1923, %vm1924
    %v1926 = vsel %vm1925, %v1918, %v1922
    %v1927 = vand.u32 2147483647, %v1746
    %vm1928 = vcmp.eq.f32.partialorder %v1927, 8.507059e+37
    %v1929 = vand.u32 %v1746, 2147483648
    %v1930 = vor.u32 1.1754944e-38, %v1929
    %v1931 = vsel %vm1928, %v1930, %v1926
    %v1932 = vmul.f32 1.0, %v1931
    %v1933 = vrcp.pop %v1747
    %v1934 = vmul.f32 %v1747, %v1933
    %v1935 = vsub.f32 1.0, %v1934
    %v1936 = vmul.f32 %v1933, %v1935
    %v1937 = vadd.f32 %v1933, %v1936
    %vm1938 = vweird.f32 %v1747
    %vm1939 = vweird.f32 %v1933
    %vm1940 = vmor %vm1938, %vm1939
    %v1941 = vsel %vm1940, %v1933, %v1937
    %v1942 = vand.u32 2147483647, %v1747
    %vm1943 = vcmp.eq.f32.partialorder %v1942, 8.507059e+37
    %v1944 = vand.u32 %v1747, 2147483648
    %v1945 = vor.u32 1.1754944e-38, %v1944
    %v1946 = vsel %vm1943, %v1945, %v1941
    %v1947 = vmul.f32 1.0, %v1946
    %v1948 = vrcp.pop %v1748
    %v1949 = vmul.f32 %v1748, %v1948
    %v1950 = vsub.f32 1.0, %v1949
    %v1951 = vmul.f32 %v1948, %v1950
    %v1952 = vadd.f32 %v1948, %v1951
    %vm1953 = vweird.f32 %v1748
    %vm1954 = vweird.f32 %v1948
    %vm1955 = vmor %vm1953, %vm1954
    %v1956 = vsel %vm1955, %v1948, %v1952
    %v1957 = vand.u32 2147483647, %v1748
    %vm1958 = vcmp.eq.f32.partialorder %v1957, 8.507059e+37
    %v1959 = vand.u32 %v1748, 2147483648
    %v1960 = vor.u32 1.1754944e-38, %v1959
    %v1961 = vsel %vm1958, %v1960, %v1956
    %v1962 = vmul.f32 1.0, %v1961
    %v1963 = vrcp.pop %v1749
    %v1964 = vmul.f32 %v1749, %v1963
    %v1965 = vsub.f32 1.0, %v1964
    %v1966 = vmul.f32 %v1963, %v1965
    %v1967 = vadd.f32 %v1963, %v1966
    %vm1968 = vweird.f32 %v1749
    %vm1969 = vweird.f32 %v1963
    %vm1970 = vmor %vm1968, %vm1969
    %v1971 = vsel %vm1970, %v1963, %v1967
    %v1972 = vand.u32 2147483647, %v1749
    %vm1973 = vcmp.eq.f32.partialorder %v1972, 8.507059e+37
    %v1974 = vand.u32 %v1749, 2147483648
    %v1975 = vor.u32 1.1754944e-38, %v1974
    %v1976 = vsel %vm1973, %v1975, %v1971
    %v1977 = vmul.f32 1.0, %v1976
    %v1978 = vrcp.pop %v1750
    %v1979 = vmul.f32 %v1750, %v1978
    %v1980 = vsub.f32 1.0, %v1979
    %v1981 = vmul.f32 %v1978, %v1980
    %v1982 = vadd.f32 %v1978, %v1981
    %vm1983 = vweird.f32 %v1750
    %vm1984 = vweird.f32 %v1978
    %vm1985 = vmor %vm1983, %vm1984
    %v1986 = vsel %vm1985, %v1978, %v1982
    %v1987 = vand.u32 2147483647, %v1750
    %vm1988 = vcmp.eq.f32.partialorder %v1987, 8.507059e+37
    %v1989 = vand.u32 %v1750, 2147483648
    %v1990 = vor.u32 1.1754944e-38, %v1989
    %v1991 = vsel %vm1988, %v1990, %v1986
    %v1992 = vmul.f32 1.0, %v1991
    %v1993 = vrcp.pop %v1751
    %v1994 = vmul.f32 %v1751, %v1993
    %v1995 = vsub.f32 1.0, %v1994
    %v1996 = vmul.f32 %v1993, %v1995
    %v1997 = vadd.f32 %v1993, %v1996
    %vm1998 = vweird.f32 %v1751
    %vm1999 = vweird.f32 %v1993
    %vm2000 = vmor %vm1998, %vm1999
    %v2001 = vsel %vm2000, %v1993, %v1997
    %v2002 = vand.u32 2147483647, %v1751
    %vm2003 = vcmp.eq.f32.partialorder %v2002, 8.507059e+37
    %v2004 = vand.u32 %v1751, 2147483648
    %v2005 = vor.u32 1.1754944e-38, %v2004
    %v2006 = vsel %vm2003, %v2005, %v2001
    %v2007 = vmul.f32 1.0, %v2006
    %v2008 = vrcp.pop %v1752
    %v2009 = vmul.f32 %v1752, %v2008
    %v2010 = vsub.f32 1.0, %v2009
    %v2011 = vmul.f32 %v2008, %v2010
    %v2012 = vadd.f32 %v2008, %v2011
    %vm2013 = vweird.f32 %v1752
    %vm2014 = vweird.f32 %v2008
    %vm2015 = vmor %vm2013, %vm2014
    %v2016 = vsel %vm2015, %v2008, %v2012
    %v2017 = vand.u32 2147483647, %v1752
    %vm2018 = vcmp.eq.f32.partialorder %v2017, 8.507059e+37
    %v2019 = vand.u32 %v1752, 2147483648
    %v2020 = vor.u32 1.1754944e-38, %v2019
    %v2021 = vsel %vm2018, %v2020, %v2016
    %v2022 = vmul.f32 1.0, %v2021
    %v2023 = vmul.f32 %v1663, %v1767
    %v2024 = vmul.f32 %v1664, %v1782
    %v2025 = vmul.f32 %v1665, %v1797
    %v2026 = vmul.f32 %v1666, %v1812
    %v2027 = vmul.f32 %v1667, %v1827
    %v2028 = vmul.f32 %v1668, %v1842
    %v2029 = vmul.f32 %v1669, %v1857
    %v2030 = vmul.f32 %v1670, %v1872
    %v2031 = vmul.f32 %v1671, %v1887
    %v2032 = vmul.f32 %v1672, %v1902
    %v2033 = vmul.f32 %v1673, %v1917
    %v2034 = vmul.f32 %v1674, %v1932
    %v2035 = vmul.f32 %v1675, %v1947
    %v2036 = vmul.f32 %v1676, %v1962
    %v2037 = vmul.f32 %v1677, %v1977
    %v2038 = vmul.f32 %v1678, %v1992
    %v2039 = vmul.f32 %v1679, %v2007
    %v2040 = vmul.f32 %v1680, %v2022
    %v2041 = vmul.f32 %v2023, %v196
    %v2042 = vmul.f32 %v2024, %v197
    %v2043 = vmul.f32 %v2025, %v198
    %v2044 = vmul.f32 %v2026, %v199
    %v2045 = vmul.f32 %v2027, %v200
    %v2046 = vmul.f32 %v2028, %v201
    %v2047 = vmul.f32 %v2029, %v202
    %v2048 = vmul.f32 %v2030, %v203
    %v2049 = vmul.f32 %v2031, %v204
    %v2050 = vmul.f32 %v2032, %v196
    %v2051 = vmul.f32 %v2033, %v197
    %v2052 = vmul.f32 %v2034, %v198
    %v2053 = vmul.f32 %v2035, %v199
    %v2054 = vmul.f32 %v2036, %v200
    %v2055 = vmul.f32 %v2037, %v201
    %v2056 = vmul.f32 %v2038, %v202
    %v2057 = vmul.f32 %v2039, %v203
    %v2058 = vmul.f32 %v2040, %v204
    %v2077 = vrot.slane %v2041, 7
    %v2078 = vrot.slane %v2042, 7
    %v2079 = vsel %vm876, %v2077, %v2078
    %v2080 = vrot.slane %v2043, 7
    %v2081 = vsel %vm876, %v2078, %v2080
    %v2082 = vrot.slane %v2044, 7
    %v2083 = vsel %vm876, %v2080, %v2082
    %v2084 = vrot.slane %v2045, 7
    %v2085 = vsel %vm876, %v2082, %v2084
    %v2086 = vrot.slane %v2046, 7
    %v2087 = vsel %vm876, %v2084, %v2086
    %v2088 = vrot.slane %v2047, 7
    %v2089 = vsel %vm876, %v2086, %v2088
    %v2090 = vrot.slane %v2048, 7
    %v2091 = vsel %vm876, %v2088, %v2090
    %v2092 = vrot.slane %v2049, 7
    %v2093 = vsel %vm876, %v2090, %v2092
    %v2094 = vrot.slane %v2050, 7
    %v2095 = vsel %vm876, %v2092, %v2094
    %v2096 = vrot.slane %v2051, 7
    %v2097 = vsel %vm876, %v2094, %v2096
    %v2098 = vrot.slane %v2052, 7
    %v2099 = vsel %vm876, %v2096, %v2098
    %v2100 = vrot.slane %v2053, 7
    %v2101 = vsel %vm876, %v2098, %v2100
    %v2102 = vrot.slane %v2054, 7
    %v2103 = vsel %vm876, %v2100, %v2102
    %v2104 = vrot.slane %v2055, 7
    %v2105 = vsel %vm876, %v2102, %v2104
    %v2106 = vrot.slane %v2056, 7
    %v2107 = vsel %vm876, %v2104, %v2106
    %v2108 = vrot.slane %v2057, 7
    %v2109 = vsel %vm876, %v2106, %v2108
    %v2110 = vrot.slane %v2058, 7
    %v2111 = vsel %vm876, %v2108, %v2110
    %v2130 = vsel %vm876, 0.0, %v2077
    %v2131 = vrot.slane %v2041, 1
    %v2132 = vrot.slane %v2042, 1
    %v2133 = vsel %vm931, %v2131, %v2132
    %v2134 = vrot.slane %v2043, 1
    %v2135 = vsel %vm931, %v2132, %v2134
    %v2136 = vrot.slane %v2044, 1
    %v2137 = vsel %vm931, %v2134, %v2136
    %v2138 = vrot.slane %v2045, 1
    %v2139 = vsel %vm931, %v2136, %v2138
    %v2140 = vrot.slane %v2046, 1
    %v2141 = vsel %vm931, %v2138, %v2140
    %v2142 = vrot.slane %v2047, 1
    %v2143 = vsel %vm931, %v2140, %v2142
    %v2144 = vrot.slane %v2048, 1
    %v2145 = vsel %vm931, %v2142, %v2144
    %v2146 = vrot.slane %v2049, 1
    %v2147 = vsel %vm931, %v2144, %v2146
    %v2148 = vrot.slane %v2050, 1
    %v2149 = vsel %vm931, %v2146, %v2148
    %v2150 = vrot.slane %v2051, 1
    %v2151 = vsel %vm931, %v2148, %v2150
    %v2152 = vrot.slane %v2052, 1
    %v2153 = vsel %vm931, %v2150, %v2152
    %v2154 = vrot.slane %v2053, 1
    %v2155 = vsel %vm931, %v2152, %v2154
    %v2156 = vrot.slane %v2054, 1
    %v2157 = vsel %vm931, %v2154, %v2156
    %v2158 = vrot.slane %v2055, 1
    %v2159 = vsel %vm931, %v2156, %v2158
    %v2160 = vrot.slane %v2056, 1
    %v2161 = vsel %vm931, %v2158, %v2160
    %v2162 = vrot.slane %v2057, 1
    %v2163 = vsel %vm931, %v2160, %v2162
    %v2164 = vrot.slane %v2058, 1
    %v2165 = vsel %vm931, %v2162, %v2164
    %v2184 = vsel %vm931, %v2164, 0.0
    %v2185 = vpack.c.bf16 %v2042, %v2041
    %v2186 = vpack.c.bf16 %v2044, %v2043
    %v2187 = vpack.c.bf16 %v2046, %v2045
    %v2188 = vpack.c.bf16 %v2048, %v2047
    %v2189 = vpack.c.bf16 %v2050, %v2049
    %v2190 = vpack.c.bf16 %v2052, %v2051
    %v2191 = vpack.c.bf16 %v2054, %v2053
    %v2192 = vpack.c.bf16 %v2056, %v2055
    %v2193 = vpack.c.bf16 %v2058, %v2057
    %s2194 = scalar_lea.vmem [#allocation14], 64
    %v2195 = vld [vmem:[%s2194] sm:$0xf]
    %v2196 = vld [vmem:[%s2194 + $0x4] sm:$0xf]
    %v2197 = vld [vmem:[%s2194 + $0x8] sm:$0xf]
    %v2198 = vld [vmem:[%s2194 + $0xc] sm:$0xf]
    %v2199 = vld [vmem:[%s2194 + $0x10] sm:$0xf]
    %v2200 = vld [vmem:[%s2194 + $0x14] sm:$0xf]
    %v2201 = vld [vmem:[%s2194 + $0x18] sm:$0xf]
    %v2202 = vld [vmem:[%s2194 + $0x1c] sm:$0xf]
    %v2203 = vld [vmem:[%s2194 + $0x20] sm:$0xf]
    %v2204 = vld [vmem:[%s2194 + $0x24] sm:$0xf]
    %v2205 = vld [vmem:[%s2194 + $0x28] sm:$0xf]
    %v2206 = vld [vmem:[%s2194 + $0x2c] sm:$0xf]
    %v2207 = vld [vmem:[%s2194 + $0x30] sm:$0xf]
    %v2208 = vld [vmem:[%s2194 + $0x34] sm:$0xf]
    %v2209 = vld [vmem:[%s2194 + $0x38] sm:$0xf]
    %v2210 = vld [vmem:[%s2194 + $0x3c] sm:$0xf]
    %v2211 = vpack.c.bf16 %v2079, %v2130
    %v2212 = vpack.c.bf16 %v2083, %v2081
    %v2213 = vpack.c.bf16 %v2087, %v2085
    %v2214 = vpack.c.bf16 %v2091, %v2089
    %v2215 = vpack.c.bf16 %v2095, %v2093
    %v2216 = vpack.c.bf16 %v2099, %v2097
    %v2217 = vpack.c.bf16 %v2103, %v2101
    %v2218 = vpack.c.bf16 %v2107, %v2105
    %v2219 = vpack.c.bf16 %v2111, %v2109
    %v2220 = vld [vmem:[#allocation14] sm:$0xf]
    %v2221 = vld [vmem:[#allocation14 + $0x4] sm:$0xf]
    %v2222 = vld [vmem:[#allocation14 + $0x8] sm:$0xf]
    %v2223 = vld [vmem:[#allocation14 + $0xc] sm:$0xf]
    %v2224 = vld [vmem:[#allocation14 + $0x10] sm:$0xf]
    %v2225 = vld [vmem:[#allocation14 + $0x14] sm:$0xf]
    %v2226 = vld [vmem:[#allocation14 + $0x18] sm:$0xf]
    %v2227 = vld [vmem:[#allocation14 + $0x1c] sm:$0xf]
    %v2228 = vld [vmem:[#allocation14 + $0x20] sm:$0xf]
    %v2229 = vld [vmem:[#allocation14 + $0x24] sm:$0xf]
    %v2230 = vld [vmem:[#allocation14 + $0x28] sm:$0xf]
    %v2231 = vld [vmem:[#allocation14 + $0x2c] sm:$0xf]
    %v2232 = vld [vmem:[#allocation14 + $0x30] sm:$0xf]
    %v2233 = vld [vmem:[#allocation14 + $0x34] sm:$0xf]
    %v2234 = vld [vmem:[#allocation14 + $0x38] sm:$0xf]
    %v2235 = vld [vmem:[#allocation14 + $0x3c] sm:$0xf]
    %v2252 = vunpack.c.l.b16 %v2220
    %v2253 = vunpack.c.l.b16 %v2221
    %v2254 = vunpack.c.l.b16 %v2222
    %v2255 = vunpack.c.l.b16 %v2223
    %v2256 = vunpack.c.l.b16 %v2224
    %v2257 = vunpack.c.l.b16 %v2225
    %v2258 = vunpack.c.l.b16 %v2226
    %v2259 = vunpack.c.l.b16 %v2227
    %v2260 = vunpack.c.l.b16 %v2228
    %v2261 = vunpack.c.l.b16 %v2229
    %v2262 = vunpack.c.l.b16 %v2230
    %v2263 = vunpack.c.l.b16 %v2231
    %v2264 = vunpack.c.l.b16 %v2232
    %v2265 = vunpack.c.l.b16 %v2233
    %v2266 = vunpack.c.l.b16 %v2234
    %v2267 = vunpack.c.l.b16 %v2235
    %v2268 = vpack.c.b16 %v2253, %v2252
    %v2269 = vpack.c.b16 %v2255, %v2254
    %v2270 = vpack.c.b16 %v2257, %v2256
    %v2271 = vpack.c.b16 %v2259, %v2258
    %v2272 = vpack.c.b16 %v2261, %v2260
    %v2273 = vpack.c.b16 %v2263, %v2262
    %v2274 = vpack.c.b16 %v2265, %v2264
    %v2275 = vpack.c.b16 %v2267, %v2266
    %2284 = vmatpush.bf16.msra.mxu0 %v2275
    %2285 = vmatpush.bf16.msra.mxu0 %v2274
    %2286 = vmatpush.bf16.msra.mxu0 %v2273
    %2287 = vmatpush.bf16.msra.mxu0 %v2272
    %2288 = vmatpush.bf16.msra.mxu0 %v2271
    %2289 = vmatpush.bf16.msra.mxu0 %v2270
    %2290 = vmatpush.bf16.msra.mxu0 %v2269
    %2291 = vmatpush.bf16.msra.mxu0 %v2268
    %2292 = vmatmul.bf16.gmra.mxu0 %v2211
    %v2293 = vpop.f32.mrf.mxu0
    %v2294 = vadd.f32 0.0, %v2293
    %v2295 = vpop.f32.mrf.mxu0
    %v2296 = vadd.f32 0.0, %v2295
    %2297 = vmatmul.bf16.gmra.mxu0 %v2212
    %v2298 = vpop.f32.mrf.mxu0
    %v2299 = vadd.f32 0.0, %v2298
    %v2300 = vpop.f32.mrf.mxu0
    %v2301 = vadd.f32 0.0, %v2300
    %2302 = vmatmul.bf16.gmra.mxu0 %v2213
    %v2303 = vpop.f32.mrf.mxu0
    %v2304 = vadd.f32 0.0, %v2303
    %v2305 = vpop.f32.mrf.mxu0
    %v2306 = vadd.f32 0.0, %v2305
    %2307 = vmatmul.bf16.gmra.mxu0 %v2214
    %v2308 = vpop.f32.mrf.mxu0
    %v2309 = vadd.f32 0.0, %v2308
    %v2310 = vpop.f32.mrf.mxu0
    %v2311 = vadd.f32 0.0, %v2310
    %2312 = vmatmul.bf16.gmra.mxu0 %v2215
    %v2313 = vpop.f32.mrf.mxu0
    %v2314 = vadd.f32 0.0, %v2313
    %v2315 = vpop.f32.mrf.mxu0
    %v2316 = vadd.f32 0.0, %v2315
    %2317 = vmatmul.bf16.gmra.mxu0 %v2216
    %v2318 = vpop.f32.mrf.mxu0
    %v2319 = vadd.f32 0.0, %v2318
    %v2320 = vpop.f32.mrf.mxu0
    %v2321 = vadd.f32 0.0, %v2320
    %2322 = vmatmul.bf16.gmra.mxu0 %v2217
    %v2323 = vpop.f32.mrf.mxu0
    %v2324 = vadd.f32 0.0, %v2323
    %v2325 = vpop.f32.mrf.mxu0
    %v2326 = vadd.f32 0.0, %v2325
    %2327 = vmatmul.bf16.gmra.mxu0 %v2218
    %v2328 = vpop.f32.mrf.mxu0
    %v2329 = vadd.f32 0.0, %v2328
    %v2330 = vpop.f32.mrf.mxu0
    %v2331 = vadd.f32 0.0, %v2330
    %2332 = vmatmul.bf16.gmra.mxu0 %v2219
    %v2333 = vpop.f32.mrf.mxu0
    %v2334 = vadd.f32 0.0, %v2333
    %v2335 = vpop.f32.mrf.mxu0
    %v2336 = vadd.f32 0.0, %v2335
    %2337 = vdwg.mxu0
    %v2354 = vunpack.c.l.b16 %v2195
    %v2355 = vunpack.c.l.b16 %v2196
    %v2356 = vunpack.c.l.b16 %v2197
    %v2357 = vunpack.c.l.b16 %v2198
    %v2358 = vunpack.c.l.b16 %v2199
    %v2359 = vunpack.c.l.b16 %v2200
    %v2360 = vunpack.c.l.b16 %v2201
    %v2361 = vunpack.c.l.b16 %v2202
    %v2362 = vunpack.c.l.b16 %v2203
    %v2363 = vunpack.c.l.b16 %v2204
    %v2364 = vunpack.c.l.b16 %v2205
    %v2365 = vunpack.c.l.b16 %v2206
    %v2366 = vunpack.c.l.b16 %v2207
    %v2367 = vunpack.c.l.b16 %v2208
    %v2368 = vunpack.c.l.b16 %v2209
    %v2369 = vunpack.c.l.b16 %v2210
    %v2370 = vpack.c.b16 %v2355, %v2354
    %v2371 = vpack.c.b16 %v2357, %v2356
    %v2372 = vpack.c.b16 %v2359, %v2358
    %v2373 = vpack.c.b16 %v2361, %v2360
    %v2374 = vpack.c.b16 %v2363, %v2362
    %v2375 = vpack.c.b16 %v2365, %v2364
    %v2376 = vpack.c.b16 %v2367, %v2366
    %v2377 = vpack.c.b16 %v2369, %v2368
    %2386 = vmatpush.bf16.msra.mxu0 %v2377
    %2387 = vmatpush.bf16.msra.mxu0 %v2376
    %2388 = vmatpush.bf16.msra.mxu0 %v2375
    %2389 = vmatpush.bf16.msra.mxu0 %v2374
    %2390 = vmatpush.bf16.msra.mxu0 %v2373
    %2391 = vmatpush.bf16.msra.mxu0 %v2372
    %2392 = vmatpush.bf16.msra.mxu0 %v2371
    %2393 = vmatpush.bf16.msra.mxu0 %v2370
    %2394 = vmatmul.bf16.gmra.mxu0 %v2185
    %v2395 = vpop.f32.mrf.mxu0
    %v2396 = vadd.f32 %v2294, %v2395
    %v2397 = vpop.f32.mrf.mxu0
    %v2398 = vadd.f32 %v2296, %v2397
    %2399 = vmatmul.bf16.gmra.mxu0 %v2186
    %v2400 = vpop.f32.mrf.mxu0
    %v2401 = vadd.f32 %v2299, %v2400
    %v2402 = vpop.f32.mrf.mxu0
    %v2403 = vadd.f32 %v2301, %v2402
    %2404 = vmatmul.bf16.gmra.mxu0 %v2187
    %v2405 = vpop.f32.mrf.mxu0
    %v2406 = vadd.f32 %v2304, %v2405
    %v2407 = vpop.f32.mrf.mxu0
    %v2408 = vadd.f32 %v2306, %v2407
    %2409 = vmatmul.bf16.gmra.mxu0 %v2188
    %v2410 = vpop.f32.mrf.mxu0
    %v2411 = vadd.f32 %v2309, %v2410
    %v2412 = vpop.f32.mrf.mxu0
    %v2413 = vadd.f32 %v2311, %v2412
    %2414 = vmatmul.bf16.gmra.mxu0 %v2189
    %v2415 = vpop.f32.mrf.mxu0
    %v2416 = vadd.f32 %v2314, %v2415
    %v2417 = vpop.f32.mrf.mxu0
    %v2418 = vadd.f32 %v2316, %v2417
    %2419 = vmatmul.bf16.gmra.mxu0 %v2190
    %v2420 = vpop.f32.mrf.mxu0
    %v2421 = vadd.f32 %v2319, %v2420
    %v2422 = vpop.f32.mrf.mxu0
    %v2423 = vadd.f32 %v2321, %v2422
    %2424 = vmatmul.bf16.gmra.mxu0 %v2191
    %v2425 = vpop.f32.mrf.mxu0
    %v2426 = vadd.f32 %v2324, %v2425
    %v2427 = vpop.f32.mrf.mxu0
    %v2428 = vadd.f32 %v2326, %v2427
    %2429 = vmatmul.bf16.gmra.mxu0 %v2192
    %v2430 = vpop.f32.mrf.mxu0
    %v2431 = vadd.f32 %v2329, %v2430
    %v2432 = vpop.f32.mrf.mxu0
    %v2433 = vadd.f32 %v2331, %v2432
    %2434 = vmatmul.bf16.gmra.mxu0 %v2193
    %v2435 = vpop.f32.mrf.mxu0
    %v2436 = vadd.f32 %v2334, %v2435
    %v2437 = vpop.f32.mrf.mxu0
    %v2438 = vadd.f32 %v2336, %v2437
    %2439 = vdwg.mxu0
    %v2440 = vpack.c.bf16 %v2135, %v2133
    %v2441 = vpack.c.bf16 %v2139, %v2137
    %v2442 = vpack.c.bf16 %v2143, %v2141
    %v2443 = vpack.c.bf16 %v2147, %v2145
    %v2444 = vpack.c.bf16 %v2151, %v2149
    %v2445 = vpack.c.bf16 %v2155, %v2153
    %v2446 = vpack.c.bf16 %v2159, %v2157
    %v2447 = vpack.c.bf16 %v2163, %v2161
    %v2448 = vpack.c.bf16 %v2184, %v2165
    %s2449 = scalar_lea.vmem [#allocation14], 128
    %v2450 = vld [vmem:[%s2449] sm:$0xf]
    %v2451 = vld [vmem:[%s2449 + $0x4] sm:$0xf]
    %v2452 = vld [vmem:[%s2449 + $0x8] sm:$0xf]
    %v2453 = vld [vmem:[%s2449 + $0xc] sm:$0xf]
    %v2454 = vld [vmem:[%s2449 + $0x10] sm:$0xf]
    %v2455 = vld [vmem:[%s2449 + $0x14] sm:$0xf]
    %v2456 = vld [vmem:[%s2449 + $0x18] sm:$0xf]
    %v2457 = vld [vmem:[%s2449 + $0x1c] sm:$0xf]
    %v2458 = vld [vmem:[%s2449 + $0x20] sm:$0xf]
    %v2459 = vld [vmem:[%s2449 + $0x24] sm:$0xf]
    %v2460 = vld [vmem:[%s2449 + $0x28] sm:$0xf]
    %v2461 = vld [vmem:[%s2449 + $0x2c] sm:$0xf]
    %v2462 = vld [vmem:[%s2449 + $0x30] sm:$0xf]
    %v2463 = vld [vmem:[%s2449 + $0x34] sm:$0xf]
    %v2464 = vld [vmem:[%s2449 + $0x38] sm:$0xf]
    %v2465 = vld [vmem:[%s2449 + $0x3c] sm:$0xf]
    %v2482 = vunpack.c.l.b16 %v2450
    %v2483 = vunpack.c.l.b16 %v2451
    %v2484 = vunpack.c.l.b16 %v2452
    %v2485 = vunpack.c.l.b16 %v2453
    %v2486 = vunpack.c.l.b16 %v2454
    %v2487 = vunpack.c.l.b16 %v2455
    %v2488 = vunpack.c.l.b16 %v2456
    %v2489 = vunpack.c.l.b16 %v2457
    %v2490 = vunpack.c.l.b16 %v2458
    %v2491 = vunpack.c.l.b16 %v2459
    %v2492 = vunpack.c.l.b16 %v2460
    %v2493 = vunpack.c.l.b16 %v2461
    %v2494 = vunpack.c.l.b16 %v2462
    %v2495 = vunpack.c.l.b16 %v2463
    %v2496 = vunpack.c.l.b16 %v2464
    %v2497 = vunpack.c.l.b16 %v2465
    %v2498 = vpack.c.b16 %v2483, %v2482
    %v2499 = vpack.c.b16 %v2485, %v2484
    %v2500 = vpack.c.b16 %v2487, %v2486
    %v2501 = vpack.c.b16 %v2489, %v2488
    %v2502 = vpack.c.b16 %v2491, %v2490
    %v2503 = vpack.c.b16 %v2493, %v2492
    %v2504 = vpack.c.b16 %v2495, %v2494
    %v2505 = vpack.c.b16 %v2497, %v2496
    %2514 = vmatpush.bf16.msra.mxu0 %v2505
    %2515 = vmatpush.bf16.msra.mxu0 %v2504
    %2516 = vmatpush.bf16.msra.mxu0 %v2503
    %2517 = vmatpush.bf16.msra.mxu0 %v2502
    %2518 = vmatpush.bf16.msra.mxu0 %v2501
    %2519 = vmatpush.bf16.msra.mxu0 %v2500
    %2520 = vmatpush.bf16.msra.mxu0 %v2499
    %2521 = vmatpush.bf16.msra.mxu0 %v2498
    %2522 = vmatmul.bf16.gmra.mxu0 %v2440
    %v2523 = vpop.f32.mrf.mxu0
    %v2524 = vadd.f32 0.0, %v2523
    %v2525 = vpop.f32.mrf.mxu0
    %v2526 = vadd.f32 0.0, %v2525
    %2527 = vmatmul.bf16.gmra.mxu0 %v2441
    %v2528 = vpop.f32.mrf.mxu0
    %v2529 = vadd.f32 0.0, %v2528
    %v2530 = vpop.f32.mrf.mxu0
    %v2531 = vadd.f32 0.0, %v2530
    %2532 = vmatmul.bf16.gmra.mxu0 %v2442
    %v2533 = vpop.f32.mrf.mxu0
    %v2534 = vadd.f32 0.0, %v2533
    %v2535 = vpop.f32.mrf.mxu0
    %v2536 = vadd.f32 0.0, %v2535
    %2537 = vmatmul.bf16.gmra.mxu0 %v2443
    %v2538 = vpop.f32.mrf.mxu0
    %v2539 = vadd.f32 0.0, %v2538
    %v2540 = vpop.f32.mrf.mxu0
    %v2541 = vadd.f32 0.0, %v2540
    %2542 = vmatmul.bf16.gmra.mxu0 %v2444
    %v2543 = vpop.f32.mrf.mxu0
    %v2544 = vadd.f32 0.0, %v2543
    %v2545 = vpop.f32.mrf.mxu0
    %v2546 = vadd.f32 0.0, %v2545
    %2547 = vmatmul.bf16.gmra.mxu0 %v2445
    %v2548 = vpop.f32.mrf.mxu0
    %v2549 = vadd.f32 0.0, %v2548
    %v2550 = vpop.f32.mrf.mxu0
    %v2551 = vadd.f32 0.0, %v2550
    %2552 = vmatmul.bf16.gmra.mxu0 %v2446
    %v2553 = vpop.f32.mrf.mxu0
    %v2554 = vadd.f32 0.0, %v2553
    %v2555 = vpop.f32.mrf.mxu0
    %v2556 = vadd.f32 0.0, %v2555
    %2557 = vmatmul.bf16.gmra.mxu0 %v2447
    %v2558 = vpop.f32.mrf.mxu0
    %v2559 = vadd.f32 0.0, %v2558
    %v2560 = vpop.f32.mrf.mxu0
    %v2561 = vadd.f32 0.0, %v2560
    %2562 = vmatmul.bf16.gmra.mxu0 %v2448
    %v2563 = vpop.f32.mrf.mxu0
    %v2564 = vadd.f32 0.0, %v2563
    %v2565 = vpop.f32.mrf.mxu0
    %v2566 = vadd.f32 0.0, %v2565
    %2567 = vdwg.mxu0
    %v2568 = vadd.f32 %v2396, %v2524
    %v2569 = vadd.f32 %v2398, %v2526
    %v2570 = vadd.f32 %v2401, %v2529
    %v2571 = vadd.f32 %v2403, %v2531
    %v2572 = vadd.f32 %v2406, %v2534
    %v2573 = vadd.f32 %v2408, %v2536
    %v2574 = vadd.f32 %v2411, %v2539
    %v2575 = vadd.f32 %v2413, %v2541
    %v2576 = vadd.f32 %v2416, %v2544
    %v2577 = vadd.f32 %v2418, %v2546
    %v2578 = vadd.f32 %v2421, %v2549
    %v2579 = vadd.f32 %v2423, %v2551
    %v2580 = vadd.f32 %v2426, %v2554
    %v2581 = vadd.f32 %v2428, %v2556
    %v2582 = vadd.f32 %v2431, %v2559
    %v2583 = vadd.f32 %v2433, %v2561
    %v2584 = vadd.f32 %v2436, %v2564
    %v2585 = vadd.f32 %v2438, %v2566
    %v2586 = vld [vmem:[%s12] sm:$0x1]
    %v2588 = vperm.slane %v2586, 0
    %v2590 = vadd.f32 %v2568, %v2588
    %v2591 = vadd.f32 %v2569, %v2588
    %v2592 = vadd.f32 %v2570, %v2588
    %v2593 = vadd.f32 %v2571, %v2588
    %v2594 = vadd.f32 %v2572, %v2588
    %v2595 = vadd.f32 %v2573, %v2588
    %v2596 = vadd.f32 %v2574, %v2588
    %v2597 = vadd.f32 %v2575, %v2588
    %v2598 = vadd.f32 %v2576, %v2588
    %v2599 = vadd.f32 %v2577, %v2588
    %v2600 = vadd.f32 %v2578, %v2588
    %v2601 = vadd.f32 %v2579, %v2588
    %v2602 = vadd.f32 %v2580, %v2588
    %v2603 = vadd.f32 %v2581, %v2588
    %v2604 = vadd.f32 %v2582, %v2588
    %v2605 = vadd.f32 %v2583, %v2588
    %v2606 = vadd.f32 %v2584, %v2588
    %v2607 = vadd.f32 %v2585, %v2588
    %v2608 = vadd.f32 %v205, %v2590
    %v2609 = vadd.f32 %v206, %v2591
    %v2610 = vadd.f32 %v207, %v2592
    %v2611 = vadd.f32 %v208, %v2593
    %v2612 = vadd.f32 %v209, %v2594
    %v2613 = vadd.f32 %v210, %v2595
    %v2614 = vadd.f32 %v211, %v2596
    %v2615 = vadd.f32 %v212, %v2597
    %v2616 = vadd.f32 %v213, %v2598
    %v2617 = vadd.f32 %v214, %v2599
    %v2618 = vadd.f32 %v215, %v2600
    %v2619 = vadd.f32 %v216, %v2601
    %v2620 = vadd.f32 %v217, %v2602
    %v2621 = vadd.f32 %v218, %v2603
    %v2622 = vadd.f32 %v219, %v2604
    %v2623 = vadd.f32 %v220, %v2605
    %v2624 = vadd.f32 %v221, %v2606
    %v2625 = vadd.f32 %v222, %v2607
    %2626 = vst [vmem:[#allocation16] sm:$0xff] %v2608
    %2627 = vst [vmem:[#allocation16 + $0x8] sm:$0xff] %v2609
    %2628 = vst [vmem:[#allocation16 + $0x10] sm:$0xff] %v2610
    %2629 = vst [vmem:[#allocation16 + $0x18] sm:$0xff] %v2611
    %2630 = vst [vmem:[#allocation16 + $0x20] sm:$0xff] %v2612
    %2631 = vst [vmem:[#allocation16 + $0x28] sm:$0xff] %v2613
    %2632 = vst [vmem:[#allocation16 + $0x30] sm:$0xff] %v2614
    %2633 = vst [vmem:[#allocation16 + $0x38] sm:$0xff] %v2615
    %2634 = vst [vmem:[#allocation16 + $0x40] sm:$0xff] %v2616
    %2635 = vst [vmem:[#allocation16 + $0x48] sm:$0xff] %v2617
    %2636 = vst [vmem:[#allocation16 + $0x50] sm:$0xff] %v2618
    %2637 = vst [vmem:[#allocation16 + $0x58] sm:$0xff] %v2619
    %2638 = vst [vmem:[#allocation16 + $0x60] sm:$0xff] %v2620
    %2639 = vst [vmem:[#allocation16 + $0x68] sm:$0xff] %v2621
    %2640 = vst [vmem:[#allocation16 + $0x70] sm:$0xff] %v2622
    %2641 = vst [vmem:[#allocation16 + $0x78] sm:$0xff] %v2623
    %2642 = vst [vmem:[#allocation16 + $0x80] sm:$0xff] %v2624
    %2643 = vst [vmem:[#allocation16 + $0x88] sm:$0xff] %v2625
    // Predicated region
    $region86: #{tpu_custom_call.1} parent=1 // pred_check
      _
    $region87: #{tpu_custom_call.1} parent=1 // pred_check_branch
      %2645 = sbr.rel (0) target = $region89
    $region88: #{tpu_custom_call.1} parent=1 // pred_region
      %2647 = vsyncadd [#allocation4], 0
      %s2648 = sshll.u32 [#allocation16], 4
      %s2649 = int_to_ptr.vmem [resolvable:$true] %s2648
      %s2650 = sshll.u32 %s13, 4
      %s2651 = int_to_ptr.hbm [resolvable:$true] %s2650
      %2656 = dma.vmem_to_hbm [thread:$0]  %s2649, 2304, %s2651, [#allocation4], 128, 128, 8
    $region89: #{tpu_custom_call.1} parent=1 // pred_fallthru
      _
    // Predicated region
    $region90: #{tpu_custom_call.1} parent=1 // pred_check
      _
    $region91: #{tpu_custom_call.1} parent=1 // pred_check_branch
      %2658 = sbr.rel (0) target = $region93
    $region92: #{tpu_custom_call.1} parent=1 // pred_region
      %2660 = dma.done [#allocation4], 2304
    $region93: #{tpu_custom_call.1} parent=1 // pred_fallthru
      _
    %2661 = vsyncpa [#allocation3], 1
    %2662 = vsyncpa [#allocation6], 1
    %2663 = vsyncpa [#allocation9], 1
    %2664 = vsyncpa [#allocation12], 1
    %2665 = vsyncpa [#allocation15], 1
    %2666 = vsyncpa [#allocation4], 1

</llo_original>
